<compile_context>
chip_gen: v7x
topology: tpu7x:2x2x1
jax: 0.10.0
libtpu: 0.0.40
codegen_flags: <defaults>
</compile_context>

<pallas_src>
import functools

import jax
import jax.numpy as jnp
import numpy as np
from jax.experimental import pallas as pl
from jax.experimental.pallas import tpu as pltpu  # noqa: F401  (TPU backend)


def _layer_norm(y, alpha, bias, *, d, eps):
    # torch: (y - mean) / (std + eps) * alpha + bias, std unbiased (ddof=1).
    mean = jnp.mean(y, axis=-1, keepdims=True)
    diff = y - mean
    var = jnp.sum(diff * diff, axis=-1, keepdims=True) * (1.0 / (d - 1))
    std = jnp.sqrt(var)
    return diff / (std + eps) * alpha + bias


def _encoder_block_kernel(
    x_ref, mask_ref,
    wq_ref, bq_ref, wk_ref, bk_ref, wv_ref, bv_ref, wo_ref, bo_ref,
    w1_ref, b1_ref, w2_ref, b2_ref,
    ln1_a_ref, ln1_b_ref, ln2_a_ref, ln2_b_ref,
    o_ref,
    *, batch, seq, d_model, num_heads, d_k, d_ff, eps):
    f32 = jnp.float32
    x = x_ref[...].astype(f32)                       # (B*S, D), rows on sublanes

    # ----------------- sublayer 1: multi-head self-attention -----------------
    inv_h = f32(1.0 / num_heads)                     # PyTorch quirk: /num_heads
    wq = wq_ref[...]; wk = wk_ref[...]; wv = wv_ref[...]; wo = wo_ref[...]
    bq = bq_ref[...]; bk = bk_ref[...]; bv = bv_ref[...]
    bo = bo_ref[...]

    attn_rows = []
    for b in range(batch):                           # static, tiny; heads batched below
        xb = x[b * seq:(b + 1) * seq, :]             # (S, D), aligned sublane slice
        xbh = jnp.broadcast_to(xb[None], (num_heads, seq, d_model))   # (H, S, D)

        # Head-major projections: weights arrive pre-shaped (H, D, d_k), so the
        # head split is just the batch dim of one contraction.
        q = (jnp.einsum('hsd,hde->hse', xbh, wq,
                        preferred_element_type=f32) + bq) * inv_h     # (H, S, d_k)
        k = jnp.einsum('hsd,hde->hse', xbh, wk,
                       preferred_element_type=f32) + bk
        v = jnp.einsum('hsd,hde->hse', xbh, wv,
                       preferred_element_type=f32) + bv

        # Scores for all heads at once; the K "transpose" lives in the
        # contraction dims, no materialized .T.
        s = jnp.einsum('hqe,hke->hqk', q, k, preferred_element_type=f32)   # (H, S, S)

        # Mask handled once per batch: one compare+select on (S, S), broadcast
        # additively over heads (-1e9 dominates exactly like masked_fill after
        # the max-subtracted softmax).
        neg = jnp.where(mask_ref[b] == 0, f32(-1000000000.0), f32(0.0))    # (S, S)
        s = s + neg[None, :, :]

        m = jnp.max(s, axis=-1, keepdims=True)
        p = jnp.exp(s - m)
        attn = p * pl.reciprocal(jnp.sum(p, axis=-1, keepdims=True))       # exact recip
        oh = jnp.einsum('hqk,hke->hqe', attn, v,
                        preferred_element_type=f32)                        # (H, S, d_k)

        # Output projection with the head-concat folded in:
        #   concat_h(oh) @ Wo == sum_h oh[h] @ Wo[h*d_k:(h+1)*d_k, :]
        yb = jnp.einsum('hqe,heD->hqD', oh, wo,
                        preferred_element_type=f32)                        # (H, S, D)
        attn_rows.append(jnp.sum(yb, axis=0) + bo)                         # (S, D)

    attn_out = jnp.concatenate(attn_rows, axis=0)    # (B*S, D), sublane-aligned

    # residual 1: x = x + LayerNorm(attention(x))
    x = x + _layer_norm(attn_out, ln1_a_ref[...], ln1_b_ref[...],
                        d=d_model, eps=eps)

    # ----------------- sublayer 2: feed-forward ------------------------------
    h = jnp.dot(x, w1_ref[...], preferred_element_type=f32) + b1_ref[...]
    h = jnp.maximum(h, f32(0.0))
    y = jnp.dot(h, w2_ref[...], preferred_element_type=f32) + b2_ref[...]

    # residual 2: x = x + LayerNorm(ffn(x))
    x = x + _layer_norm(y, ln2_a_ref[...], ln2_b_ref[...], d=d_model, eps=eps)

    o_ref[...] = x.astype(o_ref.dtype)


def encoder_block(x, mask, params, *, num_heads, eps=1e-6):
    """x: (B, S, D); mask: (B, 1, S, S); weights stored (in, out)."""
    B, S, D = x.shape
    assert D % num_heads == 0
    d_k = D // num_heads
    (wq, bq, wk, bk, wv, bv, wo, bo,
     w1, b1, w2, b2, ln1_a, ln1_b, ln2_a, ln2_b) = params
    d_ff = w1.shape[1]

    # Host-side re-layout (free, outside the kernel): make the per-head split a
    # leading batch dim of the in-kernel contractions.
    def head_major(w):                       # (D, D) -> (H, D, d_k)
        return w.reshape(D, num_heads, d_k).transpose(1, 0, 2)

    def head_bias(b):                        # (D,) -> (H, 1, d_k)
        return b.reshape(num_heads, 1, d_k)

    wq_h, wk_h, wv_h = head_major(wq), head_major(wk), head_major(wv)
    bq_h, bk_h, bv_h = head_bias(bq), head_bias(bk), head_bias(bv)
    wo_h = wo.reshape(num_heads, d_k, D)     # concat-fold: rows grouped by head

    x2 = x.reshape(B * S, D)                 # pack all rows on the sublane axis
    mask3 = mask.reshape(B, S, S)            # drop the broadcast head dim

    kernel = functools.partial(
        _encoder_block_kernel, batch=B, seq=S, d_model=D,
        num_heads=num_heads, d_k=d_k, d_ff=d_ff, eps=eps)

    # Single invocation (grid=()): at these sizes everything fits comfortably
    # in VMEM, weights are resident exactly once and there is no per-step
    # pipeline overhead.
    out = pl.pallas_call(
        kernel,
        out_shape=jax.ShapeDtypeStruct((B * S, D), x.dtype),
    )(x2, mask3,
      wq_h, bq_h, wk_h, bk_h, wv_h, bv_h, wo_h, bo.reshape(1, D),
      w1, b1.reshape(1, d_ff), w2, b2.reshape(1, D),
      ln1_a.reshape(1, D), ln1_b.reshape(1, D),
      ln2_a.reshape(1, D), ln2_b.reshape(1, D))
    return out.reshape(B, S, D)


def _reference(x, mask, params, *, num_heads, eps=1e-6):
    """Pure-JAX reference mirroring the PyTorch EncoderBlock forward (eval)."""
    (wq, bq, wk, bk, wv, bv, wo, bo,
     w1, b1, w2, b2, ln1_a, ln1_b, ln2_a, ln2_b) = params
    B, S, D = x.shape
    d_k = D // num_heads

    def layer_norm(y, alpha, bias):
        mean = jnp.mean(y, axis=-1, keepdims=True)
        std = jnp.std(y, axis=-1, keepdims=True, ddof=1)
        return (y - mean) / (std + eps) * alpha + bias

    def mha(xin):
        Q = (xin @ wq + bq).reshape(B, S, num_heads, d_k).transpose(0, 2, 1, 3)
        K = (xin @ wk + bk).reshape(B, S, num_heads, d_k).transpose(0, 2, 1, 3)
        V = (xin @ wv + bv).reshape(B, S, num_heads, d_k).transpose(0, 2, 1, 3)
        scores = jnp.einsum("bhqd,bhkd->bhqk", Q, K) / float(num_heads)
        scores = jnp.where(mask == 0, -1000000000.0, scores)
        attn = jax.nn.softmax(scores, axis=-1)
        out = jnp.einsum("bhqk,bhkd->bhqd", attn, V)
        out = out.transpose(0, 2, 1, 3).reshape(B, S, D)
        return out @ wo + bo

    def ffn(y):
        return jnp.maximum(y @ w1 + b1, 0.0) @ w2 + b2

    x = x + layer_norm(mha(x), ln1_a, ln1_b)
    x = x + layer_norm(ffn(x), ln2_a, ln2_b)
    return x


if __name__ == "__main__":
    B, S, d_model, num_heads, d_ff = 2, 8, 32, 4, 64

    key = jax.random.PRNGKey(0)
    keys = jax.random.split(key, 14)

    def lin_init(kw, kb, fan_in, fan_out):
        bound = 1.0 / np.sqrt(fan_in)
        w = jax.random.uniform(kw, (fan_in, fan_out), jnp.float32, -bound, bound)
        b = jax.random.uniform(kb, (fan_out,), jnp.float32, -bound, bound)
        return w, b

    wq, bq = lin_init(keys[0], keys[1], d_model, d_model)
    wk, bk = lin_init(keys[2], keys[3], d_model, d_model)
    wv, bv = lin_init(keys[4], keys[5], d_model, d_model)
    wo, bo = lin_init(keys[6], keys[7], d_model, d_model)
    w1, b1 = lin_init(keys[8], keys[9], d_model, d_ff)
    w2, b2 = lin_init(keys[10], keys[11], d_ff, d_model)
    ln1_a = jnp.ones((d_model,), jnp.float32)
    ln1_b = jnp.zeros((d_model,), jnp.float32)
    ln2_a = jnp.ones((d_model,), jnp.float32)
    ln2_b = jnp.zeros((d_model,), jnp.float32)
    params = (wq, bq, wk, bk, wv, bv, wo, bo,
              w1, b1, w2, b2, ln1_a, ln1_b, ln2_a, ln2_b)

    x = jax.random.normal(keys[12], (B, S, d_model), jnp.float32)
    # causal mask, broadcast over heads: (B, 1, S, S)
    mask = jnp.broadcast_to(jnp.tril(jnp.ones((S, S), jnp.float32)),
                            (B, 1, S, S))

    out = encoder_block(x, mask, params, num_heads=num_heads)
    out = jax.block_until_ready(out)

    ref = _reference(x, mask, params, num_heads=num_heads)
    np.testing.assert_allclose(np.asarray(out), np.asarray(ref),
                               rtol=1e-4, atol=1e-4)

    print("KERNEL_OK")
</pallas_src>

<mosaic_0001>
module attributes {stable_mosaic.version = 11 : i64} {
  func.func @_encoder_block_kernel(%arg0: memref<16x32xf32, #tpu.memory_space<vmem>>, %arg1: memref<2x8x8xf32, #tpu.memory_space<vmem>>, %arg2: memref<4x32x8xf32, #tpu.memory_space<vmem>>, %arg3: memref<4x1x8xf32, #tpu.memory_space<vmem>>, %arg4: memref<4x32x8xf32, #tpu.memory_space<vmem>>, %arg5: memref<4x1x8xf32, #tpu.memory_space<vmem>>, %arg6: memref<4x32x8xf32, #tpu.memory_space<vmem>>, %arg7: memref<4x1x8xf32, #tpu.memory_space<vmem>>, %arg8: memref<4x8x32xf32, #tpu.memory_space<vmem>>, %arg9: memref<1x32xf32, #tpu.memory_space<vmem>>, %arg10: memref<32x64xf32, #tpu.memory_space<vmem>>, %arg11: memref<1x64xf32, #tpu.memory_space<vmem>>, %arg12: memref<64x32xf32, #tpu.memory_space<vmem>>, %arg13: memref<1x32xf32, #tpu.memory_space<vmem>>, %arg14: memref<1x32xf32, #tpu.memory_space<vmem>>, %arg15: memref<1x32xf32, #tpu.memory_space<vmem>>, %arg16: memref<1x32xf32, #tpu.memory_space<vmem>>, %arg17: memref<1x32xf32, #tpu.memory_space<vmem>>, %arg18: memref<16x32xf32, #tpu.memory_space<vmem>>) attributes {dimension_semantics = [], scalar_prefetch = 0 : i64, scratch_operands = 0 : i64, tpu.core_type = #tpu.core_type<tc>} {
    %c0 = arith.constant 0 : index
    %c0_0 = arith.constant 0 : index
    %0 = vector.load %arg0[%c0, %c0_0] : memref<16x32xf32, #tpu.memory_space<vmem>>, vector<16x32xf32>
    %c0_1 = arith.constant 0 : index
    %c0_2 = arith.constant 0 : index
    %c0_3 = arith.constant 0 : index
    %1 = vector.load %arg2[%c0_1, %c0_2, %c0_3] : memref<4x32x8xf32, #tpu.memory_space<vmem>>, vector<4x32x8xf32>
    %c0_4 = arith.constant 0 : index
    %c0_5 = arith.constant 0 : index
    %c0_6 = arith.constant 0 : index
    %2 = vector.load %arg4[%c0_4, %c0_5, %c0_6] : memref<4x32x8xf32, #tpu.memory_space<vmem>>, vector<4x32x8xf32>
    %c0_7 = arith.constant 0 : index
    %c0_8 = arith.constant 0 : index
    %c0_9 = arith.constant 0 : index
    %3 = vector.load %arg6[%c0_7, %c0_8, %c0_9] : memref<4x32x8xf32, #tpu.memory_space<vmem>>, vector<4x32x8xf32>
    %c0_10 = arith.constant 0 : index
    %c0_11 = arith.constant 0 : index
    %c0_12 = arith.constant 0 : index
    %4 = vector.load %arg8[%c0_10, %c0_11, %c0_12] : memref<4x8x32xf32, #tpu.memory_space<vmem>>, vector<4x8x32xf32>
    %c0_13 = arith.constant 0 : index
    %c0_14 = arith.constant 0 : index
    %c0_15 = arith.constant 0 : index
    %5 = vector.load %arg3[%c0_13, %c0_14, %c0_15] : memref<4x1x8xf32, #tpu.memory_space<vmem>>, vector<4x1x8xf32>
    %c0_16 = arith.constant 0 : index
    %c0_17 = arith.constant 0 : index
    %c0_18 = arith.constant 0 : index
    %6 = vector.load %arg5[%c0_16, %c0_17, %c0_18] : memref<4x1x8xf32, #tpu.memory_space<vmem>>, vector<4x1x8xf32>
    %c0_19 = arith.constant 0 : index
    %c0_20 = arith.constant 0 : index
    %c0_21 = arith.constant 0 : index
    %7 = vector.load %arg7[%c0_19, %c0_20, %c0_21] : memref<4x1x8xf32, #tpu.memory_space<vmem>>, vector<4x1x8xf32>
    %c0_22 = arith.constant 0 : index
    %c0_23 = arith.constant 0 : index
    %8 = vector.load %arg9[%c0_22, %c0_23] : memref<1x32xf32, #tpu.memory_space<vmem>>, vector<1x32xf32>
    %9 = vector.extract_strided_slice %0 {offsets = [0, 0], sizes = [8, 32], strides = [1, 1]} : vector<16x32xf32> to vector<8x32xf32>
    %10 = vector.shape_cast %9 : vector<8x32xf32> to vector<1x8x32xf32>
    %11 = vector.shape_cast %10 : vector<1x8x32xf32> to vector<1x8x32xf32>
    %12 = vector.broadcast %11 : vector<1x8x32xf32> to vector<4x8x32xf32>
    "tpu.trace_start"() <{level = 10 : i32, message = "hsd,hde->hse"}> : () -> ()
    %cst = arith.constant dense<0.000000e+00> : vector<4x8x8xf32>
    %13 = tpu.matmul %12, %1, %cst {dimension_numbers = #tpu.dot_dimension_numbers<[2], [1], [1], [2], [0, 0, 0, 1, 1, 2], [0], [0]>} : vector<4x8x32xf32>, vector<4x32x8xf32>, vector<4x8x8xf32> -> vector<4x8x8xf32>
    "tpu.trace_stop"() : () -> ()
    %14 = vector.broadcast %5 : vector<4x1x8xf32> to vector<4x8x8xf32>
    %15 = arith.addf %13, %14 : vector<4x8x8xf32>
    %cst_24 = arith.constant 2.500000e-01 : f32
    %16 = vector.broadcast %cst_24 : f32 to vector<4x8x8xf32>
    %17 = arith.mulf %15, %16 : vector<4x8x8xf32>
    "tpu.trace_start"() <{level = 10 : i32, message = "hsd,hde->hse"}> : () -> ()
    %cst_25 = arith.constant dense<0.000000e+00> : vector<4x8x8xf32>
    %18 = tpu.matmul %12, %2, %cst_25 {dimension_numbers = #tpu.dot_dimension_numbers<[2], [1], [1], [2], [0, 0, 0, 1, 1, 2], [0], [0]>} : vector<4x8x32xf32>, vector<4x32x8xf32>, vector<4x8x8xf32> -> vector<4x8x8xf32>
    "tpu.trace_stop"() : () -> ()
    %19 = vector.broadcast %6 : vector<4x1x8xf32> to vector<4x8x8xf32>
    %20 = arith.addf %18, %19 : vector<4x8x8xf32>
    "tpu.trace_start"() <{level = 10 : i32, message = "hsd,hde->hse"}> : () -> ()
    %cst_26 = arith.constant dense<0.000000e+00> : vector<4x8x8xf32>
    %21 = tpu.matmul %12, %3, %cst_26 {dimension_numbers = #tpu.dot_dimension_numbers<[2], [1], [1], [2], [0, 0, 0, 1, 1, 2], [0], [0]>} : vector<4x8x32xf32>, vector<4x32x8xf32>, vector<4x8x8xf32> -> vector<4x8x8xf32>
    "tpu.trace_stop"() : () -> ()
    %22 = vector.broadcast %7 : vector<4x1x8xf32> to vector<4x8x8xf32>
    %23 = arith.addf %21, %22 : vector<4x8x8xf32>
    "tpu.trace_start"() <{level = 10 : i32, message = "hqe,hke->hqk"}> : () -> ()
    %cst_27 = arith.constant dense<0.000000e+00> : vector<4x8x8xf32>
    %24 = tpu.matmul %17, %20, %cst_27 {dimension_numbers = #tpu.dot_dimension_numbers<[2], [2], [1], [1], [0, 0, 0, 1, 1, 1], [0], [0]>} : vector<4x8x8xf32>, vector<4x8x8xf32>, vector<4x8x8xf32> -> vector<4x8x8xf32>
    "tpu.trace_stop"() : () -> ()
    %c0_28 = arith.constant 0 : index
    %c0_29 = arith.constant 0 : index
    %c0_30 = arith.constant 0 : index
    %25 = vector.load %arg1[%c0_28, %c0_29, %c0_30] : memref<2x8x8xf32, #tpu.memory_space<vmem>>, vector<1x8x8xf32>
    %26 = vector.shape_cast %25 : vector<1x8x8xf32> to vector<8x8xf32>
    %cst_31 = arith.constant 0.000000e+00 : f32
    %27 = vector.broadcast %cst_31 : f32 to vector<8x8xf32>
    %28 = arith.cmpf oeq, %26, %27 : vector<8x8xf32>
    %cst_32 = arith.constant -1.000000e+09 : f32
    %cst_33 = arith.constant 0.000000e+00 : f32
    %29 = vector.broadcast %cst_32 : f32 to vector<8x8xf32>
    %30 = vector.broadcast %cst_33 : f32 to vector<8x8xf32>
    %31 = arith.select %28, %29, %30 : vector<8x8xi1>, vector<8x8xf32>
    %32 = vector.shape_cast %31 : vector<8x8xf32> to vector<1x8x8xf32>
    %33 = vector.broadcast %32 : vector<1x8x8xf32> to vector<4x8x8xf32>
    %34 = arith.addf %24, %33 : vector<4x8x8xf32>
    %cst_34 = arith.constant dense<0xFF800000> : vector<4x8xf32>
    %35 = vector.multi_reduction <maximumf>, %34, %cst_34 [2] : vector<4x8x8xf32> to vector<4x8xf32>
    %36 = vector.shape_cast %35 : vector<4x8xf32> to vector<4x8x1xf32>
    %37 = vector.broadcast %36 : vector<4x8x1xf32> to vector<4x8x8xf32>
    %38 = arith.subf %34, %37 : vector<4x8x8xf32>
    %39 = math.exp %38 : vector<4x8x8xf32>
    %cst_35 = arith.constant dense<0.000000e+00> : vector<4x8xf32>
    %40 = vector.multi_reduction <add>, %39, %cst_35 [2] : vector<4x8x8xf32> to vector<4x8xf32>
    %41 = vector.shape_cast %40 : vector<4x8xf32> to vector<4x8x1xf32>
    %42 = tpu.reciprocal %41 : vector<4x8x1xf32> -> vector<4x8x1xf32>
    %43 = vector.broadcast %42 : vector<4x8x1xf32> to vector<4x8x8xf32>
    %44 = arith.mulf %39, %43 : vector<4x8x8xf32>
    "tpu.trace_start"() <{level = 10 : i32, message = "hqk,hke->hqe"}> : () -> ()
    %cst_36 = arith.constant dense<0.000000e+00> : vector<4x8x8xf32>
    %45 = tpu.matmul %44, %23, %cst_36 {dimension_numbers = #tpu.dot_dimension_numbers<[2], [1], [1], [2], [0, 0, 0, 1, 1, 2], [0], [0]>} : vector<4x8x8xf32>, vector<4x8x8xf32>, vector<4x8x8xf32> -> vector<4x8x8xf32>
    "tpu.trace_stop"() : () -> ()
    "tpu.trace_start"() <{level = 10 : i32, message = "hqe,heD->hqD"}> : () -> ()
    %cst_37 = arith.constant dense<0.000000e+00> : vector<4x8x32xf32>
    %46 = tpu.matmul %45, %4, %cst_37 {dimension_numbers = #tpu.dot_dimension_numbers<[2], [1], [1], [2], [0, 0, 0, 1, 1, 2], [0], [0]>} : vector<4x8x8xf32>, vector<4x8x32xf32>, vector<4x8x32xf32> -> vector<4x8x32xf32>
    "tpu.trace_stop"() : () -> ()
    %cst_38 = arith.constant dense<0.000000e+00> : vector<8x32xf32>
    %47 = vector.multi_reduction <add>, %46, %cst_38 [0] : vector<4x8x32xf32> to vector<8x32xf32>
    %48 = vector.broadcast %8 : vector<1x32xf32> to vector<8x32xf32>
    %49 = arith.addf %47, %48 : vector<8x32xf32>
    %50 = vector.extract_strided_slice %0 {offsets = [8, 0], sizes = [8, 32], strides = [1, 1]} : vector<16x32xf32> to vector<8x32xf32>
    %51 = vector.shape_cast %50 : vector<8x32xf32> to vector<1x8x32xf32>
    %52 = vector.shape_cast %51 : vector<1x8x32xf32> to vector<1x8x32xf32>
    %53 = vector.broadcast %52 : vector<1x8x32xf32> to vector<4x8x32xf32>
    "tpu.trace_start"() <{level = 10 : i32, message = "hsd,hde->hse"}> : () -> ()
    %cst_39 = arith.constant dense<0.000000e+00> : vector<4x8x8xf32>
    %54 = tpu.matmul %53, %1, %cst_39 {dimension_numbers = #tpu.dot_dimension_numbers<[2], [1], [1], [2], [0, 0, 0, 1, 1, 2], [0], [0]>} : vector<4x8x32xf32>, vector<4x32x8xf32>, vector<4x8x8xf32> -> vector<4x8x8xf32>
    "tpu.trace_stop"() : () -> ()
    %55 = vector.broadcast %5 : vector<4x1x8xf32> to vector<4x8x8xf32>
    %56 = arith.addf %54, %55 : vector<4x8x8xf32>
    %cst_40 = arith.constant 2.500000e-01 : f32
    %57 = vector.broadcast %cst_40 : f32 to vector<4x8x8xf32>
    %58 = arith.mulf %56, %57 : vector<4x8x8xf32>
    "tpu.trace_start"() <{level = 10 : i32, message = "hsd,hde->hse"}> : () -> ()
    %cst_41 = arith.constant dense<0.000000e+00> : vector<4x8x8xf32>
    %59 = tpu.matmul %53, %2, %cst_41 {dimension_numbers = #tpu.dot_dimension_numbers<[2], [1], [1], [2], [0, 0, 0, 1, 1, 2], [0], [0]>} : vector<4x8x32xf32>, vector<4x32x8xf32>, vector<4x8x8xf32> -> vector<4x8x8xf32>
    "tpu.trace_stop"() : () -> ()
    %60 = vector.broadcast %6 : vector<4x1x8xf32> to vector<4x8x8xf32>
    %61 = arith.addf %59, %60 : vector<4x8x8xf32>
    "tpu.trace_start"() <{level = 10 : i32, message = "hsd,hde->hse"}> : () -> ()
    %cst_42 = arith.constant dense<0.000000e+00> : vector<4x8x8xf32>
    %62 = tpu.matmul %53, %3, %cst_42 {dimension_numbers = #tpu.dot_dimension_numbers<[2], [1], [1], [2], [0, 0, 0, 1, 1, 2], [0], [0]>} : vector<4x8x32xf32>, vector<4x32x8xf32>, vector<4x8x8xf32> -> vector<4x8x8xf32>
    "tpu.trace_stop"() : () -> ()
    %63 = vector.broadcast %7 : vector<4x1x8xf32> to vector<4x8x8xf32>
    %64 = arith.addf %62, %63 : vector<4x8x8xf32>
    "tpu.trace_start"() <{level = 10 : i32, message = "hqe,hke->hqk"}> : () -> ()
    %cst_43 = arith.constant dense<0.000000e+00> : vector<4x8x8xf32>
    %65 = tpu.matmul %58, %61, %cst_43 {dimension_numbers = #tpu.dot_dimension_numbers<[2], [2], [1], [1], [0, 0, 0, 1, 1, 1], [0], [0]>} : vector<4x8x8xf32>, vector<4x8x8xf32>, vector<4x8x8xf32> -> vector<4x8x8xf32>
    "tpu.trace_stop"() : () -> ()
    %c1 = arith.constant 1 : index
    %c0_44 = arith.constant 0 : index
    %c0_45 = arith.constant 0 : index
    %66 = vector.load %arg1[%c1, %c0_44, %c0_45] : memref<2x8x8xf32, #tpu.memory_space<vmem>>, vector<1x8x8xf32>
    %67 = vector.shape_cast %66 : vector<1x8x8xf32> to vector<8x8xf32>
    %cst_46 = arith.constant 0.000000e+00 : f32
    %68 = vector.broadcast %cst_46 : f32 to vector<8x8xf32>
    %69 = arith.cmpf oeq, %67, %68 : vector<8x8xf32>
    %cst_47 = arith.constant -1.000000e+09 : f32
    %cst_48 = arith.constant 0.000000e+00 : f32
    %70 = vector.broadcast %cst_47 : f32 to vector<8x8xf32>
    %71 = vector.broadcast %cst_48 : f32 to vector<8x8xf32>
    %72 = arith.select %69, %70, %71 : vector<8x8xi1>, vector<8x8xf32>
    %73 = vector.shape_cast %72 : vector<8x8xf32> to vector<1x8x8xf32>
    %74 = vector.broadcast %73 : vector<1x8x8xf32> to vector<4x8x8xf32>
    %75 = arith.addf %65, %74 : vector<4x8x8xf32>
    %cst_49 = arith.constant dense<0xFF800000> : vector<4x8xf32>
    %76 = vector.multi_reduction <maximumf>, %75, %cst_49 [2] : vector<4x8x8xf32> to vector<4x8xf32>
    %77 = vector.shape_cast %76 : vector<4x8xf32> to vector<4x8x1xf32>
    %78 = vector.broadcast %77 : vector<4x8x1xf32> to vector<4x8x8xf32>
    %79 = arith.subf %75, %78 : vector<4x8x8xf32>
    %80 = math.exp %79 : vector<4x8x8xf32>
    %cst_50 = arith.constant dense<0.000000e+00> : vector<4x8xf32>
    %81 = vector.multi_reduction <add>, %80, %cst_50 [2] : vector<4x8x8xf32> to vector<4x8xf32>
    %82 = vector.shape_cast %81 : vector<4x8xf32> to vector<4x8x1xf32>
    %83 = tpu.reciprocal %82 : vector<4x8x1xf32> -> vector<4x8x1xf32>
    %84 = vector.broadcast %83 : vector<4x8x1xf32> to vector<4x8x8xf32>
    %85 = arith.mulf %80, %84 : vector<4x8x8xf32>
    "tpu.trace_start"() <{level = 10 : i32, message = "hqk,hke->hqe"}> : () -> ()
    %cst_51 = arith.constant dense<0.000000e+00> : vector<4x8x8xf32>
    %86 = tpu.matmul %85, %64, %cst_51 {dimension_numbers = #tpu.dot_dimension_numbers<[2], [1], [1], [2], [0, 0, 0, 1, 1, 2], [0], [0]>} : vector<4x8x8xf32>, vector<4x8x8xf32>, vector<4x8x8xf32> -> vector<4x8x8xf32>
    "tpu.trace_stop"() : () -> ()
    "tpu.trace_start"() <{level = 10 : i32, message = "hqe,heD->hqD"}> : () -> ()
    %cst_52 = arith.constant dense<0.000000e+00> : vector<4x8x32xf32>
    %87 = tpu.matmul %86, %4, %cst_52 {dimension_numbers = #tpu.dot_dimension_numbers<[2], [1], [1], [2], [0, 0, 0, 1, 1, 2], [0], [0]>} : vector<4x8x8xf32>, vector<4x8x32xf32>, vector<4x8x32xf32> -> vector<4x8x32xf32>
    "tpu.trace_stop"() : () -> ()
    %cst_53 = arith.constant dense<0.000000e+00> : vector<8x32xf32>
    %88 = vector.multi_reduction <add>, %87, %cst_53 [0] : vector<4x8x32xf32> to vector<8x32xf32>
    %89 = vector.broadcast %8 : vector<1x32xf32> to vector<8x32xf32>
    %90 = arith.addf %88, %89 : vector<8x32xf32>
    %91 = tpu.concatenate %49, %90 in 0 : vector<8x32xf32>, vector<8x32xf32> -> vector<16x32xf32>
    %c0_54 = arith.constant 0 : index
    %c0_55 = arith.constant 0 : index
    %92 = vector.load %arg14[%c0_54, %c0_55] : memref<1x32xf32, #tpu.memory_space<vmem>>, vector<1x32xf32>
    %c0_56 = arith.constant 0 : index
    %c0_57 = arith.constant 0 : index
    %93 = vector.load %arg15[%c0_56, %c0_57] : memref<1x32xf32, #tpu.memory_space<vmem>>, vector<1x32xf32>
    %cst_58 = arith.constant dense<0.000000e+00> : vector<16xf32>
    %94 = vector.multi_reduction <add>, %91, %cst_58 [1] : vector<16x32xf32> to vector<16xf32>
    %95 = vector.shape_cast %94 : vector<16xf32> to vector<16x1xf32>
    %cst_59 = arith.constant 3.200000e+01 : f32
    %96 = vector.broadcast %cst_59 : f32 to vector<16x1xf32>
    %97 = arith.divf %95, %96 : vector<16x1xf32>
    %98 = vector.broadcast %97 : vector<16x1xf32> to vector<16x32xf32>
    %99 = arith.subf %91, %98 : vector<16x32xf32>
    %100 = arith.mulf %99, %99 : vector<16x32xf32>
    %cst_60 = arith.constant dense<0.000000e+00> : vector<16xf32>
    %101 = vector.multi_reduction <add>, %100, %cst_60 [1] : vector<16x32xf32> to vector<16xf32>
    %102 = vector.shape_cast %101 : vector<16xf32> to vector<16x1xf32>
    %cst_61 = arith.constant 0.0322580636 : f32
    %103 = vector.broadcast %cst_61 : f32 to vector<16x1xf32>
    %104 = arith.mulf %102, %103 : vector<16x1xf32>
    %105 = math.sqrt %104 : vector<16x1xf32>
    %cst_62 = arith.constant 9.99999997E-7 : f32
    %106 = vector.broadcast %cst_62 : f32 to vector<16x1xf32>
    %107 = arith.addf %105, %106 : vector<16x1xf32>
    %108 = vector.broadcast %107 : vector<16x1xf32> to vector<16x32xf32>
    %109 = arith.divf %99, %108 : vector<16x32xf32>
    %110 = vector.broadcast %92 : vector<1x32xf32> to vector<16x32xf32>
    %111 = arith.mulf %109, %110 : vector<16x32xf32>
    %112 = vector.broadcast %93 : vector<1x32xf32> to vector<16x32xf32>
    %113 = arith.addf %111, %112 : vector<16x32xf32>
    %114 = arith.addf %0, %113 : vector<16x32xf32>
    %c0_63 = arith.constant 0 : index
    %c0_64 = arith.constant 0 : index
    %115 = vector.load %arg10[%c0_63, %c0_64] : memref<32x64xf32, #tpu.memory_space<vmem>>, vector<32x64xf32>
    %cst_65 = arith.constant dense<0.000000e+00> : vector<16x64xf32>
    %116 = tpu.matmul %114, %115, %cst_65 {dimension_numbers = #tpu.dot_dimension_numbers<[1], [0], [0], [1], [0, 0, 1, 1], [], []>} : vector<16x32xf32>, vector<32x64xf32>, vector<16x64xf32> -> vector<16x64xf32>
    %c0_66 = arith.constant 0 : index
    %c0_67 = arith.constant 0 : index
    %117 = vector.load %arg11[%c0_66, %c0_67] : memref<1x64xf32, #tpu.memory_space<vmem>>, vector<1x64xf32>
    %118 = vector.broadcast %117 : vector<1x64xf32> to vector<16x64xf32>
    %119 = arith.addf %116, %118 : vector<16x64xf32>
    %cst_68 = arith.constant 0.000000e+00 : f32
    %120 = vector.broadcast %cst_68 : f32 to vector<16x64xf32>
    %121 = arith.maximumf %119, %120 : vector<16x64xf32>
    %c0_69 = arith.constant 0 : index
    %c0_70 = arith.constant 0 : index
    %122 = vector.load %arg12[%c0_69, %c0_70] : memref<64x32xf32, #tpu.memory_space<vmem>>, vector<64x32xf32>
    %cst_71 = arith.constant dense<0.000000e+00> : vector<16x32xf32>
    %123 = tpu.matmul %121, %122, %cst_71 {dimension_numbers = #tpu.dot_dimension_numbers<[1], [0], [0], [1], [0, 0, 1, 1], [], []>} : vector<16x64xf32>, vector<64x32xf32>, vector<16x32xf32> -> vector<16x32xf32>
    %c0_72 = arith.constant 0 : index
    %c0_73 = arith.constant 0 : index
    %124 = vector.load %arg13[%c0_72, %c0_73] : memref<1x32xf32, #tpu.memory_space<vmem>>, vector<1x32xf32>
    %125 = vector.broadcast %124 : vector<1x32xf32> to vector<16x32xf32>
    %126 = arith.addf %123, %125 : vector<16x32xf32>
    %c0_74 = arith.constant 0 : index
    %c0_75 = arith.constant 0 : index
    %127 = vector.load %arg16[%c0_74, %c0_75] : memref<1x32xf32, #tpu.memory_space<vmem>>, vector<1x32xf32>
    %c0_76 = arith.constant 0 : index
    %c0_77 = arith.constant 0 : index
    %128 = vector.load %arg17[%c0_76, %c0_77] : memref<1x32xf32, #tpu.memory_space<vmem>>, vector<1x32xf32>
    %cst_78 = arith.constant dense<0.000000e+00> : vector<16xf32>
    %129 = vector.multi_reduction <add>, %126, %cst_78 [1] : vector<16x32xf32> to vector<16xf32>
    %130 = vector.shape_cast %129 : vector<16xf32> to vector<16x1xf32>
    %cst_79 = arith.constant 3.200000e+01 : f32
    %131 = vector.broadcast %cst_79 : f32 to vector<16x1xf32>
    %132 = arith.divf %130, %131 : vector<16x1xf32>
    %133 = vector.broadcast %132 : vector<16x1xf32> to vector<16x32xf32>
    %134 = arith.subf %126, %133 : vector<16x32xf32>
    %135 = arith.mulf %134, %134 : vector<16x32xf32>
    %cst_80 = arith.constant dense<0.000000e+00> : vector<16xf32>
    %136 = vector.multi_reduction <add>, %135, %cst_80 [1] : vector<16x32xf32> to vector<16xf32>
    %137 = vector.shape_cast %136 : vector<16xf32> to vector<16x1xf32>
    %cst_81 = arith.constant 0.0322580636 : f32
    %138 = vector.broadcast %cst_81 : f32 to vector<16x1xf32>
    %139 = arith.mulf %137, %138 : vector<16x1xf32>
    %140 = math.sqrt %139 : vector<16x1xf32>
    %cst_82 = arith.constant 9.99999997E-7 : f32
    %141 = vector.broadcast %cst_82 : f32 to vector<16x1xf32>
    %142 = arith.addf %140, %141 : vector<16x1xf32>
    %143 = vector.broadcast %142 : vector<16x1xf32> to vector<16x32xf32>
    %144 = arith.divf %134, %143 : vector<16x32xf32>
    %145 = vector.broadcast %127 : vector<1x32xf32> to vector<16x32xf32>
    %146 = arith.mulf %144, %145 : vector<16x32xf32>
    %147 = vector.broadcast %128 : vector<1x32xf32> to vector<16x32xf32>
    %148 = arith.addf %146, %147 : vector<16x32xf32>
    %149 = arith.addf %114, %148 : vector<16x32xf32>
    %c0_83 = arith.constant 0 : index
    %c0_84 = arith.constant 0 : index
    %150 = vector.load %arg18[%c0_83, %c0_84] : memref<16x32xf32, #tpu.memory_space<vmem>>, vector<16x32xf32>
    tpu.vector_store %arg18[%c0_83, %c0_84], %149 {strides = array<i32>} : memref<16x32xf32, #tpu.memory_space<vmem>>, vector<16x32xf32>,
    return
  }
}

</mosaic_0001>

<llo_original>
// kernel: tpu_custom_call.1
$region0: #{tpu_custom_call.1}
  #allocation0 [shape = 'u32[]', space=smem, size = 0x4, offset = 0x4, fixed_abs, tag = 'smem constant byte address 0x4 - core index']
  #allocation1 [shape = 'u32[144,128]{1,0:T(1,128)}', space=vmem, size = 0x12000, scoped, tag = 'internal scratch']
  %s0 = inlined_call_operand.vmem [shape: f32[16,32], index: 0, kind: input, shape index: {}]
  %s1 = inlined_call_operand.vmem [shape: f32[2,8,8], index: 1, kind: input, shape index: {}]
  %s2 = inlined_call_operand.vmem [shape: f32[4,32,8], index: 2, kind: input, shape index: {}]
  %s3 = inlined_call_operand.vmem [shape: f32[4,1,8], index: 3, kind: input, shape index: {}]
  %s4 = inlined_call_operand.vmem [shape: f32[4,32,8], index: 4, kind: input, shape index: {}]
  %s5 = inlined_call_operand.vmem [shape: f32[4,1,8], index: 5, kind: input, shape index: {}]
  %s6 = inlined_call_operand.vmem [shape: f32[4,32,8], index: 6, kind: input, shape index: {}]
  %s7 = inlined_call_operand.vmem [shape: f32[4,1,8], index: 7, kind: input, shape index: {}]
  %s8 = inlined_call_operand.vmem [shape: f32[4,8,32], index: 8, kind: input, shape index: {}]
  %s9 = inlined_call_operand.vmem [shape: f32[1,32], index: 9, kind: input, shape index: {}]
  %s10 = inlined_call_operand.vmem [shape: f32[32,64], index: 10, kind: input, shape index: {}]
  %s11 = inlined_call_operand.vmem [shape: f32[1,64], index: 11, kind: input, shape index: {}]
  %s12 = inlined_call_operand.vmem [shape: f32[64,32], index: 12, kind: input, shape index: {}]
  %s13 = inlined_call_operand.vmem [shape: f32[1,32], index: 13, kind: input, shape index: {}]
  %s14 = inlined_call_operand.vmem [shape: f32[1,32], index: 14, kind: input, shape index: {}]
  %s15 = inlined_call_operand.vmem [shape: f32[1,32], index: 15, kind: input, shape index: {}]
  %s16 = inlined_call_operand.vmem [shape: f32[1,32], index: 16, kind: input, shape index: {}]
  %s17 = inlined_call_operand.vmem [shape: f32[1,32], index: 17, kind: input, shape index: {}]
  %s18 = inlined_call_operand.hbm [shape: f32[16,32], index: 18, kind: output, shape index: {}]
  %s19 = sld [smem:[#allocation0]]
  $region82: #{tpu_custom_call.1} parent=0
    _
  %s21 = ssub.s32 1, %s19
  %s22 = scalar_select 0, %s21, %s19
  $region1: #{tpu_custom_call.1} parent=0
    #allocation2 [shape = 'u8[8192]{0}', space=vmem, size = 0x2000, scoped, tag = 'output window, operand 0, single buffered']
    #allocation3 [shape = 's32[1]{0}', space=sflag, size = 0x4, scoped, tag = 'scoped memory for tpu_custom_call.1']
    %23 = vsyncpa [#allocation3], 0
    // Predicated region
    $region2: #{tpu_custom_call.1} parent=1 // pred_check
      _
    $region3: #{tpu_custom_call.1} parent=1 // pred_check_branch
      %25 = sbr.rel (0) target = $region5
    $region4: #{tpu_custom_call.1} parent=1 // pred_region
      _
    $region5: #{tpu_custom_call.1} parent=1 // pred_fallthru
      _
    // Predicated region
    $region6: #{tpu_custom_call.1} parent=1 // pred_check
      _
    $region7: #{tpu_custom_call.1} parent=1 // pred_check_branch
      %27 = sbr.rel (0) target = $region9
    $region8: #{tpu_custom_call.1} parent=1 // pred_region
      _
    $region9: #{tpu_custom_call.1} parent=1 // pred_fallthru
      _
    // Predicated region
    $region10: #{tpu_custom_call.1} parent=1 // pred_check
      _
    $region11: #{tpu_custom_call.1} parent=1 // pred_check_branch
      %29 = sbr.rel (0) target = $region13
    $region12: #{tpu_custom_call.1} parent=1 // pred_region
      _
    $region13: #{tpu_custom_call.1} parent=1 // pred_fallthru
      _
    // Predicated region
    $region14: #{tpu_custom_call.1} parent=1 // pred_check
      _
    $region15: #{tpu_custom_call.1} parent=1 // pred_check_branch
      %31 = sbr.rel (0) target = $region17
    $region16: #{tpu_custom_call.1} parent=1 // pred_region
      _
    $region17: #{tpu_custom_call.1} parent=1 // pred_fallthru
      _
    // Predicated region
    $region18: #{tpu_custom_call.1} parent=1 // pred_check
      _
    $region19: #{tpu_custom_call.1} parent=1 // pred_check_branch
      %33 = sbr.rel (0) target = $region21
    $region20: #{tpu_custom_call.1} parent=1 // pred_region
      _
    $region21: #{tpu_custom_call.1} parent=1 // pred_fallthru
      _
    // Predicated region
    $region22: #{tpu_custom_call.1} parent=1 // pred_check
      _
    $region23: #{tpu_custom_call.1} parent=1 // pred_check_branch
      %35 = sbr.rel (0) target = $region25
    $region24: #{tpu_custom_call.1} parent=1 // pred_region
      _
    $region25: #{tpu_custom_call.1} parent=1 // pred_fallthru
      _
    // Predicated region
    $region26: #{tpu_custom_call.1} parent=1 // pred_check
      _
    $region27: #{tpu_custom_call.1} parent=1 // pred_check_branch
      %37 = sbr.rel (0) target = $region29
    $region28: #{tpu_custom_call.1} parent=1 // pred_region
      _
    $region29: #{tpu_custom_call.1} parent=1 // pred_fallthru
      _
    // Predicated region
    $region30: #{tpu_custom_call.1} parent=1 // pred_check
      _
    $region31: #{tpu_custom_call.1} parent=1 // pred_check_branch
      %39 = sbr.rel (0) target = $region33
    $region32: #{tpu_custom_call.1} parent=1 // pred_region
      _
    $region33: #{tpu_custom_call.1} parent=1 // pred_fallthru
      _
    // Predicated region
    $region34: #{tpu_custom_call.1} parent=1 // pred_check
      _
    $region35: #{tpu_custom_call.1} parent=1 // pred_check_branch
      %41 = sbr.rel (0) target = $region37
    $region36: #{tpu_custom_call.1} parent=1 // pred_region
      _
    $region37: #{tpu_custom_call.1} parent=1 // pred_fallthru
      _
    // Predicated region
    $region38: #{tpu_custom_call.1} parent=1 // pred_check
      _
    $region39: #{tpu_custom_call.1} parent=1 // pred_check_branch
      %43 = sbr.rel (0) target = $region41
    $region40: #{tpu_custom_call.1} parent=1 // pred_region
      _
    $region41: #{tpu_custom_call.1} parent=1 // pred_fallthru
      _
    // Predicated region
    $region42: #{tpu_custom_call.1} parent=1 // pred_check
      _
    $region43: #{tpu_custom_call.1} parent=1 // pred_check_branch
      %45 = sbr.rel (0) target = $region45
    $region44: #{tpu_custom_call.1} parent=1 // pred_region
      _
    $region45: #{tpu_custom_call.1} parent=1 // pred_fallthru
      _
    // Predicated region
    $region46: #{tpu_custom_call.1} parent=1 // pred_check
      _
    $region47: #{tpu_custom_call.1} parent=1 // pred_check_branch
      %47 = sbr.rel (0) target = $region49
    $region48: #{tpu_custom_call.1} parent=1 // pred_region
      _
    $region49: #{tpu_custom_call.1} parent=1 // pred_fallthru
      _
    // Predicated region
    $region50: #{tpu_custom_call.1} parent=1 // pred_check
      _
    $region51: #{tpu_custom_call.1} parent=1 // pred_check_branch
      %49 = sbr.rel (0) target = $region53
    $region52: #{tpu_custom_call.1} parent=1 // pred_region
      _
    $region53: #{tpu_custom_call.1} parent=1 // pred_fallthru
      _
    // Predicated region
    $region54: #{tpu_custom_call.1} parent=1 // pred_check
      _
    $region55: #{tpu_custom_call.1} parent=1 // pred_check_branch
      %51 = sbr.rel (0) target = $region57
    $region56: #{tpu_custom_call.1} parent=1 // pred_region
      _
    $region57: #{tpu_custom_call.1} parent=1 // pred_fallthru
      _
    // Predicated region
    $region58: #{tpu_custom_call.1} parent=1 // pred_check
      _
    $region59: #{tpu_custom_call.1} parent=1 // pred_check_branch
      %53 = sbr.rel (0) target = $region61
    $region60: #{tpu_custom_call.1} parent=1 // pred_region
      _
    $region61: #{tpu_custom_call.1} parent=1 // pred_fallthru
      _
    // Predicated region
    $region62: #{tpu_custom_call.1} parent=1 // pred_check
      _
    $region63: #{tpu_custom_call.1} parent=1 // pred_check_branch
      %55 = sbr.rel (0) target = $region65
    $region64: #{tpu_custom_call.1} parent=1 // pred_region
      _
    $region65: #{tpu_custom_call.1} parent=1 // pred_fallthru
      _
    // Predicated region
    $region66: #{tpu_custom_call.1} parent=1 // pred_check
      _
    $region67: #{tpu_custom_call.1} parent=1 // pred_check_branch
      %57 = sbr.rel (0) target = $region69
    $region68: #{tpu_custom_call.1} parent=1 // pred_region
      _
    $region69: #{tpu_custom_call.1} parent=1 // pred_fallthru
      _
    // Predicated region
    $region70: #{tpu_custom_call.1} parent=1 // pred_check
      _
    $region71: #{tpu_custom_call.1} parent=1 // pred_check_branch
      %59 = sbr.rel (0) target = $region73
    $region72: #{tpu_custom_call.1} parent=1 // pred_region
      _
    $region73: #{tpu_custom_call.1} parent=1 // pred_fallthru
      _
    %v60 = vld [vmem:[%s0] sm:$0xff]
    %v61 = vld [vmem:[%s0 + $0x8] sm:$0xff]
    %v62 = vld [vmem:[%s2] sm:$0xff]
    %v63 = vld [vmem:[%s2 + $0x8] sm:$0xff]
    %v64 = vld [vmem:[%s2 + $0x10] sm:$0xff]
    %v65 = vld [vmem:[%s2 + $0x18] sm:$0xff]
    %v66 = vld [vmem:[%s2 + $0x20] sm:$0xff]
    %v67 = vld [vmem:[%s2 + $0x28] sm:$0xff]
    %v68 = vld [vmem:[%s2 + $0x30] sm:$0xff]
    %v69 = vld [vmem:[%s2 + $0x38] sm:$0xff]
    %v70 = vld [vmem:[%s2 + $0x40] sm:$0xff]
    %v71 = vld [vmem:[%s2 + $0x48] sm:$0xff]
    %v72 = vld [vmem:[%s2 + $0x50] sm:$0xff]
    %v73 = vld [vmem:[%s2 + $0x58] sm:$0xff]
    %v74 = vld [vmem:[%s2 + $0x60] sm:$0xff]
    %v75 = vld [vmem:[%s2 + $0x68] sm:$0xff]
    %v76 = vld [vmem:[%s2 + $0x70] sm:$0xff]
    %v77 = vld [vmem:[%s2 + $0x78] sm:$0xff]
    %v78 = vld [vmem:[%s4] sm:$0xff]
    %v79 = vld [vmem:[%s4 + $0x8] sm:$0xff]
    %v80 = vld [vmem:[%s4 + $0x10] sm:$0xff]
    %v81 = vld [vmem:[%s4 + $0x18] sm:$0xff]
    %v82 = vld [vmem:[%s4 + $0x20] sm:$0xff]
    %v83 = vld [vmem:[%s4 + $0x28] sm:$0xff]
    %v84 = vld [vmem:[%s4 + $0x30] sm:$0xff]
    %v85 = vld [vmem:[%s4 + $0x38] sm:$0xff]
    %v86 = vld [vmem:[%s4 + $0x40] sm:$0xff]
    %v87 = vld [vmem:[%s4 + $0x48] sm:$0xff]
    %v88 = vld [vmem:[%s4 + $0x50] sm:$0xff]
    %v89 = vld [vmem:[%s4 + $0x58] sm:$0xff]
    %v90 = vld [vmem:[%s4 + $0x60] sm:$0xff]
    %v91 = vld [vmem:[%s4 + $0x68] sm:$0xff]
    %v92 = vld [vmem:[%s4 + $0x70] sm:$0xff]
    %v93 = vld [vmem:[%s4 + $0x78] sm:$0xff]
    %v94 = vld [vmem:[%s6] sm:$0xff]
    %v95 = vld [vmem:[%s6 + $0x8] sm:$0xff]
    %v96 = vld [vmem:[%s6 + $0x10] sm:$0xff]
    %v97 = vld [vmem:[%s6 + $0x18] sm:$0xff]
    %v98 = vld [vmem:[%s6 + $0x20] sm:$0xff]
    %v99 = vld [vmem:[%s6 + $0x28] sm:$0xff]
    %v100 = vld [vmem:[%s6 + $0x30] sm:$0xff]
    %v101 = vld [vmem:[%s6 + $0x38] sm:$0xff]
    %v102 = vld [vmem:[%s6 + $0x40] sm:$0xff]
    %v103 = vld [vmem:[%s6 + $0x48] sm:$0xff]
    %v104 = vld [vmem:[%s6 + $0x50] sm:$0xff]
    %v105 = vld [vmem:[%s6 + $0x58] sm:$0xff]
    %v106 = vld [vmem:[%s6 + $0x60] sm:$0xff]
    %v107 = vld [vmem:[%s6 + $0x68] sm:$0xff]
    %v108 = vld [vmem:[%s6 + $0x70] sm:$0xff]
    %v109 = vld [vmem:[%s6 + $0x78] sm:$0xff]
    %v110 = vld [vmem:[%s8] sm:$0xff]
    %v111 = vld [vmem:[%s8 + $0x8] sm:$0xff]
    %v112 = vld [vmem:[%s8 + $0x10] sm:$0xff]
    %v113 = vld [vmem:[%s8 + $0x18] sm:$0xff]
    %v114 = vld [vmem:[%s3] sm:$0x1]
    %v115 = vld [vmem:[%s3 + $0x1] sm:$0x1]
    %v116 = vld [vmem:[%s3 + $0x2] sm:$0x1]
    %v117 = vld [vmem:[%s3 + $0x3] sm:$0x1]
    %v118 = vld [vmem:[%s5] sm:$0x1]
    %v119 = vld [vmem:[%s5 + $0x1] sm:$0x1]
    %v120 = vld [vmem:[%s5 + $0x2] sm:$0x1]
    %v121 = vld [vmem:[%s5 + $0x3] sm:$0x1]
    %v122 = vld [vmem:[%s7] sm:$0x1]
    %v123 = vld [vmem:[%s7 + $0x1] sm:$0x1]
    %v124 = vld [vmem:[%s7 + $0x2] sm:$0x1]
    %v125 = vld [vmem:[%s7 + $0x3] sm:$0x1]
    %v126 = vld [vmem:[%s9] sm:$0x1]
    %v131 = vlaneseq
    %v132 = vshrl.u32 %v131, 7
    %v133 = vsub.s32 0, %v132
    %v134 = vrot.slane %v114, %v133
    %v135 = vlaneseq
    %v136 = vshrl.u32 %v135, 7
    %v137 = vsub.s32 0, %v136
    %v138 = vrot.slane %v115, %v137
    %v139 = vlaneseq
    %v140 = vshrl.u32 %v139, 7
    %v141 = vsub.s32 0, %v140
    %v142 = vrot.slane %v116, %v141
    %v143 = vlaneseq
    %v144 = vshrl.u32 %v143, 7
    %v145 = vsub.s32 0, %v144
    %v146 = vrot.slane %v117, %v145
    %vm151 = vcmask 261120
    %v153 = vsel %vm151, %v60, 0
    %155 = vmatprep.subr.mxu0 0.0
    %156 = vmatpush1.msra.mxu0 %v62
    %157 = vmatprep.subr.mxu0 0.0
    %158 = vmatpush1.msra.mxu0 %v63
    %159 = vmatprep.subr.mxu0 0.0
    %160 = vmatpush1.msra.mxu0 %v64
    %161 = vmatprep.subr.mxu0 0.0
    %162 = vmatpush1.msra.mxu0 %v65
    %163 = vmatprep.subr.mxu0 0.0
    %164 = vmatpush1.msra.mxu0 0.0
    %165 = vmatprep.subr.mxu0 0.0
    %166 = vmatpush1.msra.mxu0 0.0
    %167 = vmatprep.subr.mxu0 0.0
    %168 = vmatpush1.msra.mxu0 0.0
    %169 = vmatprep.subr.mxu0 0.0
    %170 = vmatpush1.msra.mxu0 0.0
    %171 = vmatprep.subr.mxu0 0.0
    %172 = vmatpush1.msra.mxu0 0.0
    %173 = vmatprep.subr.mxu0 0.0
    %174 = vmatpush1.msra.mxu0 0.0
    %175 = vmatprep.subr.mxu0 0.0
    %176 = vmatpush1.msra.mxu0 0.0
    %177 = vmatprep.subr.mxu0 0.0
    %178 = vmatpush1.msra.mxu0 0.0
    %179 = vmatprep.subr.mxu0 0.0
    %180 = vmatpush1.msra.mxu0 0.0
    %181 = vmatprep.subr.mxu0 0.0
    %182 = vmatpush1.msra.mxu0 0.0
    %183 = vmatprep.subr.mxu0 0.0
    %184 = vmatpush1.msra.mxu0 0.0
    %185 = vmatprep.subr.mxu0 0.0
    %186 = vmatpush1.msra.mxu0 0.0
    %187 = vmatprep.subr.mxu0 0.0
    %188 = vmatpush1.msra.mxu0 0.0
    %189 = vmatprep.subr.mxu0 0.0
    %190 = vmatpush1.msra.mxu0 0.0
    %191 = vmatprep.subr.mxu0 0.0
    %192 = vmatpush1.msra.mxu0 0.0
    %193 = vmatprep.subr.mxu0 0.0
    %194 = vmatpush1.msra.mxu0 0.0
    %195 = vmatprep.subr.mxu0 0.0
    %196 = vmatpush1.msra.mxu0 0.0
    %197 = vmatprep.subr.mxu0 0.0
    %198 = vmatpush1.msra.mxu0 0.0
    %199 = vmatprep.subr.mxu0 0.0
    %200 = vmatpush1.msra.mxu0 0.0
    %201 = vmatprep.subr.mxu0 0.0
    %202 = vmatpush1.msra.mxu0 0.0
    %203 = vmatprep.subr.mxu0 0.0
    %204 = vmatpush1.msra.mxu0 0.0
    %205 = vmatprep.subr.mxu0 0.0
    %206 = vmatpush1.msra.mxu0 0.0
    %207 = vmatprep.subr.mxu0 0.0
    %208 = vmatpush1.msra.mxu0 0.0
    %209 = vmatprep.subr.mxu0 0.0
    %210 = vmatpush1.msra.mxu0 0.0
    %211 = vmatprep.subr.mxu0 0.0
    %212 = vmatpush1.msra.mxu0 0.0
    %213 = vmatprep.subr.mxu0 0.0
    %214 = vmatpush1.msra.mxu0 0.0
    %215 = vmatprep.subr.mxu0 0.0
    %216 = vmatpush1.msra.mxu0 0.0
    %217 = vmatprep.subr.mxu0 0.0
    %218 = vmatpush1.msra.mxu0 0.0
    %219 = vmatprep.mubr.f32.mxu0 0.0
    %220 = vmatmul.mubr.f32.gmra.mrb[0].mxu0 %v153
    %v221 = vpop.f32.mrb[0].mxu0
    %v222 = vadd.f32 %v134, %v221
    %v223 = vpop.f32.mrb[0].mxu0
    %224 = vdwg.mxu0
    %225 = vmatprep.subr.mxu0 0.0
    %226 = vmatpush1.msra.mxu0 %v66
    %227 = vmatprep.subr.mxu0 0.0
    %228 = vmatpush1.msra.mxu0 %v67
    %229 = vmatprep.subr.mxu0 0.0
    %230 = vmatpush1.msra.mxu0 %v68
    %231 = vmatprep.subr.mxu0 0.0
    %232 = vmatpush1.msra.mxu0 %v69
    %233 = vmatprep.subr.mxu0 0.0
    %234 = vmatpush1.msra.mxu0 0.0
    %235 = vmatprep.subr.mxu0 0.0
    %236 = vmatpush1.msra.mxu0 0.0
    %237 = vmatprep.subr.mxu0 0.0
    %238 = vmatpush1.msra.mxu0 0.0
    %239 = vmatprep.subr.mxu0 0.0
    %240 = vmatpush1.msra.mxu0 0.0
    %241 = vmatprep.subr.mxu0 0.0
    %242 = vmatpush1.msra.mxu0 0.0
    %243 = vmatprep.subr.mxu0 0.0
    %244 = vmatpush1.msra.mxu0 0.0
    %245 = vmatprep.subr.mxu0 0.0
    %246 = vmatpush1.msra.mxu0 0.0
    %247 = vmatprep.subr.mxu0 0.0
    %248 = vmatpush1.msra.mxu0 0.0
    %249 = vmatprep.subr.mxu0 0.0
    %250 = vmatpush1.msra.mxu0 0.0
    %251 = vmatprep.subr.mxu0 0.0
    %252 = vmatpush1.msra.mxu0 0.0
    %253 = vmatprep.subr.mxu0 0.0
    %254 = vmatpush1.msra.mxu0 0.0
    %255 = vmatprep.subr.mxu0 0.0
    %256 = vmatpush1.msra.mxu0 0.0
    %257 = vmatprep.subr.mxu0 0.0
    %258 = vmatpush1.msra.mxu0 0.0
    %259 = vmatprep.subr.mxu0 0.0
    %260 = vmatpush1.msra.mxu0 0.0
    %261 = vmatprep.subr.mxu0 0.0
    %262 = vmatpush1.msra.mxu0 0.0
    %263 = vmatprep.subr.mxu0 0.0
    %264 = vmatpush1.msra.mxu0 0.0
    %265 = vmatprep.subr.mxu0 0.0
    %266 = vmatpush1.msra.mxu0 0.0
    %267 = vmatprep.subr.mxu0 0.0
    %268 = vmatpush1.msra.mxu0 0.0
    %269 = vmatprep.subr.mxu0 0.0
    %270 = vmatpush1.msra.mxu0 0.0
    %271 = vmatprep.subr.mxu0 0.0
    %272 = vmatpush1.msra.mxu0 0.0
    %273 = vmatprep.subr.mxu0 0.0
    %274 = vmatpush1.msra.mxu0 0.0
    %275 = vmatprep.subr.mxu0 0.0
    %276 = vmatpush1.msra.mxu0 0.0
    %277 = vmatprep.subr.mxu0 0.0
    %278 = vmatpush1.msra.mxu0 0.0
    %279 = vmatprep.subr.mxu0 0.0
    %280 = vmatpush1.msra.mxu0 0.0
    %281 = vmatprep.subr.mxu0 0.0
    %282 = vmatpush1.msra.mxu0 0.0
    %283 = vmatprep.subr.mxu0 0.0
    %284 = vmatpush1.msra.mxu0 0.0
    %285 = vmatprep.subr.mxu0 0.0
    %286 = vmatpush1.msra.mxu0 0.0
    %287 = vmatprep.subr.mxu0 0.0
    %288 = vmatpush1.msra.mxu0 0.0
    %289 = vmatprep.mubr.f32.mxu0 0.0
    %290 = vmatmul.mubr.f32.gmra.mrb[0].mxu0 %v153
    %v291 = vpop.f32.mrb[0].mxu0
    %v292 = vadd.f32 %v138, %v291
    %v293 = vpop.f32.mrb[0].mxu0
    %294 = vdwg.mxu0
    %295 = vmatprep.subr.mxu0 0.0
    %296 = vmatpush1.msra.mxu0 %v70
    %297 = vmatprep.subr.mxu0 0.0
    %298 = vmatpush1.msra.mxu0 %v71
    %299 = vmatprep.subr.mxu0 0.0
    %300 = vmatpush1.msra.mxu0 %v72
    %301 = vmatprep.subr.mxu0 0.0
    %302 = vmatpush1.msra.mxu0 %v73
    %303 = vmatprep.subr.mxu0 0.0
    %304 = vmatpush1.msra.mxu0 0.0
    %305 = vmatprep.subr.mxu0 0.0
    %306 = vmatpush1.msra.mxu0 0.0
    %307 = vmatprep.subr.mxu0 0.0
    %308 = vmatpush1.msra.mxu0 0.0
    %309 = vmatprep.subr.mxu0 0.0
    %310 = vmatpush1.msra.mxu0 0.0
    %311 = vmatprep.subr.mxu0 0.0
    %312 = vmatpush1.msra.mxu0 0.0
    %313 = vmatprep.subr.mxu0 0.0
    %314 = vmatpush1.msra.mxu0 0.0
    %315 = vmatprep.subr.mxu0 0.0
    %316 = vmatpush1.msra.mxu0 0.0
    %317 = vmatprep.subr.mxu0 0.0
    %318 = vmatpush1.msra.mxu0 0.0
    %319 = vmatprep.subr.mxu0 0.0
    %320 = vmatpush1.msra.mxu0 0.0
    %321 = vmatprep.subr.mxu0 0.0
    %322 = vmatpush1.msra.mxu0 0.0
    %323 = vmatprep.subr.mxu0 0.0
    %324 = vmatpush1.msra.mxu0 0.0
    %325 = vmatprep.subr.mxu0 0.0
    %326 = vmatpush1.msra.mxu0 0.0
    %327 = vmatprep.subr.mxu0 0.0
    %328 = vmatpush1.msra.mxu0 0.0
    %329 = vmatprep.subr.mxu0 0.0
    %330 = vmatpush1.msra.mxu0 0.0
    %331 = vmatprep.subr.mxu0 0.0
    %332 = vmatpush1.msra.mxu0 0.0
    %333 = vmatprep.subr.mxu0 0.0
    %334 = vmatpush1.msra.mxu0 0.0
    %335 = vmatprep.subr.mxu0 0.0
    %336 = vmatpush1.msra.mxu0 0.0
    %337 = vmatprep.subr.mxu0 0.0
    %338 = vmatpush1.msra.mxu0 0.0
    %339 = vmatprep.subr.mxu0 0.0
    %340 = vmatpush1.msra.mxu0 0.0
    %341 = vmatprep.subr.mxu0 0.0
    %342 = vmatpush1.msra.mxu0 0.0
    %343 = vmatprep.subr.mxu0 0.0
    %344 = vmatpush1.msra.mxu0 0.0
    %345 = vmatprep.subr.mxu0 0.0
    %346 = vmatpush1.msra.mxu0 0.0
    %347 = vmatprep.subr.mxu0 0.0
    %348 = vmatpush1.msra.mxu0 0.0
    %349 = vmatprep.subr.mxu0 0.0
    %350 = vmatpush1.msra.mxu0 0.0
    %351 = vmatprep.subr.mxu0 0.0
    %352 = vmatpush1.msra.mxu0 0.0
    %353 = vmatprep.subr.mxu0 0.0
    %354 = vmatpush1.msra.mxu0 0.0
    %355 = vmatprep.subr.mxu0 0.0
    %356 = vmatpush1.msra.mxu0 0.0
    %357 = vmatprep.subr.mxu0 0.0
    %358 = vmatpush1.msra.mxu0 0.0
    %359 = vmatprep.mubr.f32.mxu0 0.0
    %360 = vmatmul.mubr.f32.gmra.mrb[0].mxu0 %v153
    %v361 = vpop.f32.mrb[0].mxu0
    %v362 = vadd.f32 %v142, %v361
    %v363 = vpop.f32.mrb[0].mxu0
    %364 = vdwg.mxu0
    %365 = vmatprep.subr.mxu0 0.0
    %366 = vmatpush1.msra.mxu0 %v74
    %367 = vmatprep.subr.mxu0 0.0
    %368 = vmatpush1.msra.mxu0 %v75
    %369 = vmatprep.subr.mxu0 0.0
    %370 = vmatpush1.msra.mxu0 %v76
    %371 = vmatprep.subr.mxu0 0.0
    %372 = vmatpush1.msra.mxu0 %v77
    %373 = vmatprep.subr.mxu0 0.0
    %374 = vmatpush1.msra.mxu0 0.0
    %375 = vmatprep.subr.mxu0 0.0
    %376 = vmatpush1.msra.mxu0 0.0
    %377 = vmatprep.subr.mxu0 0.0
    %378 = vmatpush1.msra.mxu0 0.0
    %379 = vmatprep.subr.mxu0 0.0
    %380 = vmatpush1.msra.mxu0 0.0
    %381 = vmatprep.subr.mxu0 0.0
    %382 = vmatpush1.msra.mxu0 0.0
    %383 = vmatprep.subr.mxu0 0.0
    %384 = vmatpush1.msra.mxu0 0.0
    %385 = vmatprep.subr.mxu0 0.0
    %386 = vmatpush1.msra.mxu0 0.0
    %387 = vmatprep.subr.mxu0 0.0
    %388 = vmatpush1.msra.mxu0 0.0
    %389 = vmatprep.subr.mxu0 0.0
    %390 = vmatpush1.msra.mxu0 0.0
    %391 = vmatprep.subr.mxu0 0.0
    %392 = vmatpush1.msra.mxu0 0.0
    %393 = vmatprep.subr.mxu0 0.0
    %394 = vmatpush1.msra.mxu0 0.0
    %395 = vmatprep.subr.mxu0 0.0
    %396 = vmatpush1.msra.mxu0 0.0
    %397 = vmatprep.subr.mxu0 0.0
    %398 = vmatpush1.msra.mxu0 0.0
    %399 = vmatprep.subr.mxu0 0.0
    %400 = vmatpush1.msra.mxu0 0.0
    %401 = vmatprep.subr.mxu0 0.0
    %402 = vmatpush1.msra.mxu0 0.0
    %403 = vmatprep.subr.mxu0 0.0
    %404 = vmatpush1.msra.mxu0 0.0
    %405 = vmatprep.subr.mxu0 0.0
    %406 = vmatpush1.msra.mxu0 0.0
    %407 = vmatprep.subr.mxu0 0.0
    %408 = vmatpush1.msra.mxu0 0.0
    %409 = vmatprep.subr.mxu0 0.0
    %410 = vmatpush1.msra.mxu0 0.0
    %411 = vmatprep.subr.mxu0 0.0
    %412 = vmatpush1.msra.mxu0 0.0
    %413 = vmatprep.subr.mxu0 0.0
    %414 = vmatpush1.msra.mxu0 0.0
    %415 = vmatprep.subr.mxu0 0.0
    %416 = vmatpush1.msra.mxu0 0.0
    %417 = vmatprep.subr.mxu0 0.0
    %418 = vmatpush1.msra.mxu0 0.0
    %419 = vmatprep.subr.mxu0 0.0
    %420 = vmatpush1.msra.mxu0 0.0
    %421 = vmatprep.subr.mxu0 0.0
    %422 = vmatpush1.msra.mxu0 0.0
    %423 = vmatprep.subr.mxu0 0.0
    %424 = vmatpush1.msra.mxu0 0.0
    %425 = vmatprep.subr.mxu0 0.0
    %426 = vmatpush1.msra.mxu0 0.0
    %427 = vmatprep.subr.mxu0 0.0
    %428 = vmatpush1.msra.mxu0 0.0
    %429 = vmatprep.mubr.f32.mxu0 0.0
    %430 = vmatmul.mubr.f32.gmra.mrb[0].mxu0 %v153
    %v431 = vpop.f32.mrb[0].mxu0
    %v432 = vadd.f32 %v146, %v431
    %v433 = vpop.f32.mrb[0].mxu0
    %434 = vdwg.mxu0
    %v435 = vmul.f32 %v222, 0.25
    %v436 = vmul.f32 %v292, 0.25
    %v437 = vmul.f32 %v362, 0.25
    %v438 = vmul.f32 %v432, 0.25
    %v443 = vlaneseq
    %v444 = vshrl.u32 %v443, 7
    %v445 = vsub.s32 0, %v444
    %v446 = vrot.slane %v118, %v445
    %v447 = vlaneseq
    %v448 = vshrl.u32 %v447, 7
    %v449 = vsub.s32 0, %v448
    %v450 = vrot.slane %v119, %v449
    %v451 = vlaneseq
    %v452 = vshrl.u32 %v451, 7
    %v453 = vsub.s32 0, %v452
    %v454 = vrot.slane %v120, %v453
    %v455 = vlaneseq
    %v456 = vshrl.u32 %v455, 7
    %v457 = vsub.s32 0, %v456
    %v458 = vrot.slane %v121, %v457
    %463 = vmatprep.subr.mxu0 0.0
    %464 = vmatpush1.msra.mxu0 %v78
    %465 = vmatprep.subr.mxu0 0.0
    %466 = vmatpush1.msra.mxu0 %v79
    %467 = vmatprep.subr.mxu0 0.0
    %468 = vmatpush1.msra.mxu0 %v80
    %469 = vmatprep.subr.mxu0 0.0
    %470 = vmatpush1.msra.mxu0 %v81
    %471 = vmatprep.subr.mxu0 0.0
    %472 = vmatpush1.msra.mxu0 0.0
    %473 = vmatprep.subr.mxu0 0.0
    %474 = vmatpush1.msra.mxu0 0.0
    %475 = vmatprep.subr.mxu0 0.0
    %476 = vmatpush1.msra.mxu0 0.0
    %477 = vmatprep.subr.mxu0 0.0
    %478 = vmatpush1.msra.mxu0 0.0
    %479 = vmatprep.subr.mxu0 0.0
    %480 = vmatpush1.msra.mxu0 0.0
    %481 = vmatprep.subr.mxu0 0.0
    %482 = vmatpush1.msra.mxu0 0.0
    %483 = vmatprep.subr.mxu0 0.0
    %484 = vmatpush1.msra.mxu0 0.0
    %485 = vmatprep.subr.mxu0 0.0
    %486 = vmatpush1.msra.mxu0 0.0
    %487 = vmatprep.subr.mxu0 0.0
    %488 = vmatpush1.msra.mxu0 0.0
    %489 = vmatprep.subr.mxu0 0.0
    %490 = vmatpush1.msra.mxu0 0.0
    %491 = vmatprep.subr.mxu0 0.0
    %492 = vmatpush1.msra.mxu0 0.0
    %493 = vmatprep.subr.mxu0 0.0
    %494 = vmatpush1.msra.mxu0 0.0
    %495 = vmatprep.subr.mxu0 0.0
    %496 = vmatpush1.msra.mxu0 0.0
    %497 = vmatprep.subr.mxu0 0.0
    %498 = vmatpush1.msra.mxu0 0.0
    %499 = vmatprep.subr.mxu0 0.0
    %500 = vmatpush1.msra.mxu0 0.0
    %501 = vmatprep.subr.mxu0 0.0
    %502 = vmatpush1.msra.mxu0 0.0
    %503 = vmatprep.subr.mxu0 0.0
    %504 = vmatpush1.msra.mxu0 0.0
    %505 = vmatprep.subr.mxu0 0.0
    %506 = vmatpush1.msra.mxu0 0.0
    %507 = vmatprep.subr.mxu0 0.0
    %508 = vmatpush1.msra.mxu0 0.0
    %509 = vmatprep.subr.mxu0 0.0
    %510 = vmatpush1.msra.mxu0 0.0
    %511 = vmatprep.subr.mxu0 0.0
    %512 = vmatpush1.msra.mxu0 0.0
    %513 = vmatprep.subr.mxu0 0.0
    %514 = vmatpush1.msra.mxu0 0.0
    %515 = vmatprep.subr.mxu0 0.0
    %516 = vmatpush1.msra.mxu0 0.0
    %517 = vmatprep.subr.mxu0 0.0
    %518 = vmatpush1.msra.mxu0 0.0
    %519 = vmatprep.subr.mxu0 0.0
    %520 = vmatpush1.msra.mxu0 0.0
    %521 = vmatprep.subr.mxu0 0.0
    %522 = vmatpush1.msra.mxu0 0.0
    %523 = vmatprep.subr.mxu0 0.0
    %524 = vmatpush1.msra.mxu0 0.0
    %525 = vmatprep.subr.mxu0 0.0
    %526 = vmatpush1.msra.mxu0 0.0
    %527 = vmatprep.mubr.f32.mxu0 0.0
    %528 = vmatmul.mubr.f32.gmra.mrb[0].mxu0 %v153
    %v529 = vpop.f32.mrb[0].mxu0
    %v530 = vadd.f32 %v446, %v529
    %v531 = vpop.f32.mrb[0].mxu0
    %532 = vdwg.mxu0
    %533 = vmatprep.subr.mxu0 0.0
    %534 = vmatpush1.msra.mxu0 %v82
    %535 = vmatprep.subr.mxu0 0.0
    %536 = vmatpush1.msra.mxu0 %v83
    %537 = vmatprep.subr.mxu0 0.0
    %538 = vmatpush1.msra.mxu0 %v84
    %539 = vmatprep.subr.mxu0 0.0
    %540 = vmatpush1.msra.mxu0 %v85
    %541 = vmatprep.subr.mxu0 0.0
    %542 = vmatpush1.msra.mxu0 0.0
    %543 = vmatprep.subr.mxu0 0.0
    %544 = vmatpush1.msra.mxu0 0.0
    %545 = vmatprep.subr.mxu0 0.0
    %546 = vmatpush1.msra.mxu0 0.0
    %547 = vmatprep.subr.mxu0 0.0
    %548 = vmatpush1.msra.mxu0 0.0
    %549 = vmatprep.subr.mxu0 0.0
    %550 = vmatpush1.msra.mxu0 0.0
    %551 = vmatprep.subr.mxu0 0.0
    %552 = vmatpush1.msra.mxu0 0.0
    %553 = vmatprep.subr.mxu0 0.0
    %554 = vmatpush1.msra.mxu0 0.0
    %555 = vmatprep.subr.mxu0 0.0
    %556 = vmatpush1.msra.mxu0 0.0
    %557 = vmatprep.subr.mxu0 0.0
    %558 = vmatpush1.msra.mxu0 0.0
    %559 = vmatprep.subr.mxu0 0.0
    %560 = vmatpush1.msra.mxu0 0.0
    %561 = vmatprep.subr.mxu0 0.0
    %562 = vmatpush1.msra.mxu0 0.0
    %563 = vmatprep.subr.mxu0 0.0
    %564 = vmatpush1.msra.mxu0 0.0
    %565 = vmatprep.subr.mxu0 0.0
    %566 = vmatpush1.msra.mxu0 0.0
    %567 = vmatprep.subr.mxu0 0.0
    %568 = vmatpush1.msra.mxu0 0.0
    %569 = vmatprep.subr.mxu0 0.0
    %570 = vmatpush1.msra.mxu0 0.0
    %571 = vmatprep.subr.mxu0 0.0
    %572 = vmatpush1.msra.mxu0 0.0
    %573 = vmatprep.subr.mxu0 0.0
    %574 = vmatpush1.msra.mxu0 0.0
    %575 = vmatprep.subr.mxu0 0.0
    %576 = vmatpush1.msra.mxu0 0.0
    %577 = vmatprep.subr.mxu0 0.0
    %578 = vmatpush1.msra.mxu0 0.0
    %579 = vmatprep.subr.mxu0 0.0
    %580 = vmatpush1.msra.mxu0 0.0
    %581 = vmatprep.subr.mxu0 0.0
    %582 = vmatpush1.msra.mxu0 0.0
    %583 = vmatprep.subr.mxu0 0.0
    %584 = vmatpush1.msra.mxu0 0.0
    %585 = vmatprep.subr.mxu0 0.0
    %586 = vmatpush1.msra.mxu0 0.0
    %587 = vmatprep.subr.mxu0 0.0
    %588 = vmatpush1.msra.mxu0 0.0
    %589 = vmatprep.subr.mxu0 0.0
    %590 = vmatpush1.msra.mxu0 0.0
    %591 = vmatprep.subr.mxu0 0.0
    %592 = vmatpush1.msra.mxu0 0.0
    %593 = vmatprep.subr.mxu0 0.0
    %594 = vmatpush1.msra.mxu0 0.0
    %595 = vmatprep.subr.mxu0 0.0
    %596 = vmatpush1.msra.mxu0 0.0
    %597 = vmatprep.mubr.f32.mxu0 0.0
    %598 = vmatmul.mubr.f32.gmra.mrb[0].mxu0 %v153
    %v599 = vpop.f32.mrb[0].mxu0
    %v600 = vadd.f32 %v450, %v599
    %v601 = vpop.f32.mrb[0].mxu0
    %602 = vdwg.mxu0
    %603 = vmatprep.subr.mxu0 0.0
    %604 = vmatpush1.msra.mxu0 %v86
    %605 = vmatprep.subr.mxu0 0.0
    %606 = vmatpush1.msra.mxu0 %v87
    %607 = vmatprep.subr.mxu0 0.0
    %608 = vmatpush1.msra.mxu0 %v88
    %609 = vmatprep.subr.mxu0 0.0
    %610 = vmatpush1.msra.mxu0 %v89
    %611 = vmatprep.subr.mxu0 0.0
    %612 = vmatpush1.msra.mxu0 0.0
    %613 = vmatprep.subr.mxu0 0.0
    %614 = vmatpush1.msra.mxu0 0.0
    %615 = vmatprep.subr.mxu0 0.0
    %616 = vmatpush1.msra.mxu0 0.0
    %617 = vmatprep.subr.mxu0 0.0
    %618 = vmatpush1.msra.mxu0 0.0
    %619 = vmatprep.subr.mxu0 0.0
    %620 = vmatpush1.msra.mxu0 0.0
    %621 = vmatprep.subr.mxu0 0.0
    %622 = vmatpush1.msra.mxu0 0.0
    %623 = vmatprep.subr.mxu0 0.0
    %624 = vmatpush1.msra.mxu0 0.0
    %625 = vmatprep.subr.mxu0 0.0
    %626 = vmatpush1.msra.mxu0 0.0
    %627 = vmatprep.subr.mxu0 0.0
    %628 = vmatpush1.msra.mxu0 0.0
    %629 = vmatprep.subr.mxu0 0.0
    %630 = vmatpush1.msra.mxu0 0.0
    %631 = vmatprep.subr.mxu0 0.0
    %632 = vmatpush1.msra.mxu0 0.0
    %633 = vmatprep.subr.mxu0 0.0
    %634 = vmatpush1.msra.mxu0 0.0
    %635 = vmatprep.subr.mxu0 0.0
    %636 = vmatpush1.msra.mxu0 0.0
    %637 = vmatprep.subr.mxu0 0.0
    %638 = vmatpush1.msra.mxu0 0.0
    %639 = vmatprep.subr.mxu0 0.0
    %640 = vmatpush1.msra.mxu0 0.0
    %641 = vmatprep.subr.mxu0 0.0
    %642 = vmatpush1.msra.mxu0 0.0
    %643 = vmatprep.subr.mxu0 0.0
    %644 = vmatpush1.msra.mxu0 0.0
    %645 = vmatprep.subr.mxu0 0.0
    %646 = vmatpush1.msra.mxu0 0.0
    %647 = vmatprep.subr.mxu0 0.0
    %648 = vmatpush1.msra.mxu0 0.0
    %649 = vmatprep.subr.mxu0 0.0
    %650 = vmatpush1.msra.mxu0 0.0
    %651 = vmatprep.subr.mxu0 0.0
    %652 = vmatpush1.msra.mxu0 0.0
    %653 = vmatprep.subr.mxu0 0.0
    %654 = vmatpush1.msra.mxu0 0.0
    %655 = vmatprep.subr.mxu0 0.0
    %656 = vmatpush1.msra.mxu0 0.0
    %657 = vmatprep.subr.mxu0 0.0
    %658 = vmatpush1.msra.mxu0 0.0
    %659 = vmatprep.subr.mxu0 0.0
    %660 = vmatpush1.msra.mxu0 0.0
    %661 = vmatprep.subr.mxu0 0.0
    %662 = vmatpush1.msra.mxu0 0.0
    %663 = vmatprep.subr.mxu0 0.0
    %664 = vmatpush1.msra.mxu0 0.0
    %665 = vmatprep.subr.mxu0 0.0
    %666 = vmatpush1.msra.mxu0 0.0
    %667 = vmatprep.mubr.f32.mxu0 0.0
    %668 = vmatmul.mubr.f32.gmra.mrb[0].mxu0 %v153
    %v669 = vpop.f32.mrb[0].mxu0
    %v670 = vadd.f32 %v454, %v669
    %v671 = vpop.f32.mrb[0].mxu0
    %672 = vdwg.mxu0
    %673 = vmatprep.subr.mxu0 0.0
    %674 = vmatpush1.msra.mxu0 %v90
    %675 = vmatprep.subr.mxu0 0.0
    %676 = vmatpush1.msra.mxu0 %v91
    %677 = vmatprep.subr.mxu0 0.0
    %678 = vmatpush1.msra.mxu0 %v92
    %679 = vmatprep.subr.mxu0 0.0
    %680 = vmatpush1.msra.mxu0 %v93
    %681 = vmatprep.subr.mxu0 0.0
    %682 = vmatpush1.msra.mxu0 0.0
    %683 = vmatprep.subr.mxu0 0.0
    %684 = vmatpush1.msra.mxu0 0.0
    %685 = vmatprep.subr.mxu0 0.0
    %686 = vmatpush1.msra.mxu0 0.0
    %687 = vmatprep.subr.mxu0 0.0
    %688 = vmatpush1.msra.mxu0 0.0
    %689 = vmatprep.subr.mxu0 0.0
    %690 = vmatpush1.msra.mxu0 0.0
    %691 = vmatprep.subr.mxu0 0.0
    %692 = vmatpush1.msra.mxu0 0.0
    %693 = vmatprep.subr.mxu0 0.0
    %694 = vmatpush1.msra.mxu0 0.0
    %695 = vmatprep.subr.mxu0 0.0
    %696 = vmatpush1.msra.mxu0 0.0
    %697 = vmatprep.subr.mxu0 0.0
    %698 = vmatpush1.msra.mxu0 0.0
    %699 = vmatprep.subr.mxu0 0.0
    %700 = vmatpush1.msra.mxu0 0.0
    %701 = vmatprep.subr.mxu0 0.0
    %702 = vmatpush1.msra.mxu0 0.0
    %703 = vmatprep.subr.mxu0 0.0
    %704 = vmatpush1.msra.mxu0 0.0
    %705 = vmatprep.subr.mxu0 0.0
    %706 = vmatpush1.msra.mxu0 0.0
    %707 = vmatprep.subr.mxu0 0.0
    %708 = vmatpush1.msra.mxu0 0.0
    %709 = vmatprep.subr.mxu0 0.0
    %710 = vmatpush1.msra.mxu0 0.0
    %711 = vmatprep.subr.mxu0 0.0
    %712 = vmatpush1.msra.mxu0 0.0
    %713 = vmatprep.subr.mxu0 0.0
    %714 = vmatpush1.msra.mxu0 0.0
    %715 = vmatprep.subr.mxu0 0.0
    %716 = vmatpush1.msra.mxu0 0.0
    %717 = vmatprep.subr.mxu0 0.0
    %718 = vmatpush1.msra.mxu0 0.0
    %719 = vmatprep.subr.mxu0 0.0
    %720 = vmatpush1.msra.mxu0 0.0
    %721 = vmatprep.subr.mxu0 0.0
    %722 = vmatpush1.msra.mxu0 0.0
    %723 = vmatprep.subr.mxu0 0.0
    %724 = vmatpush1.msra.mxu0 0.0
    %725 = vmatprep.subr.mxu0 0.0
    %726 = vmatpush1.msra.mxu0 0.0
    %727 = vmatprep.subr.mxu0 0.0
    %728 = vmatpush1.msra.mxu0 0.0
    %729 = vmatprep.subr.mxu0 0.0
    %730 = vmatpush1.msra.mxu0 0.0
    %731 = vmatprep.subr.mxu0 0.0
    %732 = vmatpush1.msra.mxu0 0.0
    %733 = vmatprep.subr.mxu0 0.0
    %734 = vmatpush1.msra.mxu0 0.0
    %735 = vmatprep.subr.mxu0 0.0
    %736 = vmatpush1.msra.mxu0 0.0
    %737 = vmatprep.mubr.f32.mxu0 0.0
    %738 = vmatmul.mubr.f32.gmra.mrb[0].mxu0 %v153
    %v739 = vpop.f32.mrb[0].mxu0
    %v740 = vadd.f32 %v458, %v739
    %v741 = vpop.f32.mrb[0].mxu0
    %742 = vdwg.mxu0
    %v747 = vlaneseq
    %v748 = vshrl.u32 %v747, 7
    %v749 = vsub.s32 0, %v748
    %v750 = vrot.slane %v122, %v749
    %v751 = vlaneseq
    %v752 = vshrl.u32 %v751, 7
    %v753 = vsub.s32 0, %v752
    %v754 = vrot.slane %v123, %v753
    %v755 = vlaneseq
    %v756 = vshrl.u32 %v755, 7
    %v757 = vsub.s32 0, %v756
    %v758 = vrot.slane %v124, %v757
    %v759 = vlaneseq
    %v760 = vshrl.u32 %v759, 7
    %v761 = vsub.s32 0, %v760
    %v762 = vrot.slane %v125, %v761
    %767 = vmatprep.subr.mxu0 0.0
    %768 = vmatpush1.msra.mxu0 %v94
    %769 = vmatprep.subr.mxu0 0.0
    %770 = vmatpush1.msra.mxu0 %v95
    %771 = vmatprep.subr.mxu0 0.0
    %772 = vmatpush1.msra.mxu0 %v96
    %773 = vmatprep.subr.mxu0 0.0
    %774 = vmatpush1.msra.mxu0 %v97
    %775 = vmatprep.subr.mxu0 0.0
    %776 = vmatpush1.msra.mxu0 0.0
    %777 = vmatprep.subr.mxu0 0.0
    %778 = vmatpush1.msra.mxu0 0.0
    %779 = vmatprep.subr.mxu0 0.0
    %780 = vmatpush1.msra.mxu0 0.0
    %781 = vmatprep.subr.mxu0 0.0
    %782 = vmatpush1.msra.mxu0 0.0
    %783 = vmatprep.subr.mxu0 0.0
    %784 = vmatpush1.msra.mxu0 0.0
    %785 = vmatprep.subr.mxu0 0.0
    %786 = vmatpush1.msra.mxu0 0.0
    %787 = vmatprep.subr.mxu0 0.0
    %788 = vmatpush1.msra.mxu0 0.0
    %789 = vmatprep.subr.mxu0 0.0
    %790 = vmatpush1.msra.mxu0 0.0
    %791 = vmatprep.subr.mxu0 0.0
    %792 = vmatpush1.msra.mxu0 0.0
    %793 = vmatprep.subr.mxu0 0.0
    %794 = vmatpush1.msra.mxu0 0.0
    %795 = vmatprep.subr.mxu0 0.0
    %796 = vmatpush1.msra.mxu0 0.0
    %797 = vmatprep.subr.mxu0 0.0
    %798 = vmatpush1.msra.mxu0 0.0
    %799 = vmatprep.subr.mxu0 0.0
    %800 = vmatpush1.msra.mxu0 0.0
    %801 = vmatprep.subr.mxu0 0.0
    %802 = vmatpush1.msra.mxu0 0.0
    %803 = vmatprep.subr.mxu0 0.0
    %804 = vmatpush1.msra.mxu0 0.0
    %805 = vmatprep.subr.mxu0 0.0
    %806 = vmatpush1.msra.mxu0 0.0
    %807 = vmatprep.subr.mxu0 0.0
    %808 = vmatpush1.msra.mxu0 0.0
    %809 = vmatprep.subr.mxu0 0.0
    %810 = vmatpush1.msra.mxu0 0.0
    %811 = vmatprep.subr.mxu0 0.0
    %812 = vmatpush1.msra.mxu0 0.0
    %813 = vmatprep.subr.mxu0 0.0
    %814 = vmatpush1.msra.mxu0 0.0
    %815 = vmatprep.subr.mxu0 0.0
    %816 = vmatpush1.msra.mxu0 0.0
    %817 = vmatprep.subr.mxu0 0.0
    %818 = vmatpush1.msra.mxu0 0.0
    %819 = vmatprep.subr.mxu0 0.0
    %820 = vmatpush1.msra.mxu0 0.0
    %821 = vmatprep.subr.mxu0 0.0
    %822 = vmatpush1.msra.mxu0 0.0
    %823 = vmatprep.subr.mxu0 0.0
    %824 = vmatpush1.msra.mxu0 0.0
    %825 = vmatprep.subr.mxu0 0.0
    %826 = vmatpush1.msra.mxu0 0.0
    %827 = vmatprep.subr.mxu0 0.0
    %828 = vmatpush1.msra.mxu0 0.0
    %829 = vmatprep.subr.mxu0 0.0
    %830 = vmatpush1.msra.mxu0 0.0
    %831 = vmatprep.mubr.f32.mxu0 0.0
    %832 = vmatmul.mubr.f32.gmra.mrb[0].mxu0 %v153
    %v833 = vpop.f32.mrb[0].mxu0
    %v834 = vadd.f32 %v750, %v833
    %v835 = vpop.f32.mrb[0].mxu0
    %836 = vdwg.mxu0
    %837 = vmatprep.subr.mxu0 0.0
    %838 = vmatpush1.msra.mxu0 %v98
    %839 = vmatprep.subr.mxu0 0.0
    %840 = vmatpush1.msra.mxu0 %v99
    %841 = vmatprep.subr.mxu0 0.0
    %842 = vmatpush1.msra.mxu0 %v100
    %843 = vmatprep.subr.mxu0 0.0
    %844 = vmatpush1.msra.mxu0 %v101
    %845 = vmatprep.subr.mxu0 0.0
    %846 = vmatpush1.msra.mxu0 0.0
    %847 = vmatprep.subr.mxu0 0.0
    %848 = vmatpush1.msra.mxu0 0.0
    %849 = vmatprep.subr.mxu0 0.0
    %850 = vmatpush1.msra.mxu0 0.0
    %851 = vmatprep.subr.mxu0 0.0
    %852 = vmatpush1.msra.mxu0 0.0
    %853 = vmatprep.subr.mxu0 0.0
    %854 = vmatpush1.msra.mxu0 0.0
    %855 = vmatprep.subr.mxu0 0.0
    %856 = vmatpush1.msra.mxu0 0.0
    %857 = vmatprep.subr.mxu0 0.0
    %858 = vmatpush1.msra.mxu0 0.0
    %859 = vmatprep.subr.mxu0 0.0
    %860 = vmatpush1.msra.mxu0 0.0
    %861 = vmatprep.subr.mxu0 0.0
    %862 = vmatpush1.msra.mxu0 0.0
    %863 = vmatprep.subr.mxu0 0.0
    %864 = vmatpush1.msra.mxu0 0.0
    %865 = vmatprep.subr.mxu0 0.0
    %866 = vmatpush1.msra.mxu0 0.0
    %867 = vmatprep.subr.mxu0 0.0
    %868 = vmatpush1.msra.mxu0 0.0
    %869 = vmatprep.subr.mxu0 0.0
    %870 = vmatpush1.msra.mxu0 0.0
    %871 = vmatprep.subr.mxu0 0.0
    %872 = vmatpush1.msra.mxu0 0.0
    %873 = vmatprep.subr.mxu0 0.0
    %874 = vmatpush1.msra.mxu0 0.0
    %875 = vmatprep.subr.mxu0 0.0
    %876 = vmatpush1.msra.mxu0 0.0
    %877 = vmatprep.subr.mxu0 0.0
    %878 = vmatpush1.msra.mxu0 0.0
    %879 = vmatprep.subr.mxu0 0.0
    %880 = vmatpush1.msra.mxu0 0.0
    %881 = vmatprep.subr.mxu0 0.0
    %882 = vmatpush1.msra.mxu0 0.0
    %883 = vmatprep.subr.mxu0 0.0
    %884 = vmatpush1.msra.mxu0 0.0
    %885 = vmatprep.subr.mxu0 0.0
    %886 = vmatpush1.msra.mxu0 0.0
    %887 = vmatprep.subr.mxu0 0.0
    %888 = vmatpush1.msra.mxu0 0.0
    %889 = vmatprep.subr.mxu0 0.0
    %890 = vmatpush1.msra.mxu0 0.0
    %891 = vmatprep.subr.mxu0 0.0
    %892 = vmatpush1.msra.mxu0 0.0
    %893 = vmatprep.subr.mxu0 0.0
    %894 = vmatpush1.msra.mxu0 0.0
    %895 = vmatprep.subr.mxu0 0.0
    %896 = vmatpush1.msra.mxu0 0.0
    %897 = vmatprep.subr.mxu0 0.0
    %898 = vmatpush1.msra.mxu0 0.0
    %899 = vmatprep.subr.mxu0 0.0
    %900 = vmatpush1.msra.mxu0 0.0
    %901 = vmatprep.mubr.f32.mxu0 0.0
    %902 = vmatmul.mubr.f32.gmra.mrb[0].mxu0 %v153
    %v903 = vpop.f32.mrb[0].mxu0
    %v904 = vadd.f32 %v754, %v903
    %v905 = vpop.f32.mrb[0].mxu0
    %906 = vdwg.mxu0
    %907 = vmatprep.subr.mxu0 0.0
    %908 = vmatpush1.msra.mxu0 %v102
    %909 = vmatprep.subr.mxu0 0.0
    %910 = vmatpush1.msra.mxu0 %v103
    %911 = vmatprep.subr.mxu0 0.0
    %912 = vmatpush1.msra.mxu0 %v104
    %913 = vmatprep.subr.mxu0 0.0
    %914 = vmatpush1.msra.mxu0 %v105
    %915 = vmatprep.subr.mxu0 0.0
    %916 = vmatpush1.msra.mxu0 0.0
    %917 = vmatprep.subr.mxu0 0.0
    %918 = vmatpush1.msra.mxu0 0.0
    %919 = vmatprep.subr.mxu0 0.0
    %920 = vmatpush1.msra.mxu0 0.0
    %921 = vmatprep.subr.mxu0 0.0
    %922 = vmatpush1.msra.mxu0 0.0
    %923 = vmatprep.subr.mxu0 0.0
    %924 = vmatpush1.msra.mxu0 0.0
    %925 = vmatprep.subr.mxu0 0.0
    %926 = vmatpush1.msra.mxu0 0.0
    %927 = vmatprep.subr.mxu0 0.0
    %928 = vmatpush1.msra.mxu0 0.0
    %929 = vmatprep.subr.mxu0 0.0
    %930 = vmatpush1.msra.mxu0 0.0
    %931 = vmatprep.subr.mxu0 0.0
    %932 = vmatpush1.msra.mxu0 0.0
    %933 = vmatprep.subr.mxu0 0.0
    %934 = vmatpush1.msra.mxu0 0.0
    %935 = vmatprep.subr.mxu0 0.0
    %936 = vmatpush1.msra.mxu0 0.0
    %937 = vmatprep.subr.mxu0 0.0
    %938 = vmatpush1.msra.mxu0 0.0
    %939 = vmatprep.subr.mxu0 0.0
    %940 = vmatpush1.msra.mxu0 0.0
    %941 = vmatprep.subr.mxu0 0.0
    %942 = vmatpush1.msra.mxu0 0.0
    %943 = vmatprep.subr.mxu0 0.0
    %944 = vmatpush1.msra.mxu0 0.0
    %945 = vmatprep.subr.mxu0 0.0
    %946 = vmatpush1.msra.mxu0 0.0
    %947 = vmatprep.subr.mxu0 0.0
    %948 = vmatpush1.msra.mxu0 0.0
    %949 = vmatprep.subr.mxu0 0.0
    %950 = vmatpush1.msra.mxu0 0.0
    %951 = vmatprep.subr.mxu0 0.0
    %952 = vmatpush1.msra.mxu0 0.0
    %953 = vmatprep.subr.mxu0 0.0
    %954 = vmatpush1.msra.mxu0 0.0
    %955 = vmatprep.subr.mxu0 0.0
    %956 = vmatpush1.msra.mxu0 0.0
    %957 = vmatprep.subr.mxu0 0.0
    %958 = vmatpush1.msra.mxu0 0.0
    %959 = vmatprep.subr.mxu0 0.0
    %960 = vmatpush1.msra.mxu0 0.0
    %961 = vmatprep.subr.mxu0 0.0
    %962 = vmatpush1.msra.mxu0 0.0
    %963 = vmatprep.subr.mxu0 0.0
    %964 = vmatpush1.msra.mxu0 0.0
    %965 = vmatprep.subr.mxu0 0.0
    %966 = vmatpush1.msra.mxu0 0.0
    %967 = vmatprep.subr.mxu0 0.0
    %968 = vmatpush1.msra.mxu0 0.0
    %969 = vmatprep.subr.mxu0 0.0
    %970 = vmatpush1.msra.mxu0 0.0
    %971 = vmatprep.mubr.f32.mxu0 0.0
    %972 = vmatmul.mubr.f32.gmra.mrb[0].mxu0 %v153
    %v973 = vpop.f32.mrb[0].mxu0
    %v974 = vadd.f32 %v758, %v973
    %v975 = vpop.f32.mrb[0].mxu0
    %976 = vdwg.mxu0
    %977 = vmatprep.subr.mxu0 0.0
    %978 = vmatpush1.msra.mxu0 %v106
    %979 = vmatprep.subr.mxu0 0.0
    %980 = vmatpush1.msra.mxu0 %v107
    %981 = vmatprep.subr.mxu0 0.0
    %982 = vmatpush1.msra.mxu0 %v108
    %983 = vmatprep.subr.mxu0 0.0
    %984 = vmatpush1.msra.mxu0 %v109
    %985 = vmatprep.subr.mxu0 0.0
    %986 = vmatpush1.msra.mxu0 0.0
    %987 = vmatprep.subr.mxu0 0.0
    %988 = vmatpush1.msra.mxu0 0.0
    %989 = vmatprep.subr.mxu0 0.0
    %990 = vmatpush1.msra.mxu0 0.0
    %991 = vmatprep.subr.mxu0 0.0
    %992 = vmatpush1.msra.mxu0 0.0
    %993 = vmatprep.subr.mxu0 0.0
    %994 = vmatpush1.msra.mxu0 0.0
    %995 = vmatprep.subr.mxu0 0.0
    %996 = vmatpush1.msra.mxu0 0.0
    %997 = vmatprep.subr.mxu0 0.0
    %998 = vmatpush1.msra.mxu0 0.0
    %999 = vmatprep.subr.mxu0 0.0
    %1000 = vmatpush1.msra.mxu0 0.0
    %1001 = vmatprep.subr.mxu0 0.0
    %1002 = vmatpush1.msra.mxu0 0.0
    %1003 = vmatprep.subr.mxu0 0.0
    %1004 = vmatpush1.msra.mxu0 0.0
    %1005 = vmatprep.subr.mxu0 0.0
    %1006 = vmatpush1.msra.mxu0 0.0
    %1007 = vmatprep.subr.mxu0 0.0
    %1008 = vmatpush1.msra.mxu0 0.0
    %1009 = vmatprep.subr.mxu0 0.0
    %1010 = vmatpush1.msra.mxu0 0.0
    %1011 = vmatprep.subr.mxu0 0.0
    %1012 = vmatpush1.msra.mxu0 0.0
    %1013 = vmatprep.subr.mxu0 0.0
    %1014 = vmatpush1.msra.mxu0 0.0
    %1015 = vmatprep.subr.mxu0 0.0
    %1016 = vmatpush1.msra.mxu0 0.0
    %1017 = vmatprep.subr.mxu0 0.0
    %1018 = vmatpush1.msra.mxu0 0.0
    %1019 = vmatprep.subr.mxu0 0.0
    %1020 = vmatpush1.msra.mxu0 0.0
    %1021 = vmatprep.subr.mxu0 0.0
    %1022 = vmatpush1.msra.mxu0 0.0
    %1023 = vmatprep.subr.mxu0 0.0
    %1024 = vmatpush1.msra.mxu0 0.0
    %1025 = vmatprep.subr.mxu0 0.0
    %1026 = vmatpush1.msra.mxu0 0.0
    %1027 = vmatprep.subr.mxu0 0.0
    %1028 = vmatpush1.msra.mxu0 0.0
    %1029 = vmatprep.subr.mxu0 0.0
    %1030 = vmatpush1.msra.mxu0 0.0
    %1031 = vmatprep.subr.mxu0 0.0
    %1032 = vmatpush1.msra.mxu0 0.0
    %1033 = vmatprep.subr.mxu0 0.0
    %1034 = vmatpush1.msra.mxu0 0.0
    %1035 = vmatprep.subr.mxu0 0.0
    %1036 = vmatpush1.msra.mxu0 0.0
    %1037 = vmatprep.subr.mxu0 0.0
    %1038 = vmatpush1.msra.mxu0 0.0
    %1039 = vmatprep.subr.mxu0 0.0
    %1040 = vmatpush1.msra.mxu0 0.0
    %1041 = vmatprep.mubr.f32.mxu0 0.0
    %1042 = vmatmul.mubr.f32.gmra.mrb[0].mxu0 %v153
    %v1043 = vpop.f32.mrb[0].mxu0
    %v1044 = vadd.f32 %v762, %v1043
    %v1045 = vpop.f32.mrb[0].mxu0
    %1046 = vdwg.mxu0
    %v1047 = vld [vmem:[%s1] sm:$0xff]
    %vm1048 = vcmp.eq.f32.partialorder %v1047, 0.0
    %v1049 = vsel %vm1048, -1e+09, 0.0
    %vm1050 = vcmask 64512
    %v1052 = vsel %vm1050, %v435, 0
    %v1055 = vsel %vm1050, %v530, 0
    %1057 = vmatprep.subr.mxu0 0.0
    %1058 = vmatpush1.xpose.msra.mxu0 %v1055
    %1059 = vmatprep.subr.mxu0 0.0
    %1060 = vmatpush1.xpose.msra.mxu0 0.0
    %1061 = vmatprep.subr.mxu0 0.0
    %1062 = vmatpush1.xpose.msra.mxu0 0.0
    %1063 = vmatprep.subr.mxu0 0.0
    %1064 = vmatpush1.xpose.msra.mxu0 0.0
    %1065 = vmatprep.subr.mxu0 0.0
    %1066 = vmatpush1.xpose.msra.mxu0 0.0
    %1067 = vmatprep.subr.mxu0 0.0
    %1068 = vmatpush1.xpose.msra.mxu0 0.0
    %1069 = vmatprep.subr.mxu0 0.0
    %1070 = vmatpush1.xpose.msra.mxu0 0.0
    %1071 = vmatprep.subr.mxu0 0.0
    %1072 = vmatpush1.xpose.msra.mxu0 0.0
    %1073 = vmatprep.subr.mxu0 0.0
    %1074 = vmatpush1.xpose.msra.mxu0 0.0
    %1075 = vmatprep.subr.mxu0 0.0
    %1076 = vmatpush1.xpose.msra.mxu0 0.0
    %1077 = vmatprep.subr.mxu0 0.0
    %1078 = vmatpush1.xpose.msra.mxu0 0.0
    %1079 = vmatprep.subr.mxu0 0.0
    %1080 = vmatpush1.xpose.msra.mxu0 0.0
    %1081 = vmatprep.subr.mxu0 0.0
    %1082 = vmatpush1.xpose.msra.mxu0 0.0
    %1083 = vmatprep.subr.mxu0 0.0
    %1084 = vmatpush1.xpose.msra.mxu0 0.0
    %1085 = vmatprep.subr.mxu0 0.0
    %1086 = vmatpush1.xpose.msra.mxu0 0.0
    %1087 = vmatprep.subr.mxu0 0.0
    %1088 = vmatpush1.xpose.msra.mxu0 0.0
    %1089 = vmatprep.subr.mxu0 0.0
    %1090 = vmatpush1.xpose.msra.mxu0 0.0
    %1091 = vmatprep.subr.mxu0 0.0
    %1092 = vmatpush1.xpose.msra.mxu0 0.0
    %1093 = vmatprep.subr.mxu0 0.0
    %1094 = vmatpush1.xpose.msra.mxu0 0.0
    %1095 = vmatprep.subr.mxu0 0.0
    %1096 = vmatpush1.xpose.msra.mxu0 0.0
    %1097 = vmatprep.subr.mxu0 0.0
    %1098 = vmatpush1.xpose.msra.mxu0 0.0
    %1099 = vmatprep.subr.mxu0 0.0
    %1100 = vmatpush1.xpose.msra.mxu0 0.0
    %1101 = vmatprep.subr.mxu0 0.0
    %1102 = vmatpush1.xpose.msra.mxu0 0.0
    %1103 = vmatprep.subr.mxu0 0.0
    %1104 = vmatpush1.xpose.msra.mxu0 0.0
    %1105 = vmatprep.subr.mxu0 0.0
    %1106 = vmatpush1.xpose.msra.mxu0 0.0
    %1107 = vmatprep.subr.mxu0 0.0
    %1108 = vmatpush1.xpose.msra.mxu0 0.0
    %1109 = vmatprep.subr.mxu0 0.0
    %1110 = vmatpush1.xpose.msra.mxu0 0.0
    %1111 = vmatprep.subr.mxu0 0.0
    %1112 = vmatpush1.xpose.msra.mxu0 0.0
    %1113 = vmatprep.subr.mxu0 0.0
    %1114 = vmatpush1.xpose.msra.mxu0 0.0
    %1115 = vmatprep.subr.mxu0 0.0
    %1116 = vmatpush1.xpose.msra.mxu0 0.0
    %1117 = vmatprep.subr.mxu0 0.0
    %1118 = vmatpush1.xpose.msra.mxu0 0.0
    %1119 = vmatprep.subr.mxu0 0.0
    %1120 = vmatpush1.xpose.msra.mxu0 0.0
    %1121 = vmatprep.mubr.f32.mxu0 0.0
    %1122 = vmatmul.mubr.f32.gmra.mrb[0].mxu0 %v1052
    %v1123 = vpop.f32.mrb[0].mxu0
    %v1124 = vadd.f32 %v1049, %v1123
    %v1125 = vpop.f32.mrb[0].mxu0
    %1126 = vdwg.mxu0
    %v1128 = vsel %vm1050, %v436, 0
    %v1131 = vsel %vm1050, %v600, 0
    %1133 = vmatprep.subr.mxu0 0.0
    %1134 = vmatpush1.xpose.msra.mxu0 %v1131
    %1135 = vmatprep.subr.mxu0 0.0
    %1136 = vmatpush1.xpose.msra.mxu0 0.0
    %1137 = vmatprep.subr.mxu0 0.0
    %1138 = vmatpush1.xpose.msra.mxu0 0.0
    %1139 = vmatprep.subr.mxu0 0.0
    %1140 = vmatpush1.xpose.msra.mxu0 0.0
    %1141 = vmatprep.subr.mxu0 0.0
    %1142 = vmatpush1.xpose.msra.mxu0 0.0
    %1143 = vmatprep.subr.mxu0 0.0
    %1144 = vmatpush1.xpose.msra.mxu0 0.0
    %1145 = vmatprep.subr.mxu0 0.0
    %1146 = vmatpush1.xpose.msra.mxu0 0.0
    %1147 = vmatprep.subr.mxu0 0.0
    %1148 = vmatpush1.xpose.msra.mxu0 0.0
    %1149 = vmatprep.subr.mxu0 0.0
    %1150 = vmatpush1.xpose.msra.mxu0 0.0
    %1151 = vmatprep.subr.mxu0 0.0
    %1152 = vmatpush1.xpose.msra.mxu0 0.0
    %1153 = vmatprep.subr.mxu0 0.0
    %1154 = vmatpush1.xpose.msra.mxu0 0.0
    %1155 = vmatprep.subr.mxu0 0.0
    %1156 = vmatpush1.xpose.msra.mxu0 0.0
    %1157 = vmatprep.subr.mxu0 0.0
    %1158 = vmatpush1.xpose.msra.mxu0 0.0
    %1159 = vmatprep.subr.mxu0 0.0
    %1160 = vmatpush1.xpose.msra.mxu0 0.0
    %1161 = vmatprep.subr.mxu0 0.0
    %1162 = vmatpush1.xpose.msra.mxu0 0.0
    %1163 = vmatprep.subr.mxu0 0.0
    %1164 = vmatpush1.xpose.msra.mxu0 0.0
    %1165 = vmatprep.subr.mxu0 0.0
    %1166 = vmatpush1.xpose.msra.mxu0 0.0
    %1167 = vmatprep.subr.mxu0 0.0
    %1168 = vmatpush1.xpose.msra.mxu0 0.0
    %1169 = vmatprep.subr.mxu0 0.0
    %1170 = vmatpush1.xpose.msra.mxu0 0.0
    %1171 = vmatprep.subr.mxu0 0.0
    %1172 = vmatpush1.xpose.msra.mxu0 0.0
    %1173 = vmatprep.subr.mxu0 0.0
    %1174 = vmatpush1.xpose.msra.mxu0 0.0
    %1175 = vmatprep.subr.mxu0 0.0
    %1176 = vmatpush1.xpose.msra.mxu0 0.0
    %1177 = vmatprep.subr.mxu0 0.0
    %1178 = vmatpush1.xpose.msra.mxu0 0.0
    %1179 = vmatprep.subr.mxu0 0.0
    %1180 = vmatpush1.xpose.msra.mxu0 0.0
    %1181 = vmatprep.subr.mxu0 0.0
    %1182 = vmatpush1.xpose.msra.mxu0 0.0
    %1183 = vmatprep.subr.mxu0 0.0
    %1184 = vmatpush1.xpose.msra.mxu0 0.0
    %1185 = vmatprep.subr.mxu0 0.0
    %1186 = vmatpush1.xpose.msra.mxu0 0.0
    %1187 = vmatprep.subr.mxu0 0.0
    %1188 = vmatpush1.xpose.msra.mxu0 0.0
    %1189 = vmatprep.subr.mxu0 0.0
    %1190 = vmatpush1.xpose.msra.mxu0 0.0
    %1191 = vmatprep.subr.mxu0 0.0
    %1192 = vmatpush1.xpose.msra.mxu0 0.0
    %1193 = vmatprep.subr.mxu0 0.0
    %1194 = vmatpush1.xpose.msra.mxu0 0.0
    %1195 = vmatprep.subr.mxu0 0.0
    %1196 = vmatpush1.xpose.msra.mxu0 0.0
    %1197 = vmatprep.mubr.f32.mxu0 0.0
    %1198 = vmatmul.mubr.f32.gmra.mrb[0].mxu0 %v1128
    %v1199 = vpop.f32.mrb[0].mxu0
    %v1200 = vadd.f32 %v1049, %v1199
    %v1201 = vpop.f32.mrb[0].mxu0
    %1202 = vdwg.mxu0
    %v1204 = vsel %vm1050, %v437, 0
    %v1207 = vsel %vm1050, %v670, 0
    %1209 = vmatprep.subr.mxu0 0.0
    %1210 = vmatpush1.xpose.msra.mxu0 %v1207
    %1211 = vmatprep.subr.mxu0 0.0
    %1212 = vmatpush1.xpose.msra.mxu0 0.0
    %1213 = vmatprep.subr.mxu0 0.0
    %1214 = vmatpush1.xpose.msra.mxu0 0.0
    %1215 = vmatprep.subr.mxu0 0.0
    %1216 = vmatpush1.xpose.msra.mxu0 0.0
    %1217 = vmatprep.subr.mxu0 0.0
    %1218 = vmatpush1.xpose.msra.mxu0 0.0
    %1219 = vmatprep.subr.mxu0 0.0
    %1220 = vmatpush1.xpose.msra.mxu0 0.0
    %1221 = vmatprep.subr.mxu0 0.0
    %1222 = vmatpush1.xpose.msra.mxu0 0.0
    %1223 = vmatprep.subr.mxu0 0.0
    %1224 = vmatpush1.xpose.msra.mxu0 0.0
    %1225 = vmatprep.subr.mxu0 0.0
    %1226 = vmatpush1.xpose.msra.mxu0 0.0
    %1227 = vmatprep.subr.mxu0 0.0
    %1228 = vmatpush1.xpose.msra.mxu0 0.0
    %1229 = vmatprep.subr.mxu0 0.0
    %1230 = vmatpush1.xpose.msra.mxu0 0.0
    %1231 = vmatprep.subr.mxu0 0.0
    %1232 = vmatpush1.xpose.msra.mxu0 0.0
    %1233 = vmatprep.subr.mxu0 0.0
    %1234 = vmatpush1.xpose.msra.mxu0 0.0
    %1235 = vmatprep.subr.mxu0 0.0
    %1236 = vmatpush1.xpose.msra.mxu0 0.0
    %1237 = vmatprep.subr.mxu0 0.0
    %1238 = vmatpush1.xpose.msra.mxu0 0.0
    %1239 = vmatprep.subr.mxu0 0.0
    %1240 = vmatpush1.xpose.msra.mxu0 0.0
    %1241 = vmatprep.subr.mxu0 0.0
    %1242 = vmatpush1.xpose.msra.mxu0 0.0
    %1243 = vmatprep.subr.mxu0 0.0
    %1244 = vmatpush1.xpose.msra.mxu0 0.0
    %1245 = vmatprep.subr.mxu0 0.0
    %1246 = vmatpush1.xpose.msra.mxu0 0.0
    %1247 = vmatprep.subr.mxu0 0.0
    %1248 = vmatpush1.xpose.msra.mxu0 0.0
    %1249 = vmatprep.subr.mxu0 0.0
    %1250 = vmatpush1.xpose.msra.mxu0 0.0
    %1251 = vmatprep.subr.mxu0 0.0
    %1252 = vmatpush1.xpose.msra.mxu0 0.0
    %1253 = vmatprep.subr.mxu0 0.0
    %1254 = vmatpush1.xpose.msra.mxu0 0.0
    %1255 = vmatprep.subr.mxu0 0.0
    %1256 = vmatpush1.xpose.msra.mxu0 0.0
    %1257 = vmatprep.subr.mxu0 0.0
    %1258 = vmatpush1.xpose.msra.mxu0 0.0
    %1259 = vmatprep.subr.mxu0 0.0
    %1260 = vmatpush1.xpose.msra.mxu0 0.0
    %1261 = vmatprep.subr.mxu0 0.0
    %1262 = vmatpush1.xpose.msra.mxu0 0.0
    %1263 = vmatprep.subr.mxu0 0.0
    %1264 = vmatpush1.xpose.msra.mxu0 0.0
    %1265 = vmatprep.subr.mxu0 0.0
    %1266 = vmatpush1.xpose.msra.mxu0 0.0
    %1267 = vmatprep.subr.mxu0 0.0
    %1268 = vmatpush1.xpose.msra.mxu0 0.0
    %1269 = vmatprep.subr.mxu0 0.0
    %1270 = vmatpush1.xpose.msra.mxu0 0.0
    %1271 = vmatprep.subr.mxu0 0.0
    %1272 = vmatpush1.xpose.msra.mxu0 0.0
    %1273 = vmatprep.mubr.f32.mxu0 0.0
    %1274 = vmatmul.mubr.f32.gmra.mrb[0].mxu0 %v1204
    %v1275 = vpop.f32.mrb[0].mxu0
    %v1276 = vadd.f32 %v1049, %v1275
    %v1277 = vpop.f32.mrb[0].mxu0
    %1278 = vdwg.mxu0
    %v1280 = vsel %vm1050, %v438, 0
    %v1283 = vsel %vm1050, %v740, 0
    %1285 = vmatprep.subr.mxu0 0.0
    %1286 = vmatpush1.xpose.msra.mxu0 %v1283
    %1287 = vmatprep.subr.mxu0 0.0
    %1288 = vmatpush1.xpose.msra.mxu0 0.0
    %1289 = vmatprep.subr.mxu0 0.0
    %1290 = vmatpush1.xpose.msra.mxu0 0.0
    %1291 = vmatprep.subr.mxu0 0.0
    %1292 = vmatpush1.xpose.msra.mxu0 0.0
    %1293 = vmatprep.subr.mxu0 0.0
    %1294 = vmatpush1.xpose.msra.mxu0 0.0
    %1295 = vmatprep.subr.mxu0 0.0
    %1296 = vmatpush1.xpose.msra.mxu0 0.0
    %1297 = vmatprep.subr.mxu0 0.0
    %1298 = vmatpush1.xpose.msra.mxu0 0.0
    %1299 = vmatprep.subr.mxu0 0.0
    %1300 = vmatpush1.xpose.msra.mxu0 0.0
    %1301 = vmatprep.subr.mxu0 0.0
    %1302 = vmatpush1.xpose.msra.mxu0 0.0
    %1303 = vmatprep.subr.mxu0 0.0
    %1304 = vmatpush1.xpose.msra.mxu0 0.0
    %1305 = vmatprep.subr.mxu0 0.0
    %1306 = vmatpush1.xpose.msra.mxu0 0.0
    %1307 = vmatprep.subr.mxu0 0.0
    %1308 = vmatpush1.xpose.msra.mxu0 0.0
    %1309 = vmatprep.subr.mxu0 0.0
    %1310 = vmatpush1.xpose.msra.mxu0 0.0
    %1311 = vmatprep.subr.mxu0 0.0
    %1312 = vmatpush1.xpose.msra.mxu0 0.0
    %1313 = vmatprep.subr.mxu0 0.0
    %1314 = vmatpush1.xpose.msra.mxu0 0.0
    %1315 = vmatprep.subr.mxu0 0.0
    %1316 = vmatpush1.xpose.msra.mxu0 0.0
    %1317 = vmatprep.subr.mxu0 0.0
    %1318 = vmatpush1.xpose.msra.mxu0 0.0
    %1319 = vmatprep.subr.mxu0 0.0
    %1320 = vmatpush1.xpose.msra.mxu0 0.0
    %1321 = vmatprep.subr.mxu0 0.0
    %1322 = vmatpush1.xpose.msra.mxu0 0.0
    %1323 = vmatprep.subr.mxu0 0.0
    %1324 = vmatpush1.xpose.msra.mxu0 0.0
    %1325 = vmatprep.subr.mxu0 0.0
    %1326 = vmatpush1.xpose.msra.mxu0 0.0
    %1327 = vmatprep.subr.mxu0 0.0
    %1328 = vmatpush1.xpose.msra.mxu0 0.0
    %1329 = vmatprep.subr.mxu0 0.0
    %1330 = vmatpush1.xpose.msra.mxu0 0.0
    %1331 = vmatprep.subr.mxu0 0.0
    %1332 = vmatpush1.xpose.msra.mxu0 0.0
    %1333 = vmatprep.subr.mxu0 0.0
    %1334 = vmatpush1.xpose.msra.mxu0 0.0
    %1335 = vmatprep.subr.mxu0 0.0
    %1336 = vmatpush1.xpose.msra.mxu0 0.0
    %1337 = vmatprep.subr.mxu0 0.0
    %1338 = vmatpush1.xpose.msra.mxu0 0.0
    %1339 = vmatprep.subr.mxu0 0.0
    %1340 = vmatpush1.xpose.msra.mxu0 0.0
    %1341 = vmatprep.subr.mxu0 0.0
    %1342 = vmatpush1.xpose.msra.mxu0 0.0
    %1343 = vmatprep.subr.mxu0 0.0
    %1344 = vmatpush1.xpose.msra.mxu0 0.0
    %1345 = vmatprep.subr.mxu0 0.0
    %1346 = vmatpush1.xpose.msra.mxu0 0.0
    %1347 = vmatprep.subr.mxu0 0.0
    %1348 = vmatpush1.xpose.msra.mxu0 0.0
    %1349 = vmatprep.mubr.f32.mxu0 0.0
    %1350 = vmatmul.mubr.f32.gmra.mrb[0].mxu0 %v1280
    %v1351 = vpop.f32.mrb[0].mxu0
    %v1352 = vadd.f32 %v1049, %v1351
    %v1353 = vpop.f32.mrb[0].mxu0
    %1354 = vdwg.mxu0
    %v1355 = vsel %vm1050, %v1124, -inf
    %1356 = vmax.xlane.f32.xlu0 %v1355
    %v1357 = vpop.xlane.xlu0 %1356
    %v1358 = vsel %vm1050, %v1200, -inf
    %1359 = vmax.xlane.f32.xlu0 %v1358
    %v1360 = vpop.xlane.xlu0 %1359
    %v1361 = vsel %vm1050, %v1276, -inf
    %1362 = vmax.xlane.f32.xlu0 %v1361
    %v1363 = vpop.xlane.xlu0 %1362
    %v1364 = vsel %vm1050, %v1352, -inf
    %1365 = vmax.xlane.f32.xlu0 %v1364
    %v1366 = vpop.xlane.xlu0 %1365
    %v1367 = vsub.f32 %v1124, %v1357
    %v1368 = vsub.f32 %v1200, %v1360
    %v1369 = vsub.f32 %v1276, %v1363
    %v1370 = vsub.f32 %v1352, %v1366
    %v1371 = vmul.f32 %v1367, 1.442695
    %v1372 = vpow.pop %v1371
    %v1373 = vmul.f32 %v1368, 1.442695
    %v1374 = vpow.pop %v1373
    %v1375 = vmul.f32 %v1369, 1.442695
    %v1376 = vpow.pop %v1375
    %v1377 = vmul.f32 %v1370, 1.442695
    %v1378 = vpow.pop %v1377
    %v1379 = vsel %vm1050, %v1372, 0.0
    %1380 = vadd.xlane.f32.xlu0 %v1379
    %v1381 = vpop.xlane.xlu0 %1380
    %v1382 = vsel %vm1050, %v1374, 0.0
    %1383 = vadd.xlane.f32.xlu0 %v1382
    %v1384 = vpop.xlane.xlu0 %1383
    %v1385 = vsel %vm1050, %v1376, 0.0
    %1386 = vadd.xlane.f32.xlu0 %v1385
    %v1387 = vpop.xlane.xlu0 %1386
    %v1388 = vsel %vm1050, %v1378, 0.0
    %1389 = vadd.xlane.f32.xlu0 %v1388
    %v1390 = vpop.xlane.xlu0 %1389
    %v1391 = vrcp.pop %v1381
    %v1392 = vrcp.pop %v1384
    %v1393 = vrcp.pop %v1387
    %v1394 = vrcp.pop %v1390
    %v1395 = vmul.f32 %v1372, %v1391
    %v1396 = vmul.f32 %v1374, %v1392
    %v1397 = vmul.f32 %v1376, %v1393
    %v1398 = vmul.f32 %v1378, %v1394
    %v1400 = vsel %vm1050, %v1395, 0
    %1402 = vmatprep.subr.mxu0 0.0
    %1403 = vmatpush1.msra.mxu0 %v834
    %1404 = vmatprep.subr.mxu0 0.0
    %1405 = vmatpush1.msra.mxu0 0.0
    %1406 = vmatprep.subr.mxu0 0.0
    %1407 = vmatpush1.msra.mxu0 0.0
    %1408 = vmatprep.subr.mxu0 0.0
    %1409 = vmatpush1.msra.mxu0 0.0
    %1410 = vmatprep.subr.mxu0 0.0
    %1411 = vmatpush1.msra.mxu0 0.0
    %1412 = vmatprep.subr.mxu0 0.0
    %1413 = vmatpush1.msra.mxu0 0.0
    %1414 = vmatprep.subr.mxu0 0.0
    %1415 = vmatpush1.msra.mxu0 0.0
    %1416 = vmatprep.subr.mxu0 0.0
    %1417 = vmatpush1.msra.mxu0 0.0
    %1418 = vmatprep.subr.mxu0 0.0
    %1419 = vmatpush1.msra.mxu0 0.0
    %1420 = vmatprep.subr.mxu0 0.0
    %1421 = vmatpush1.msra.mxu0 0.0
    %1422 = vmatprep.subr.mxu0 0.0
    %1423 = vmatpush1.msra.mxu0 0.0
    %1424 = vmatprep.subr.mxu0 0.0
    %1425 = vmatpush1.msra.mxu0 0.0
    %1426 = vmatprep.subr.mxu0 0.0
    %1427 = vmatpush1.msra.mxu0 0.0
    %1428 = vmatprep.subr.mxu0 0.0
    %1429 = vmatpush1.msra.mxu0 0.0
    %1430 = vmatprep.subr.mxu0 0.0
    %1431 = vmatpush1.msra.mxu0 0.0
    %1432 = vmatprep.subr.mxu0 0.0
    %1433 = vmatpush1.msra.mxu0 0.0
    %1434 = vmatprep.subr.mxu0 0.0
    %1435 = vmatpush1.msra.mxu0 0.0
    %1436 = vmatprep.subr.mxu0 0.0
    %1437 = vmatpush1.msra.mxu0 0.0
    %1438 = vmatprep.subr.mxu0 0.0
    %1439 = vmatpush1.msra.mxu0 0.0
    %1440 = vmatprep.subr.mxu0 0.0
    %1441 = vmatpush1.msra.mxu0 0.0
    %1442 = vmatprep.subr.mxu0 0.0
    %1443 = vmatpush1.msra.mxu0 0.0
    %1444 = vmatprep.subr.mxu0 0.0
    %1445 = vmatpush1.msra.mxu0 0.0
    %1446 = vmatprep.subr.mxu0 0.0
    %1447 = vmatpush1.msra.mxu0 0.0
    %1448 = vmatprep.subr.mxu0 0.0
    %1449 = vmatpush1.msra.mxu0 0.0
    %1450 = vmatprep.subr.mxu0 0.0
    %1451 = vmatpush1.msra.mxu0 0.0
    %1452 = vmatprep.subr.mxu0 0.0
    %1453 = vmatpush1.msra.mxu0 0.0
    %1454 = vmatprep.subr.mxu0 0.0
    %1455 = vmatpush1.msra.mxu0 0.0
    %1456 = vmatprep.subr.mxu0 0.0
    %1457 = vmatpush1.msra.mxu0 0.0
    %1458 = vmatprep.subr.mxu0 0.0
    %1459 = vmatpush1.msra.mxu0 0.0
    %1460 = vmatprep.subr.mxu0 0.0
    %1461 = vmatpush1.msra.mxu0 0.0
    %1462 = vmatprep.subr.mxu0 0.0
    %1463 = vmatpush1.msra.mxu0 0.0
    %1464 = vmatprep.subr.mxu0 0.0
    %1465 = vmatpush1.msra.mxu0 0.0
    %1466 = vmatprep.mubr.f32.mxu0 0.0
    %1467 = vmatmul.mubr.f32.gmra.mrb[0].mxu0 %v1400
    %v1468 = vpop.f32.mrb[0].mxu0
    %v1469 = vadd.f32 0.0, %v1468
    %v1470 = vpop.f32.mrb[0].mxu0
    %1471 = vdwg.mxu0
    %v1473 = vsel %vm1050, %v1396, 0
    %1475 = vmatprep.subr.mxu0 0.0
    %1476 = vmatpush1.msra.mxu0 %v904
    %1477 = vmatprep.subr.mxu0 0.0
    %1478 = vmatpush1.msra.mxu0 0.0
    %1479 = vmatprep.subr.mxu0 0.0
    %1480 = vmatpush1.msra.mxu0 0.0
    %1481 = vmatprep.subr.mxu0 0.0
    %1482 = vmatpush1.msra.mxu0 0.0
    %1483 = vmatprep.subr.mxu0 0.0
    %1484 = vmatpush1.msra.mxu0 0.0
    %1485 = vmatprep.subr.mxu0 0.0
    %1486 = vmatpush1.msra.mxu0 0.0
    %1487 = vmatprep.subr.mxu0 0.0
    %1488 = vmatpush1.msra.mxu0 0.0
    %1489 = vmatprep.subr.mxu0 0.0
    %1490 = vmatpush1.msra.mxu0 0.0
    %1491 = vmatprep.subr.mxu0 0.0
    %1492 = vmatpush1.msra.mxu0 0.0
    %1493 = vmatprep.subr.mxu0 0.0
    %1494 = vmatpush1.msra.mxu0 0.0
    %1495 = vmatprep.subr.mxu0 0.0
    %1496 = vmatpush1.msra.mxu0 0.0
    %1497 = vmatprep.subr.mxu0 0.0
    %1498 = vmatpush1.msra.mxu0 0.0
    %1499 = vmatprep.subr.mxu0 0.0
    %1500 = vmatpush1.msra.mxu0 0.0
    %1501 = vmatprep.subr.mxu0 0.0
    %1502 = vmatpush1.msra.mxu0 0.0
    %1503 = vmatprep.subr.mxu0 0.0
    %1504 = vmatpush1.msra.mxu0 0.0
    %1505 = vmatprep.subr.mxu0 0.0
    %1506 = vmatpush1.msra.mxu0 0.0
    %1507 = vmatprep.subr.mxu0 0.0
    %1508 = vmatpush1.msra.mxu0 0.0
    %1509 = vmatprep.subr.mxu0 0.0
    %1510 = vmatpush1.msra.mxu0 0.0
    %1511 = vmatprep.subr.mxu0 0.0
    %1512 = vmatpush1.msra.mxu0 0.0
    %1513 = vmatprep.subr.mxu0 0.0
    %1514 = vmatpush1.msra.mxu0 0.0
    %1515 = vmatprep.subr.mxu0 0.0
    %1516 = vmatpush1.msra.mxu0 0.0
    %1517 = vmatprep.subr.mxu0 0.0
    %1518 = vmatpush1.msra.mxu0 0.0
    %1519 = vmatprep.subr.mxu0 0.0
    %1520 = vmatpush1.msra.mxu0 0.0
    %1521 = vmatprep.subr.mxu0 0.0
    %1522 = vmatpush1.msra.mxu0 0.0
    %1523 = vmatprep.subr.mxu0 0.0
    %1524 = vmatpush1.msra.mxu0 0.0
    %1525 = vmatprep.subr.mxu0 0.0
    %1526 = vmatpush1.msra.mxu0 0.0
    %1527 = vmatprep.subr.mxu0 0.0
    %1528 = vmatpush1.msra.mxu0 0.0
    %1529 = vmatprep.subr.mxu0 0.0
    %1530 = vmatpush1.msra.mxu0 0.0
    %1531 = vmatprep.subr.mxu0 0.0
    %1532 = vmatpush1.msra.mxu0 0.0
    %1533 = vmatprep.subr.mxu0 0.0
    %1534 = vmatpush1.msra.mxu0 0.0
    %1535 = vmatprep.subr.mxu0 0.0
    %1536 = vmatpush1.msra.mxu0 0.0
    %1537 = vmatprep.subr.mxu0 0.0
    %1538 = vmatpush1.msra.mxu0 0.0
    %1539 = vmatprep.mubr.f32.mxu0 0.0
    %1540 = vmatmul.mubr.f32.gmra.mrb[0].mxu0 %v1473
    %v1541 = vpop.f32.mrb[0].mxu0
    %v1542 = vadd.f32 0.0, %v1541
    %v1543 = vpop.f32.mrb[0].mxu0
    %1544 = vdwg.mxu0
    %v1546 = vsel %vm1050, %v1397, 0
    %1548 = vmatprep.subr.mxu0 0.0
    %1549 = vmatpush1.msra.mxu0 %v974
    %1550 = vmatprep.subr.mxu0 0.0
    %1551 = vmatpush1.msra.mxu0 0.0
    %1552 = vmatprep.subr.mxu0 0.0
    %1553 = vmatpush1.msra.mxu0 0.0
    %1554 = vmatprep.subr.mxu0 0.0
    %1555 = vmatpush1.msra.mxu0 0.0
    %1556 = vmatprep.subr.mxu0 0.0
    %1557 = vmatpush1.msra.mxu0 0.0
    %1558 = vmatprep.subr.mxu0 0.0
    %1559 = vmatpush1.msra.mxu0 0.0
    %1560 = vmatprep.subr.mxu0 0.0
    %1561 = vmatpush1.msra.mxu0 0.0
    %1562 = vmatprep.subr.mxu0 0.0
    %1563 = vmatpush1.msra.mxu0 0.0
    %1564 = vmatprep.subr.mxu0 0.0
    %1565 = vmatpush1.msra.mxu0 0.0
    %1566 = vmatprep.subr.mxu0 0.0
    %1567 = vmatpush1.msra.mxu0 0.0
    %1568 = vmatprep.subr.mxu0 0.0
    %1569 = vmatpush1.msra.mxu0 0.0
    %1570 = vmatprep.subr.mxu0 0.0
    %1571 = vmatpush1.msra.mxu0 0.0
    %1572 = vmatprep.subr.mxu0 0.0
    %1573 = vmatpush1.msra.mxu0 0.0
    %1574 = vmatprep.subr.mxu0 0.0
    %1575 = vmatpush1.msra.mxu0 0.0
    %1576 = vmatprep.subr.mxu0 0.0
    %1577 = vmatpush1.msra.mxu0 0.0
    %1578 = vmatprep.subr.mxu0 0.0
    %1579 = vmatpush1.msra.mxu0 0.0
    %1580 = vmatprep.subr.mxu0 0.0
    %1581 = vmatpush1.msra.mxu0 0.0
    %1582 = vmatprep.subr.mxu0 0.0
    %1583 = vmatpush1.msra.mxu0 0.0
    %1584 = vmatprep.subr.mxu0 0.0
    %1585 = vmatpush1.msra.mxu0 0.0
    %1586 = vmatprep.subr.mxu0 0.0
    %1587 = vmatpush1.msra.mxu0 0.0
    %1588 = vmatprep.subr.mxu0 0.0
    %1589 = vmatpush1.msra.mxu0 0.0
    %1590 = vmatprep.subr.mxu0 0.0
    %1591 = vmatpush1.msra.mxu0 0.0
    %1592 = vmatprep.subr.mxu0 0.0
    %1593 = vmatpush1.msra.mxu0 0.0
    %1594 = vmatprep.subr.mxu0 0.0
    %1595 = vmatpush1.msra.mxu0 0.0
    %1596 = vmatprep.subr.mxu0 0.0
    %1597 = vmatpush1.msra.mxu0 0.0
    %1598 = vmatprep.subr.mxu0 0.0
    %1599 = vmatpush1.msra.mxu0 0.0
    %1600 = vmatprep.subr.mxu0 0.0
    %1601 = vmatpush1.msra.mxu0 0.0
    %1602 = vmatprep.subr.mxu0 0.0
    %1603 = vmatpush1.msra.mxu0 0.0
    %1604 = vmatprep.subr.mxu0 0.0
    %1605 = vmatpush1.msra.mxu0 0.0
    %1606 = vmatprep.subr.mxu0 0.0
    %1607 = vmatpush1.msra.mxu0 0.0
    %1608 = vmatprep.subr.mxu0 0.0
    %1609 = vmatpush1.msra.mxu0 0.0
    %1610 = vmatprep.subr.mxu0 0.0
    %1611 = vmatpush1.msra.mxu0 0.0
    %1612 = vmatprep.mubr.f32.mxu0 0.0
    %1613 = vmatmul.mubr.f32.gmra.mrb[0].mxu0 %v1546
    %v1614 = vpop.f32.mrb[0].mxu0
    %v1615 = vadd.f32 0.0, %v1614
    %v1616 = vpop.f32.mrb[0].mxu0
    %1617 = vdwg.mxu0
    %v1619 = vsel %vm1050, %v1398, 0
    %1621 = vmatprep.subr.mxu0 0.0
    %1622 = vmatpush1.msra.mxu0 %v1044
    %1623 = vmatprep.subr.mxu0 0.0
    %1624 = vmatpush1.msra.mxu0 0.0
    %1625 = vmatprep.subr.mxu0 0.0
    %1626 = vmatpush1.msra.mxu0 0.0
    %1627 = vmatprep.subr.mxu0 0.0
    %1628 = vmatpush1.msra.mxu0 0.0
    %1629 = vmatprep.subr.mxu0 0.0
    %1630 = vmatpush1.msra.mxu0 0.0
    %1631 = vmatprep.subr.mxu0 0.0
    %1632 = vmatpush1.msra.mxu0 0.0
    %1633 = vmatprep.subr.mxu0 0.0
    %1634 = vmatpush1.msra.mxu0 0.0
    %1635 = vmatprep.subr.mxu0 0.0
    %1636 = vmatpush1.msra.mxu0 0.0
    %1637 = vmatprep.subr.mxu0 0.0
    %1638 = vmatpush1.msra.mxu0 0.0
    %1639 = vmatprep.subr.mxu0 0.0
    %1640 = vmatpush1.msra.mxu0 0.0
    %1641 = vmatprep.subr.mxu0 0.0
    %1642 = vmatpush1.msra.mxu0 0.0
    %1643 = vmatprep.subr.mxu0 0.0
    %1644 = vmatpush1.msra.mxu0 0.0
    %1645 = vmatprep.subr.mxu0 0.0
    %1646 = vmatpush1.msra.mxu0 0.0
    %1647 = vmatprep.subr.mxu0 0.0
    %1648 = vmatpush1.msra.mxu0 0.0
    %1649 = vmatprep.subr.mxu0 0.0
    %1650 = vmatpush1.msra.mxu0 0.0
    %1651 = vmatprep.subr.mxu0 0.0
    %1652 = vmatpush1.msra.mxu0 0.0
    %1653 = vmatprep.subr.mxu0 0.0
    %1654 = vmatpush1.msra.mxu0 0.0
    %1655 = vmatprep.subr.mxu0 0.0
    %1656 = vmatpush1.msra.mxu0 0.0
    %1657 = vmatprep.subr.mxu0 0.0
    %1658 = vmatpush1.msra.mxu0 0.0
    %1659 = vmatprep.subr.mxu0 0.0
    %1660 = vmatpush1.msra.mxu0 0.0
    %1661 = vmatprep.subr.mxu0 0.0
    %1662 = vmatpush1.msra.mxu0 0.0
    %1663 = vmatprep.subr.mxu0 0.0
    %1664 = vmatpush1.msra.mxu0 0.0
    %1665 = vmatprep.subr.mxu0 0.0
    %1666 = vmatpush1.msra.mxu0 0.0
    %1667 = vmatprep.subr.mxu0 0.0
    %1668 = vmatpush1.msra.mxu0 0.0
    %1669 = vmatprep.subr.mxu0 0.0
    %1670 = vmatpush1.msra.mxu0 0.0
    %1671 = vmatprep.subr.mxu0 0.0
    %1672 = vmatpush1.msra.mxu0 0.0
    %1673 = vmatprep.subr.mxu0 0.0
    %1674 = vmatpush1.msra.mxu0 0.0
    %1675 = vmatprep.subr.mxu0 0.0
    %1676 = vmatpush1.msra.mxu0 0.0
    %1677 = vmatprep.subr.mxu0 0.0
    %1678 = vmatpush1.msra.mxu0 0.0
    %1679 = vmatprep.subr.mxu0 0.0
    %1680 = vmatpush1.msra.mxu0 0.0
    %1681 = vmatprep.subr.mxu0 0.0
    %1682 = vmatpush1.msra.mxu0 0.0
    %1683 = vmatprep.subr.mxu0 0.0
    %1684 = vmatpush1.msra.mxu0 0.0
    %1685 = vmatprep.mubr.f32.mxu0 0.0
    %1686 = vmatmul.mubr.f32.gmra.mrb[0].mxu0 %v1619
    %v1687 = vpop.f32.mrb[0].mxu0
    %v1688 = vadd.f32 0.0, %v1687
    %v1689 = vpop.f32.mrb[0].mxu0
    %1690 = vdwg.mxu0
    %v1692 = vsel %vm1050, %v1469, 0
    %1694 = vmatprep.subr.mxu0 0.0
    %1695 = vmatpush1.msra.mxu0 %v110
    %1696 = vmatprep.subr.mxu0 0.0
    %1697 = vmatpush1.msra.mxu0 0.0
    %1698 = vmatprep.subr.mxu0 0.0
    %1699 = vmatpush1.msra.mxu0 0.0
    %1700 = vmatprep.subr.mxu0 0.0
    %1701 = vmatpush1.msra.mxu0 0.0
    %1702 = vmatprep.subr.mxu0 0.0
    %1703 = vmatpush1.msra.mxu0 0.0
    %1704 = vmatprep.subr.mxu0 0.0
    %1705 = vmatpush1.msra.mxu0 0.0
    %1706 = vmatprep.subr.mxu0 0.0
    %1707 = vmatpush1.msra.mxu0 0.0
    %1708 = vmatprep.subr.mxu0 0.0
    %1709 = vmatpush1.msra.mxu0 0.0
    %1710 = vmatprep.subr.mxu0 0.0
    %1711 = vmatpush1.msra.mxu0 0.0
    %1712 = vmatprep.subr.mxu0 0.0
    %1713 = vmatpush1.msra.mxu0 0.0
    %1714 = vmatprep.subr.mxu0 0.0
    %1715 = vmatpush1.msra.mxu0 0.0
    %1716 = vmatprep.subr.mxu0 0.0
    %1717 = vmatpush1.msra.mxu0 0.0
    %1718 = vmatprep.subr.mxu0 0.0
    %1719 = vmatpush1.msra.mxu0 0.0
    %1720 = vmatprep.subr.mxu0 0.0
    %1721 = vmatpush1.msra.mxu0 0.0
    %1722 = vmatprep.subr.mxu0 0.0
    %1723 = vmatpush1.msra.mxu0 0.0
    %1724 = vmatprep.subr.mxu0 0.0
    %1725 = vmatpush1.msra.mxu0 0.0
    %1726 = vmatprep.subr.mxu0 0.0
    %1727 = vmatpush1.msra.mxu0 0.0
    %1728 = vmatprep.subr.mxu0 0.0
    %1729 = vmatpush1.msra.mxu0 0.0
    %1730 = vmatprep.subr.mxu0 0.0
    %1731 = vmatpush1.msra.mxu0 0.0
    %1732 = vmatprep.subr.mxu0 0.0
    %1733 = vmatpush1.msra.mxu0 0.0
    %1734 = vmatprep.subr.mxu0 0.0
    %1735 = vmatpush1.msra.mxu0 0.0
    %1736 = vmatprep.subr.mxu0 0.0
    %1737 = vmatpush1.msra.mxu0 0.0
    %1738 = vmatprep.subr.mxu0 0.0
    %1739 = vmatpush1.msra.mxu0 0.0
    %1740 = vmatprep.subr.mxu0 0.0
    %1741 = vmatpush1.msra.mxu0 0.0
    %1742 = vmatprep.subr.mxu0 0.0
    %1743 = vmatpush1.msra.mxu0 0.0
    %1744 = vmatprep.subr.mxu0 0.0
    %1745 = vmatpush1.msra.mxu0 0.0
    %1746 = vmatprep.subr.mxu0 0.0
    %1747 = vmatpush1.msra.mxu0 0.0
    %1748 = vmatprep.subr.mxu0 0.0
    %1749 = vmatpush1.msra.mxu0 0.0
    %1750 = vmatprep.subr.mxu0 0.0
    %1751 = vmatpush1.msra.mxu0 0.0
    %1752 = vmatprep.subr.mxu0 0.0
    %1753 = vmatpush1.msra.mxu0 0.0
    %1754 = vmatprep.subr.mxu0 0.0
    %1755 = vmatpush1.msra.mxu0 0.0
    %1756 = vmatprep.subr.mxu0 0.0
    %1757 = vmatpush1.msra.mxu0 0.0
    %1758 = vmatprep.mubr.f32.mxu0 0.0
    %1759 = vmatmul.mubr.f32.gmra.mrb[0].mxu0 %v1692
    %v1760 = vpop.f32.mrb[0].mxu0
    %v1761 = vadd.f32 0.0, %v1760
    %v1762 = vpop.f32.mrb[0].mxu0
    %1763 = vdwg.mxu0
    %v1765 = vsel %vm1050, %v1542, 0
    %1767 = vmatprep.subr.mxu0 0.0
    %1768 = vmatpush1.msra.mxu0 %v111
    %1769 = vmatprep.subr.mxu0 0.0
    %1770 = vmatpush1.msra.mxu0 0.0
    %1771 = vmatprep.subr.mxu0 0.0
    %1772 = vmatpush1.msra.mxu0 0.0
    %1773 = vmatprep.subr.mxu0 0.0
    %1774 = vmatpush1.msra.mxu0 0.0
    %1775 = vmatprep.subr.mxu0 0.0
    %1776 = vmatpush1.msra.mxu0 0.0
    %1777 = vmatprep.subr.mxu0 0.0
    %1778 = vmatpush1.msra.mxu0 0.0
    %1779 = vmatprep.subr.mxu0 0.0
    %1780 = vmatpush1.msra.mxu0 0.0
    %1781 = vmatprep.subr.mxu0 0.0
    %1782 = vmatpush1.msra.mxu0 0.0
    %1783 = vmatprep.subr.mxu0 0.0
    %1784 = vmatpush1.msra.mxu0 0.0
    %1785 = vmatprep.subr.mxu0 0.0
    %1786 = vmatpush1.msra.mxu0 0.0
    %1787 = vmatprep.subr.mxu0 0.0
    %1788 = vmatpush1.msra.mxu0 0.0
    %1789 = vmatprep.subr.mxu0 0.0
    %1790 = vmatpush1.msra.mxu0 0.0
    %1791 = vmatprep.subr.mxu0 0.0
    %1792 = vmatpush1.msra.mxu0 0.0
    %1793 = vmatprep.subr.mxu0 0.0
    %1794 = vmatpush1.msra.mxu0 0.0
    %1795 = vmatprep.subr.mxu0 0.0
    %1796 = vmatpush1.msra.mxu0 0.0
    %1797 = vmatprep.subr.mxu0 0.0
    %1798 = vmatpush1.msra.mxu0 0.0
    %1799 = vmatprep.subr.mxu0 0.0
    %1800 = vmatpush1.msra.mxu0 0.0
    %1801 = vmatprep.subr.mxu0 0.0
    %1802 = vmatpush1.msra.mxu0 0.0
    %1803 = vmatprep.subr.mxu0 0.0
    %1804 = vmatpush1.msra.mxu0 0.0
    %1805 = vmatprep.subr.mxu0 0.0
    %1806 = vmatpush1.msra.mxu0 0.0
    %1807 = vmatprep.subr.mxu0 0.0
    %1808 = vmatpush1.msra.mxu0 0.0
    %1809 = vmatprep.subr.mxu0 0.0
    %1810 = vmatpush1.msra.mxu0 0.0
    %1811 = vmatprep.subr.mxu0 0.0
    %1812 = vmatpush1.msra.mxu0 0.0
    %1813 = vmatprep.subr.mxu0 0.0
    %1814 = vmatpush1.msra.mxu0 0.0
    %1815 = vmatprep.subr.mxu0 0.0
    %1816 = vmatpush1.msra.mxu0 0.0
    %1817 = vmatprep.subr.mxu0 0.0
    %1818 = vmatpush1.msra.mxu0 0.0
    %1819 = vmatprep.subr.mxu0 0.0
    %1820 = vmatpush1.msra.mxu0 0.0
    %1821 = vmatprep.subr.mxu0 0.0
    %1822 = vmatpush1.msra.mxu0 0.0
    %1823 = vmatprep.subr.mxu0 0.0
    %1824 = vmatpush1.msra.mxu0 0.0
    %1825 = vmatprep.subr.mxu0 0.0
    %1826 = vmatpush1.msra.mxu0 0.0
    %1827 = vmatprep.subr.mxu0 0.0
    %1828 = vmatpush1.msra.mxu0 0.0
    %1829 = vmatprep.subr.mxu0 0.0
    %1830 = vmatpush1.msra.mxu0 0.0
    %1831 = vmatprep.mubr.f32.mxu0 0.0
    %1832 = vmatmul.mubr.f32.gmra.mrb[0].mxu0 %v1765
    %v1833 = vpop.f32.mrb[0].mxu0
    %v1834 = vadd.f32 0.0, %v1833
    %v1835 = vpop.f32.mrb[0].mxu0
    %1836 = vdwg.mxu0
    %v1838 = vsel %vm1050, %v1615, 0
    %1840 = vmatprep.subr.mxu0 0.0
    %1841 = vmatpush1.msra.mxu0 %v112
    %1842 = vmatprep.subr.mxu0 0.0
    %1843 = vmatpush1.msra.mxu0 0.0
    %1844 = vmatprep.subr.mxu0 0.0
    %1845 = vmatpush1.msra.mxu0 0.0
    %1846 = vmatprep.subr.mxu0 0.0
    %1847 = vmatpush1.msra.mxu0 0.0
    %1848 = vmatprep.subr.mxu0 0.0
    %1849 = vmatpush1.msra.mxu0 0.0
    %1850 = vmatprep.subr.mxu0 0.0
    %1851 = vmatpush1.msra.mxu0 0.0
    %1852 = vmatprep.subr.mxu0 0.0
    %1853 = vmatpush1.msra.mxu0 0.0
    %1854 = vmatprep.subr.mxu0 0.0
    %1855 = vmatpush1.msra.mxu0 0.0
    %1856 = vmatprep.subr.mxu0 0.0
    %1857 = vmatpush1.msra.mxu0 0.0
    %1858 = vmatprep.subr.mxu0 0.0
    %1859 = vmatpush1.msra.mxu0 0.0
    %1860 = vmatprep.subr.mxu0 0.0
    %1861 = vmatpush1.msra.mxu0 0.0
    %1862 = vmatprep.subr.mxu0 0.0
    %1863 = vmatpush1.msra.mxu0 0.0
    %1864 = vmatprep.subr.mxu0 0.0
    %1865 = vmatpush1.msra.mxu0 0.0
    %1866 = vmatprep.subr.mxu0 0.0
    %1867 = vmatpush1.msra.mxu0 0.0
    %1868 = vmatprep.subr.mxu0 0.0
    %1869 = vmatpush1.msra.mxu0 0.0
    %1870 = vmatprep.subr.mxu0 0.0
    %1871 = vmatpush1.msra.mxu0 0.0
    %1872 = vmatprep.subr.mxu0 0.0
    %1873 = vmatpush1.msra.mxu0 0.0
    %1874 = vmatprep.subr.mxu0 0.0
    %1875 = vmatpush1.msra.mxu0 0.0
    %1876 = vmatprep.subr.mxu0 0.0
    %1877 = vmatpush1.msra.mxu0 0.0
    %1878 = vmatprep.subr.mxu0 0.0
    %1879 = vmatpush1.msra.mxu0 0.0
    %1880 = vmatprep.subr.mxu0 0.0
    %1881 = vmatpush1.msra.mxu0 0.0
    %1882 = vmatprep.subr.mxu0 0.0
    %1883 = vmatpush1.msra.mxu0 0.0
    %1884 = vmatprep.subr.mxu0 0.0
    %1885 = vmatpush1.msra.mxu0 0.0
    %1886 = vmatprep.subr.mxu0 0.0
    %1887 = vmatpush1.msra.mxu0 0.0
    %1888 = vmatprep.subr.mxu0 0.0
    %1889 = vmatpush1.msra.mxu0 0.0
    %1890 = vmatprep.subr.mxu0 0.0
    %1891 = vmatpush1.msra.mxu0 0.0
    %1892 = vmatprep.subr.mxu0 0.0
    %1893 = vmatpush1.msra.mxu0 0.0
    %1894 = vmatprep.subr.mxu0 0.0
    %1895 = vmatpush1.msra.mxu0 0.0
    %1896 = vmatprep.subr.mxu0 0.0
    %1897 = vmatpush1.msra.mxu0 0.0
    %1898 = vmatprep.subr.mxu0 0.0
    %1899 = vmatpush1.msra.mxu0 0.0
    %1900 = vmatprep.subr.mxu0 0.0
    %1901 = vmatpush1.msra.mxu0 0.0
    %1902 = vmatprep.subr.mxu0 0.0
    %1903 = vmatpush1.msra.mxu0 0.0
    %1904 = vmatprep.mubr.f32.mxu0 0.0
    %1905 = vmatmul.mubr.f32.gmra.mrb[0].mxu0 %v1838
    %v1906 = vpop.f32.mrb[0].mxu0
    %v1907 = vadd.f32 0.0, %v1906
    %v1908 = vpop.f32.mrb[0].mxu0
    %1909 = vdwg.mxu0
    %v1911 = vsel %vm1050, %v1688, 0
    %1913 = vmatprep.subr.mxu0 0.0
    %1914 = vmatpush1.msra.mxu0 %v113
    %1915 = vmatprep.subr.mxu0 0.0
    %1916 = vmatpush1.msra.mxu0 0.0
    %1917 = vmatprep.subr.mxu0 0.0
    %1918 = vmatpush1.msra.mxu0 0.0
    %1919 = vmatprep.subr.mxu0 0.0
    %1920 = vmatpush1.msra.mxu0 0.0
    %1921 = vmatprep.subr.mxu0 0.0
    %1922 = vmatpush1.msra.mxu0 0.0
    %1923 = vmatprep.subr.mxu0 0.0
    %1924 = vmatpush1.msra.mxu0 0.0
    %1925 = vmatprep.subr.mxu0 0.0
    %1926 = vmatpush1.msra.mxu0 0.0
    %1927 = vmatprep.subr.mxu0 0.0
    %1928 = vmatpush1.msra.mxu0 0.0
    %1929 = vmatprep.subr.mxu0 0.0
    %1930 = vmatpush1.msra.mxu0 0.0
    %1931 = vmatprep.subr.mxu0 0.0
    %1932 = vmatpush1.msra.mxu0 0.0
    %1933 = vmatprep.subr.mxu0 0.0
    %1934 = vmatpush1.msra.mxu0 0.0
    %1935 = vmatprep.subr.mxu0 0.0
    %1936 = vmatpush1.msra.mxu0 0.0
    %1937 = vmatprep.subr.mxu0 0.0
    %1938 = vmatpush1.msra.mxu0 0.0
    %1939 = vmatprep.subr.mxu0 0.0
    %1940 = vmatpush1.msra.mxu0 0.0
    %1941 = vmatprep.subr.mxu0 0.0
    %1942 = vmatpush1.msra.mxu0 0.0
    %1943 = vmatprep.subr.mxu0 0.0
    %1944 = vmatpush1.msra.mxu0 0.0
    %1945 = vmatprep.subr.mxu0 0.0
    %1946 = vmatpush1.msra.mxu0 0.0
    %1947 = vmatprep.subr.mxu0 0.0
    %1948 = vmatpush1.msra.mxu0 0.0
    %1949 = vmatprep.subr.mxu0 0.0
    %1950 = vmatpush1.msra.mxu0 0.0
    %1951 = vmatprep.subr.mxu0 0.0
    %1952 = vmatpush1.msra.mxu0 0.0
    %1953 = vmatprep.subr.mxu0 0.0
    %1954 = vmatpush1.msra.mxu0 0.0
    %1955 = vmatprep.subr.mxu0 0.0
    %1956 = vmatpush1.msra.mxu0 0.0
    %1957 = vmatprep.subr.mxu0 0.0
    %1958 = vmatpush1.msra.mxu0 0.0
    %1959 = vmatprep.subr.mxu0 0.0
    %1960 = vmatpush1.msra.mxu0 0.0
    %1961 = vmatprep.subr.mxu0 0.0
    %1962 = vmatpush1.msra.mxu0 0.0
    %1963 = vmatprep.subr.mxu0 0.0
    %1964 = vmatpush1.msra.mxu0 0.0
    %1965 = vmatprep.subr.mxu0 0.0
    %1966 = vmatpush1.msra.mxu0 0.0
    %1967 = vmatprep.subr.mxu0 0.0
    %1968 = vmatpush1.msra.mxu0 0.0
    %1969 = vmatprep.subr.mxu0 0.0
    %1970 = vmatpush1.msra.mxu0 0.0
    %1971 = vmatprep.subr.mxu0 0.0
    %1972 = vmatpush1.msra.mxu0 0.0
    %1973 = vmatprep.subr.mxu0 0.0
    %1974 = vmatpush1.msra.mxu0 0.0
    %1975 = vmatprep.subr.mxu0 0.0
    %1976 = vmatpush1.msra.mxu0 0.0
    %1977 = vmatprep.mubr.f32.mxu0 0.0
    %1978 = vmatmul.mubr.f32.gmra.mrb[0].mxu0 %v1911
    %v1979 = vpop.f32.mrb[0].mxu0
    %v1980 = vadd.f32 0.0, %v1979
    %v1981 = vpop.f32.mrb[0].mxu0
    %1982 = vdwg.mxu0
    %v1983 = vsel %vm151, %v1761, 0.0
    %v1984 = vsel %vm151, %v1834, 0.0
    %v1985 = vadd.f32 %v1983, %v1984
    %v1986 = vsel %vm151, %v1907, 0.0
    %v1987 = vadd.f32 %v1985, %v1986
    %v1988 = vsel %vm151, %v1980, 0.0
    %v1989 = vadd.f32 %v1987, %v1988
    %v1991 = vlaneseq
    %v1992 = vshrl.u32 %v1991, 7
    %v1993 = vsub.s32 0, %v1992
    %v1994 = vrot.slane %v126, %v1993
    %v1996 = vadd.f32 %v1989, %v1994
    %v1998 = vsel %vm151, %v61, 0
    %2000 = vmatprep.subr.mxu0 0.0
    %2001 = vmatpush1.msra.mxu0 %v62
    %2002 = vmatprep.subr.mxu0 0.0
    %2003 = vmatpush1.msra.mxu0 %v63
    %2004 = vmatprep.subr.mxu0 0.0
    %2005 = vmatpush1.msra.mxu0 %v64
    %2006 = vmatprep.subr.mxu0 0.0
    %2007 = vmatpush1.msra.mxu0 %v65
    %2008 = vmatprep.subr.mxu0 0.0
    %2009 = vmatpush1.msra.mxu0 0.0
    %2010 = vmatprep.subr.mxu0 0.0
    %2011 = vmatpush1.msra.mxu0 0.0
    %2012 = vmatprep.subr.mxu0 0.0
    %2013 = vmatpush1.msra.mxu0 0.0
    %2014 = vmatprep.subr.mxu0 0.0
    %2015 = vmatpush1.msra.mxu0 0.0
    %2016 = vmatprep.subr.mxu0 0.0
    %2017 = vmatpush1.msra.mxu0 0.0
    %2018 = vmatprep.subr.mxu0 0.0
    %2019 = vmatpush1.msra.mxu0 0.0
    %2020 = vmatprep.subr.mxu0 0.0
    %2021 = vmatpush1.msra.mxu0 0.0
    %2022 = vmatprep.subr.mxu0 0.0
    %2023 = vmatpush1.msra.mxu0 0.0
    %2024 = vmatprep.subr.mxu0 0.0
    %2025 = vmatpush1.msra.mxu0 0.0
    %2026 = vmatprep.subr.mxu0 0.0
    %2027 = vmatpush1.msra.mxu0 0.0
    %2028 = vmatprep.subr.mxu0 0.0
    %2029 = vmatpush1.msra.mxu0 0.0
    %2030 = vmatprep.subr.mxu0 0.0
    %2031 = vmatpush1.msra.mxu0 0.0
    %2032 = vmatprep.subr.mxu0 0.0
    %2033 = vmatpush1.msra.mxu0 0.0
    %2034 = vmatprep.subr.mxu0 0.0
    %2035 = vmatpush1.msra.mxu0 0.0
    %2036 = vmatprep.subr.mxu0 0.0
    %2037 = vmatpush1.msra.mxu0 0.0
    %2038 = vmatprep.subr.mxu0 0.0
    %2039 = vmatpush1.msra.mxu0 0.0
    %2040 = vmatprep.subr.mxu0 0.0
    %2041 = vmatpush1.msra.mxu0 0.0
    %2042 = vmatprep.subr.mxu0 0.0
    %2043 = vmatpush1.msra.mxu0 0.0
    %2044 = vmatprep.subr.mxu0 0.0
    %2045 = vmatpush1.msra.mxu0 0.0
    %2046 = vmatprep.subr.mxu0 0.0
    %2047 = vmatpush1.msra.mxu0 0.0
    %2048 = vmatprep.subr.mxu0 0.0
    %2049 = vmatpush1.msra.mxu0 0.0
    %2050 = vmatprep.subr.mxu0 0.0
    %2051 = vmatpush1.msra.mxu0 0.0
    %2052 = vmatprep.subr.mxu0 0.0
    %2053 = vmatpush1.msra.mxu0 0.0
    %2054 = vmatprep.subr.mxu0 0.0
    %2055 = vmatpush1.msra.mxu0 0.0
    %2056 = vmatprep.subr.mxu0 0.0
    %2057 = vmatpush1.msra.mxu0 0.0
    %2058 = vmatprep.subr.mxu0 0.0
    %2059 = vmatpush1.msra.mxu0 0.0
    %2060 = vmatprep.subr.mxu0 0.0
    %2061 = vmatpush1.msra.mxu0 0.0
    %2062 = vmatprep.subr.mxu0 0.0
    %2063 = vmatpush1.msra.mxu0 0.0
    %2064 = vmatprep.mubr.f32.mxu0 0.0
    %2065 = vmatmul.mubr.f32.gmra.mrb[0].mxu0 %v1998
    %v2066 = vpop.f32.mrb[0].mxu0
    %v2067 = vadd.f32 %v134, %v2066
    %v2068 = vpop.f32.mrb[0].mxu0
    %2069 = vdwg.mxu0
    %2070 = vmatprep.subr.mxu0 0.0
    %2071 = vmatpush1.msra.mxu0 %v66
    %2072 = vmatprep.subr.mxu0 0.0
    %2073 = vmatpush1.msra.mxu0 %v67
    %2074 = vmatprep.subr.mxu0 0.0
    %2075 = vmatpush1.msra.mxu0 %v68
    %2076 = vmatprep.subr.mxu0 0.0
    %2077 = vmatpush1.msra.mxu0 %v69
    %2078 = vmatprep.subr.mxu0 0.0
    %2079 = vmatpush1.msra.mxu0 0.0
    %2080 = vmatprep.subr.mxu0 0.0
    %2081 = vmatpush1.msra.mxu0 0.0
    %2082 = vmatprep.subr.mxu0 0.0
    %2083 = vmatpush1.msra.mxu0 0.0
    %2084 = vmatprep.subr.mxu0 0.0
    %2085 = vmatpush1.msra.mxu0 0.0
    %2086 = vmatprep.subr.mxu0 0.0
    %2087 = vmatpush1.msra.mxu0 0.0
    %2088 = vmatprep.subr.mxu0 0.0
    %2089 = vmatpush1.msra.mxu0 0.0
    %2090 = vmatprep.subr.mxu0 0.0
    %2091 = vmatpush1.msra.mxu0 0.0
    %2092 = vmatprep.subr.mxu0 0.0
    %2093 = vmatpush1.msra.mxu0 0.0
    %2094 = vmatprep.subr.mxu0 0.0
    %2095 = vmatpush1.msra.mxu0 0.0
    %2096 = vmatprep.subr.mxu0 0.0
    %2097 = vmatpush1.msra.mxu0 0.0
    %2098 = vmatprep.subr.mxu0 0.0
    %2099 = vmatpush1.msra.mxu0 0.0
    %2100 = vmatprep.subr.mxu0 0.0
    %2101 = vmatpush1.msra.mxu0 0.0
    %2102 = vmatprep.subr.mxu0 0.0
    %2103 = vmatpush1.msra.mxu0 0.0
    %2104 = vmatprep.subr.mxu0 0.0
    %2105 = vmatpush1.msra.mxu0 0.0
    %2106 = vmatprep.subr.mxu0 0.0
    %2107 = vmatpush1.msra.mxu0 0.0
    %2108 = vmatprep.subr.mxu0 0.0
    %2109 = vmatpush1.msra.mxu0 0.0
    %2110 = vmatprep.subr.mxu0 0.0
    %2111 = vmatpush1.msra.mxu0 0.0
    %2112 = vmatprep.subr.mxu0 0.0
    %2113 = vmatpush1.msra.mxu0 0.0
    %2114 = vmatprep.subr.mxu0 0.0
    %2115 = vmatpush1.msra.mxu0 0.0
    %2116 = vmatprep.subr.mxu0 0.0
    %2117 = vmatpush1.msra.mxu0 0.0
    %2118 = vmatprep.subr.mxu0 0.0
    %2119 = vmatpush1.msra.mxu0 0.0
    %2120 = vmatprep.subr.mxu0 0.0
    %2121 = vmatpush1.msra.mxu0 0.0
    %2122 = vmatprep.subr.mxu0 0.0
    %2123 = vmatpush1.msra.mxu0 0.0
    %2124 = vmatprep.subr.mxu0 0.0
    %2125 = vmatpush1.msra.mxu0 0.0
    %2126 = vmatprep.subr.mxu0 0.0
    %2127 = vmatpush1.msra.mxu0 0.0
    %2128 = vmatprep.subr.mxu0 0.0
    %2129 = vmatpush1.msra.mxu0 0.0
    %2130 = vmatprep.subr.mxu0 0.0
    %2131 = vmatpush1.msra.mxu0 0.0
    %2132 = vmatprep.subr.mxu0 0.0
    %2133 = vmatpush1.msra.mxu0 0.0
    %2134 = vmatprep.mubr.f32.mxu0 0.0
    %2135 = vmatmul.mubr.f32.gmra.mrb[0].mxu0 %v1998
    %v2136 = vpop.f32.mrb[0].mxu0
    %v2137 = vadd.f32 %v138, %v2136
    %v2138 = vpop.f32.mrb[0].mxu0
    %2139 = vdwg.mxu0
    %2140 = vmatprep.subr.mxu0 0.0
    %2141 = vmatpush1.msra.mxu0 %v70
    %2142 = vmatprep.subr.mxu0 0.0
    %2143 = vmatpush1.msra.mxu0 %v71
    %2144 = vmatprep.subr.mxu0 0.0
    %2145 = vmatpush1.msra.mxu0 %v72
    %2146 = vmatprep.subr.mxu0 0.0
    %2147 = vmatpush1.msra.mxu0 %v73
    %2148 = vmatprep.subr.mxu0 0.0
    %2149 = vmatpush1.msra.mxu0 0.0
    %2150 = vmatprep.subr.mxu0 0.0
    %2151 = vmatpush1.msra.mxu0 0.0
    %2152 = vmatprep.subr.mxu0 0.0
    %2153 = vmatpush1.msra.mxu0 0.0
    %2154 = vmatprep.subr.mxu0 0.0
    %2155 = vmatpush1.msra.mxu0 0.0
    %2156 = vmatprep.subr.mxu0 0.0
    %2157 = vmatpush1.msra.mxu0 0.0
    %2158 = vmatprep.subr.mxu0 0.0
    %2159 = vmatpush1.msra.mxu0 0.0
    %2160 = vmatprep.subr.mxu0 0.0
    %2161 = vmatpush1.msra.mxu0 0.0
    %2162 = vmatprep.subr.mxu0 0.0
    %2163 = vmatpush1.msra.mxu0 0.0
    %2164 = vmatprep.subr.mxu0 0.0
    %2165 = vmatpush1.msra.mxu0 0.0
    %2166 = vmatprep.subr.mxu0 0.0
    %2167 = vmatpush1.msra.mxu0 0.0
    %2168 = vmatprep.subr.mxu0 0.0
    %2169 = vmatpush1.msra.mxu0 0.0
    %2170 = vmatprep.subr.mxu0 0.0
    %2171 = vmatpush1.msra.mxu0 0.0
    %2172 = vmatprep.subr.mxu0 0.0
    %2173 = vmatpush1.msra.mxu0 0.0
    %2174 = vmatprep.subr.mxu0 0.0
    %2175 = vmatpush1.msra.mxu0 0.0
    %2176 = vmatprep.subr.mxu0 0.0
    %2177 = vmatpush1.msra.mxu0 0.0
    %2178 = vmatprep.subr.mxu0 0.0
    %2179 = vmatpush1.msra.mxu0 0.0
    %2180 = vmatprep.subr.mxu0 0.0
    %2181 = vmatpush1.msra.mxu0 0.0
    %2182 = vmatprep.subr.mxu0 0.0
    %2183 = vmatpush1.msra.mxu0 0.0
    %2184 = vmatprep.subr.mxu0 0.0
    %2185 = vmatpush1.msra.mxu0 0.0
    %2186 = vmatprep.subr.mxu0 0.0
    %2187 = vmatpush1.msra.mxu0 0.0
    %2188 = vmatprep.subr.mxu0 0.0
    %2189 = vmatpush1.msra.mxu0 0.0
    %2190 = vmatprep.subr.mxu0 0.0
    %2191 = vmatpush1.msra.mxu0 0.0
    %2192 = vmatprep.subr.mxu0 0.0
    %2193 = vmatpush1.msra.mxu0 0.0
    %2194 = vmatprep.subr.mxu0 0.0
    %2195 = vmatpush1.msra.mxu0 0.0
    %2196 = vmatprep.subr.mxu0 0.0
    %2197 = vmatpush1.msra.mxu0 0.0
    %2198 = vmatprep.subr.mxu0 0.0
    %2199 = vmatpush1.msra.mxu0 0.0
    %2200 = vmatprep.subr.mxu0 0.0
    %2201 = vmatpush1.msra.mxu0 0.0
    %2202 = vmatprep.subr.mxu0 0.0
    %2203 = vmatpush1.msra.mxu0 0.0
    %2204 = vmatprep.mubr.f32.mxu0 0.0
    %2205 = vmatmul.mubr.f32.gmra.mrb[0].mxu0 %v1998
    %v2206 = vpop.f32.mrb[0].mxu0
    %v2207 = vadd.f32 %v142, %v2206
    %v2208 = vpop.f32.mrb[0].mxu0
    %2209 = vdwg.mxu0
    %2210 = vmatprep.subr.mxu0 0.0
    %2211 = vmatpush1.msra.mxu0 %v74
    %2212 = vmatprep.subr.mxu0 0.0
    %2213 = vmatpush1.msra.mxu0 %v75
    %2214 = vmatprep.subr.mxu0 0.0
    %2215 = vmatpush1.msra.mxu0 %v76
    %2216 = vmatprep.subr.mxu0 0.0
    %2217 = vmatpush1.msra.mxu0 %v77
    %2218 = vmatprep.subr.mxu0 0.0
    %2219 = vmatpush1.msra.mxu0 0.0
    %2220 = vmatprep.subr.mxu0 0.0
    %2221 = vmatpush1.msra.mxu0 0.0
    %2222 = vmatprep.subr.mxu0 0.0
    %2223 = vmatpush1.msra.mxu0 0.0
    %2224 = vmatprep.subr.mxu0 0.0
    %2225 = vmatpush1.msra.mxu0 0.0
    %2226 = vmatprep.subr.mxu0 0.0
    %2227 = vmatpush1.msra.mxu0 0.0
    %2228 = vmatprep.subr.mxu0 0.0
    %2229 = vmatpush1.msra.mxu0 0.0
    %2230 = vmatprep.subr.mxu0 0.0
    %2231 = vmatpush1.msra.mxu0 0.0
    %2232 = vmatprep.subr.mxu0 0.0
    %2233 = vmatpush1.msra.mxu0 0.0
    %2234 = vmatprep.subr.mxu0 0.0
    %2235 = vmatpush1.msra.mxu0 0.0
    %2236 = vmatprep.subr.mxu0 0.0
    %2237 = vmatpush1.msra.mxu0 0.0
    %2238 = vmatprep.subr.mxu0 0.0
    %2239 = vmatpush1.msra.mxu0 0.0
    %2240 = vmatprep.subr.mxu0 0.0
    %2241 = vmatpush1.msra.mxu0 0.0
    %2242 = vmatprep.subr.mxu0 0.0
    %2243 = vmatpush1.msra.mxu0 0.0
    %2244 = vmatprep.subr.mxu0 0.0
    %2245 = vmatpush1.msra.mxu0 0.0
    %2246 = vmatprep.subr.mxu0 0.0
    %2247 = vmatpush1.msra.mxu0 0.0
    %2248 = vmatprep.subr.mxu0 0.0
    %2249 = vmatpush1.msra.mxu0 0.0
    %2250 = vmatprep.subr.mxu0 0.0
    %2251 = vmatpush1.msra.mxu0 0.0
    %2252 = vmatprep.subr.mxu0 0.0
    %2253 = vmatpush1.msra.mxu0 0.0
    %2254 = vmatprep.subr.mxu0 0.0
    %2255 = vmatpush1.msra.mxu0 0.0
    %2256 = vmatprep.subr.mxu0 0.0
    %2257 = vmatpush1.msra.mxu0 0.0
    %2258 = vmatprep.subr.mxu0 0.0
    %2259 = vmatpush1.msra.mxu0 0.0
    %2260 = vmatprep.subr.mxu0 0.0
    %2261 = vmatpush1.msra.mxu0 0.0
    %2262 = vmatprep.subr.mxu0 0.0
    %2263 = vmatpush1.msra.mxu0 0.0
    %2264 = vmatprep.subr.mxu0 0.0
    %2265 = vmatpush1.msra.mxu0 0.0
    %2266 = vmatprep.subr.mxu0 0.0
    %2267 = vmatpush1.msra.mxu0 0.0
    %2268 = vmatprep.subr.mxu0 0.0
    %2269 = vmatpush1.msra.mxu0 0.0
    %2270 = vmatprep.subr.mxu0 0.0
    %2271 = vmatpush1.msra.mxu0 0.0
    %2272 = vmatprep.subr.mxu0 0.0
    %2273 = vmatpush1.msra.mxu0 0.0
    %2274 = vmatprep.mubr.f32.mxu0 0.0
    %2275 = vmatmul.mubr.f32.gmra.mrb[0].mxu0 %v1998
    %v2276 = vpop.f32.mrb[0].mxu0
    %v2277 = vadd.f32 %v146, %v2276
    %v2278 = vpop.f32.mrb[0].mxu0
    %2279 = vdwg.mxu0
    %v2280 = vmul.f32 %v2067, 0.25
    %v2281 = vmul.f32 %v2137, 0.25
    %v2282 = vmul.f32 %v2207, 0.25
    %v2283 = vmul.f32 %v2277, 0.25
    %2284 = vmatprep.subr.mxu0 0.0
    %2285 = vmatpush1.msra.mxu0 %v78
    %2286 = vmatprep.subr.mxu0 0.0
    %2287 = vmatpush1.msra.mxu0 %v79
    %2288 = vmatprep.subr.mxu0 0.0
    %2289 = vmatpush1.msra.mxu0 %v80
    %2290 = vmatprep.subr.mxu0 0.0
    %2291 = vmatpush1.msra.mxu0 %v81
    %2292 = vmatprep.subr.mxu0 0.0
    %2293 = vmatpush1.msra.mxu0 0.0
    %2294 = vmatprep.subr.mxu0 0.0
    %2295 = vmatpush1.msra.mxu0 0.0
    %2296 = vmatprep.subr.mxu0 0.0
    %2297 = vmatpush1.msra.mxu0 0.0
    %2298 = vmatprep.subr.mxu0 0.0
    %2299 = vmatpush1.msra.mxu0 0.0
    %2300 = vmatprep.subr.mxu0 0.0
    %2301 = vmatpush1.msra.mxu0 0.0
    %2302 = vmatprep.subr.mxu0 0.0
    %2303 = vmatpush1.msra.mxu0 0.0
    %2304 = vmatprep.subr.mxu0 0.0
    %2305 = vmatpush1.msra.mxu0 0.0
    %2306 = vmatprep.subr.mxu0 0.0
    %2307 = vmatpush1.msra.mxu0 0.0
    %2308 = vmatprep.subr.mxu0 0.0
    %2309 = vmatpush1.msra.mxu0 0.0
    %2310 = vmatprep.subr.mxu0 0.0
    %2311 = vmatpush1.msra.mxu0 0.0
    %2312 = vmatprep.subr.mxu0 0.0
    %2313 = vmatpush1.msra.mxu0 0.0
    %2314 = vmatprep.subr.mxu0 0.0
    %2315 = vmatpush1.msra.mxu0 0.0
    %2316 = vmatprep.subr.mxu0 0.0
    %2317 = vmatpush1.msra.mxu0 0.0
    %2318 = vmatprep.subr.mxu0 0.0
    %2319 = vmatpush1.msra.mxu0 0.0
    %2320 = vmatprep.subr.mxu0 0.0
    %2321 = vmatpush1.msra.mxu0 0.0
    %2322 = vmatprep.subr.mxu0 0.0
    %2323 = vmatpush1.msra.mxu0 0.0
    %2324 = vmatprep.subr.mxu0 0.0
    %2325 = vmatpush1.msra.mxu0 0.0
    %2326 = vmatprep.subr.mxu0 0.0
    %2327 = vmatpush1.msra.mxu0 0.0
    %2328 = vmatprep.subr.mxu0 0.0
    %2329 = vmatpush1.msra.mxu0 0.0
    %2330 = vmatprep.subr.mxu0 0.0
    %2331 = vmatpush1.msra.mxu0 0.0
    %2332 = vmatprep.subr.mxu0 0.0
    %2333 = vmatpush1.msra.mxu0 0.0
    %2334 = vmatprep.subr.mxu0 0.0
    %2335 = vmatpush1.msra.mxu0 0.0
    %2336 = vmatprep.subr.mxu0 0.0
    %2337 = vmatpush1.msra.mxu0 0.0
    %2338 = vmatprep.subr.mxu0 0.0
    %2339 = vmatpush1.msra.mxu0 0.0
    %2340 = vmatprep.subr.mxu0 0.0
    %2341 = vmatpush1.msra.mxu0 0.0
    %2342 = vmatprep.subr.mxu0 0.0
    %2343 = vmatpush1.msra.mxu0 0.0
    %2344 = vmatprep.subr.mxu0 0.0
    %2345 = vmatpush1.msra.mxu0 0.0
    %2346 = vmatprep.subr.mxu0 0.0
    %2347 = vmatpush1.msra.mxu0 0.0
    %2348 = vmatprep.mubr.f32.mxu0 0.0
    %2349 = vmatmul.mubr.f32.gmra.mrb[0].mxu0 %v1998
    %v2350 = vpop.f32.mrb[0].mxu0
    %v2351 = vadd.f32 %v446, %v2350
    %v2352 = vpop.f32.mrb[0].mxu0
    %2353 = vdwg.mxu0
    %2354 = vmatprep.subr.mxu0 0.0
    %2355 = vmatpush1.msra.mxu0 %v82
    %2356 = vmatprep.subr.mxu0 0.0
    %2357 = vmatpush1.msra.mxu0 %v83
    %2358 = vmatprep.subr.mxu0 0.0
    %2359 = vmatpush1.msra.mxu0 %v84
    %2360 = vmatprep.subr.mxu0 0.0
    %2361 = vmatpush1.msra.mxu0 %v85
    %2362 = vmatprep.subr.mxu0 0.0
    %2363 = vmatpush1.msra.mxu0 0.0
    %2364 = vmatprep.subr.mxu0 0.0
    %2365 = vmatpush1.msra.mxu0 0.0
    %2366 = vmatprep.subr.mxu0 0.0
    %2367 = vmatpush1.msra.mxu0 0.0
    %2368 = vmatprep.subr.mxu0 0.0
    %2369 = vmatpush1.msra.mxu0 0.0
    %2370 = vmatprep.subr.mxu0 0.0
    %2371 = vmatpush1.msra.mxu0 0.0
    %2372 = vmatprep.subr.mxu0 0.0
    %2373 = vmatpush1.msra.mxu0 0.0
    %2374 = vmatprep.subr.mxu0 0.0
    %2375 = vmatpush1.msra.mxu0 0.0
    %2376 = vmatprep.subr.mxu0 0.0
    %2377 = vmatpush1.msra.mxu0 0.0
    %2378 = vmatprep.subr.mxu0 0.0
    %2379 = vmatpush1.msra.mxu0 0.0
    %2380 = vmatprep.subr.mxu0 0.0
    %2381 = vmatpush1.msra.mxu0 0.0
    %2382 = vmatprep.subr.mxu0 0.0
    %2383 = vmatpush1.msra.mxu0 0.0
    %2384 = vmatprep.subr.mxu0 0.0
    %2385 = vmatpush1.msra.mxu0 0.0
    %2386 = vmatprep.subr.mxu0 0.0
    %2387 = vmatpush1.msra.mxu0 0.0
    %2388 = vmatprep.subr.mxu0 0.0
    %2389 = vmatpush1.msra.mxu0 0.0
    %2390 = vmatprep.subr.mxu0 0.0
    %2391 = vmatpush1.msra.mxu0 0.0
    %2392 = vmatprep.subr.mxu0 0.0
    %2393 = vmatpush1.msra.mxu0 0.0
    %2394 = vmatprep.subr.mxu0 0.0
    %2395 = vmatpush1.msra.mxu0 0.0
    %2396 = vmatprep.subr.mxu0 0.0
    %2397 = vmatpush1.msra.mxu0 0.0
    %2398 = vmatprep.subr.mxu0 0.0
    %2399 = vmatpush1.msra.mxu0 0.0
    %2400 = vmatprep.subr.mxu0 0.0
    %2401 = vmatpush1.msra.mxu0 0.0
    %2402 = vmatprep.subr.mxu0 0.0
    %2403 = vmatpush1.msra.mxu0 0.0
    %2404 = vmatprep.subr.mxu0 0.0
    %2405 = vmatpush1.msra.mxu0 0.0
    %2406 = vmatprep.subr.mxu0 0.0
    %2407 = vmatpush1.msra.mxu0 0.0
    %2408 = vmatprep.subr.mxu0 0.0
    %2409 = vmatpush1.msra.mxu0 0.0
    %2410 = vmatprep.subr.mxu0 0.0
    %2411 = vmatpush1.msra.mxu0 0.0
    %2412 = vmatprep.subr.mxu0 0.0
    %2413 = vmatpush1.msra.mxu0 0.0
    %2414 = vmatprep.subr.mxu0 0.0
    %2415 = vmatpush1.msra.mxu0 0.0
    %2416 = vmatprep.subr.mxu0 0.0
    %2417 = vmatpush1.msra.mxu0 0.0
    %2418 = vmatprep.mubr.f32.mxu0 0.0
    %2419 = vmatmul.mubr.f32.gmra.mrb[0].mxu0 %v1998
    %v2420 = vpop.f32.mrb[0].mxu0
    %v2421 = vadd.f32 %v450, %v2420
    %v2422 = vpop.f32.mrb[0].mxu0
    %2423 = vdwg.mxu0
    %2424 = vmatprep.subr.mxu0 0.0
    %2425 = vmatpush1.msra.mxu0 %v86
    %2426 = vmatprep.subr.mxu0 0.0
    %2427 = vmatpush1.msra.mxu0 %v87
    %2428 = vmatprep.subr.mxu0 0.0
    %2429 = vmatpush1.msra.mxu0 %v88
    %2430 = vmatprep.subr.mxu0 0.0
    %2431 = vmatpush1.msra.mxu0 %v89
    %2432 = vmatprep.subr.mxu0 0.0
    %2433 = vmatpush1.msra.mxu0 0.0
    %2434 = vmatprep.subr.mxu0 0.0
    %2435 = vmatpush1.msra.mxu0 0.0
    %2436 = vmatprep.subr.mxu0 0.0
    %2437 = vmatpush1.msra.mxu0 0.0
    %2438 = vmatprep.subr.mxu0 0.0
    %2439 = vmatpush1.msra.mxu0 0.0
    %2440 = vmatprep.subr.mxu0 0.0
    %2441 = vmatpush1.msra.mxu0 0.0
    %2442 = vmatprep.subr.mxu0 0.0
    %2443 = vmatpush1.msra.mxu0 0.0
    %2444 = vmatprep.subr.mxu0 0.0
    %2445 = vmatpush1.msra.mxu0 0.0
    %2446 = vmatprep.subr.mxu0 0.0
    %2447 = vmatpush1.msra.mxu0 0.0
    %2448 = vmatprep.subr.mxu0 0.0
    %2449 = vmatpush1.msra.mxu0 0.0
    %2450 = vmatprep.subr.mxu0 0.0
    %2451 = vmatpush1.msra.mxu0 0.0
    %2452 = vmatprep.subr.mxu0 0.0
    %2453 = vmatpush1.msra.mxu0 0.0
    %2454 = vmatprep.subr.mxu0 0.0
    %2455 = vmatpush1.msra.mxu0 0.0
    %2456 = vmatprep.subr.mxu0 0.0
    %2457 = vmatpush1.msra.mxu0 0.0
    %2458 = vmatprep.subr.mxu0 0.0
    %2459 = vmatpush1.msra.mxu0 0.0
    %2460 = vmatprep.subr.mxu0 0.0
    %2461 = vmatpush1.msra.mxu0 0.0
    %2462 = vmatprep.subr.mxu0 0.0
    %2463 = vmatpush1.msra.mxu0 0.0
    %2464 = vmatprep.subr.mxu0 0.0
    %2465 = vmatpush1.msra.mxu0 0.0
    %2466 = vmatprep.subr.mxu0 0.0
    %2467 = vmatpush1.msra.mxu0 0.0
    %2468 = vmatprep.subr.mxu0 0.0
    %2469 = vmatpush1.msra.mxu0 0.0
    %2470 = vmatprep.subr.mxu0 0.0
    %2471 = vmatpush1.msra.mxu0 0.0
    %2472 = vmatprep.subr.mxu0 0.0
    %2473 = vmatpush1.msra.mxu0 0.0
    %2474 = vmatprep.subr.mxu0 0.0
    %2475 = vmatpush1.msra.mxu0 0.0
    %2476 = vmatprep.subr.mxu0 0.0
    %2477 = vmatpush1.msra.mxu0 0.0
    %2478 = vmatprep.subr.mxu0 0.0
    %2479 = vmatpush1.msra.mxu0 0.0
    %2480 = vmatprep.subr.mxu0 0.0
    %2481 = vmatpush1.msra.mxu0 0.0
    %2482 = vmatprep.subr.mxu0 0.0
    %2483 = vmatpush1.msra.mxu0 0.0
    %2484 = vmatprep.subr.mxu0 0.0
    %2485 = vmatpush1.msra.mxu0 0.0
    %2486 = vmatprep.subr.mxu0 0.0
    %2487 = vmatpush1.msra.mxu0 0.0
    %2488 = vmatprep.mubr.f32.mxu0 0.0
    %2489 = vmatmul.mubr.f32.gmra.mrb[0].mxu0 %v1998
    %v2490 = vpop.f32.mrb[0].mxu0
    %v2491 = vadd.f32 %v454, %v2490
    %v2492 = vpop.f32.mrb[0].mxu0
    %2493 = vdwg.mxu0
    %2494 = vmatprep.subr.mxu0 0.0
    %2495 = vmatpush1.msra.mxu0 %v90
    %2496 = vmatprep.subr.mxu0 0.0
    %2497 = vmatpush1.msra.mxu0 %v91
    %2498 = vmatprep.subr.mxu0 0.0
    %2499 = vmatpush1.msra.mxu0 %v92
    %2500 = vmatprep.subr.mxu0 0.0
    %2501 = vmatpush1.msra.mxu0 %v93
    %2502 = vmatprep.subr.mxu0 0.0
    %2503 = vmatpush1.msra.mxu0 0.0
    %2504 = vmatprep.subr.mxu0 0.0
    %2505 = vmatpush1.msra.mxu0 0.0
    %2506 = vmatprep.subr.mxu0 0.0
    %2507 = vmatpush1.msra.mxu0 0.0
    %2508 = vmatprep.subr.mxu0 0.0
    %2509 = vmatpush1.msra.mxu0 0.0
    %2510 = vmatprep.subr.mxu0 0.0
    %2511 = vmatpush1.msra.mxu0 0.0
    %2512 = vmatprep.subr.mxu0 0.0
    %2513 = vmatpush1.msra.mxu0 0.0
    %2514 = vmatprep.subr.mxu0 0.0
    %2515 = vmatpush1.msra.mxu0 0.0
    %2516 = vmatprep.subr.mxu0 0.0
    %2517 = vmatpush1.msra.mxu0 0.0
    %2518 = vmatprep.subr.mxu0 0.0
    %2519 = vmatpush1.msra.mxu0 0.0
    %2520 = vmatprep.subr.mxu0 0.0
    %2521 = vmatpush1.msra.mxu0 0.0
    %2522 = vmatprep.subr.mxu0 0.0
    %2523 = vmatpush1.msra.mxu0 0.0
    %2524 = vmatprep.subr.mxu0 0.0
    %2525 = vmatpush1.msra.mxu0 0.0
    %2526 = vmatprep.subr.mxu0 0.0
    %2527 = vmatpush1.msra.mxu0 0.0
    %2528 = vmatprep.subr.mxu0 0.0
    %2529 = vmatpush1.msra.mxu0 0.0
    %2530 = vmatprep.subr.mxu0 0.0
    %2531 = vmatpush1.msra.mxu0 0.0
    %2532 = vmatprep.subr.mxu0 0.0
    %2533 = vmatpush1.msra.mxu0 0.0
    %2534 = vmatprep.subr.mxu0 0.0
    %2535 = vmatpush1.msra.mxu0 0.0
    %2536 = vmatprep.subr.mxu0 0.0
    %2537 = vmatpush1.msra.mxu0 0.0
    %2538 = vmatprep.subr.mxu0 0.0
    %2539 = vmatpush1.msra.mxu0 0.0
    %2540 = vmatprep.subr.mxu0 0.0
    %2541 = vmatpush1.msra.mxu0 0.0
    %2542 = vmatprep.subr.mxu0 0.0
    %2543 = vmatpush1.msra.mxu0 0.0
    %2544 = vmatprep.subr.mxu0 0.0
    %2545 = vmatpush1.msra.mxu0 0.0
    %2546 = vmatprep.subr.mxu0 0.0
    %2547 = vmatpush1.msra.mxu0 0.0
    %2548 = vmatprep.subr.mxu0 0.0
    %2549 = vmatpush1.msra.mxu0 0.0
    %2550 = vmatprep.subr.mxu0 0.0
    %2551 = vmatpush1.msra.mxu0 0.0
    %2552 = vmatprep.subr.mxu0 0.0
    %2553 = vmatpush1.msra.mxu0 0.0
    %2554 = vmatprep.subr.mxu0 0.0
    %2555 = vmatpush1.msra.mxu0 0.0
    %2556 = vmatprep.subr.mxu0 0.0
    %2557 = vmatpush1.msra.mxu0 0.0
    %2558 = vmatprep.mubr.f32.mxu0 0.0
    %2559 = vmatmul.mubr.f32.gmra.mrb[0].mxu0 %v1998
    %v2560 = vpop.f32.mrb[0].mxu0
    %v2561 = vadd.f32 %v458, %v2560
    %v2562 = vpop.f32.mrb[0].mxu0
    %2563 = vdwg.mxu0
    %2564 = vmatprep.subr.mxu0 0.0
    %2565 = vmatpush1.msra.mxu0 %v94
    %2566 = vmatprep.subr.mxu0 0.0
    %2567 = vmatpush1.msra.mxu0 %v95
    %2568 = vmatprep.subr.mxu0 0.0
    %2569 = vmatpush1.msra.mxu0 %v96
    %2570 = vmatprep.subr.mxu0 0.0
    %2571 = vmatpush1.msra.mxu0 %v97
    %2572 = vmatprep.subr.mxu0 0.0
    %2573 = vmatpush1.msra.mxu0 0.0
    %2574 = vmatprep.subr.mxu0 0.0
    %2575 = vmatpush1.msra.mxu0 0.0
    %2576 = vmatprep.subr.mxu0 0.0
    %2577 = vmatpush1.msra.mxu0 0.0
    %2578 = vmatprep.subr.mxu0 0.0
    %2579 = vmatpush1.msra.mxu0 0.0
    %2580 = vmatprep.subr.mxu0 0.0
    %2581 = vmatpush1.msra.mxu0 0.0
    %2582 = vmatprep.subr.mxu0 0.0
    %2583 = vmatpush1.msra.mxu0 0.0
    %2584 = vmatprep.subr.mxu0 0.0
    %2585 = vmatpush1.msra.mxu0 0.0
    %2586 = vmatprep.subr.mxu0 0.0
    %2587 = vmatpush1.msra.mxu0 0.0
    %2588 = vmatprep.subr.mxu0 0.0
    %2589 = vmatpush1.msra.mxu0 0.0
    %2590 = vmatprep.subr.mxu0 0.0
    %2591 = vmatpush1.msra.mxu0 0.0
    %2592 = vmatprep.subr.mxu0 0.0
    %2593 = vmatpush1.msra.mxu0 0.0
    %2594 = vmatprep.subr.mxu0 0.0
    %2595 = vmatpush1.msra.mxu0 0.0
    %2596 = vmatprep.subr.mxu0 0.0
    %2597 = vmatpush1.msra.mxu0 0.0
    %2598 = vmatprep.subr.mxu0 0.0
    %2599 = vmatpush1.msra.mxu0 0.0
    %2600 = vmatprep.subr.mxu0 0.0
    %2601 = vmatpush1.msra.mxu0 0.0
    %2602 = vmatprep.subr.mxu0 0.0
    %2603 = vmatpush1.msra.mxu0 0.0
    %2604 = vmatprep.subr.mxu0 0.0
    %2605 = vmatpush1.msra.mxu0 0.0
    %2606 = vmatprep.subr.mxu0 0.0
    %2607 = vmatpush1.msra.mxu0 0.0
    %2608 = vmatprep.subr.mxu0 0.0
    %2609 = vmatpush1.msra.mxu0 0.0
    %2610 = vmatprep.subr.mxu0 0.0
    %2611 = vmatpush1.msra.mxu0 0.0
    %2612 = vmatprep.subr.mxu0 0.0
    %2613 = vmatpush1.msra.mxu0 0.0
    %2614 = vmatprep.subr.mxu0 0.0
    %2615 = vmatpush1.msra.mxu0 0.0
    %2616 = vmatprep.subr.mxu0 0.0
    %2617 = vmatpush1.msra.mxu0 0.0
    %2618 = vmatprep.subr.mxu0 0.0
    %2619 = vmatpush1.msra.mxu0 0.0
    %2620 = vmatprep.subr.mxu0 0.0
    %2621 = vmatpush1.msra.mxu0 0.0
    %2622 = vmatprep.subr.mxu0 0.0
    %2623 = vmatpush1.msra.mxu0 0.0
    %2624 = vmatprep.subr.mxu0 0.0
    %2625 = vmatpush1.msra.mxu0 0.0
    %2626 = vmatprep.subr.mxu0 0.0
    %2627 = vmatpush1.msra.mxu0 0.0
    %2628 = vmatprep.mubr.f32.mxu0 0.0
    %2629 = vmatmul.mubr.f32.gmra.mrb[0].mxu0 %v1998
    %v2630 = vpop.f32.mrb[0].mxu0
    %v2631 = vadd.f32 %v750, %v2630
    %v2632 = vpop.f32.mrb[0].mxu0
    %2633 = vdwg.mxu0
    %2634 = vmatprep.subr.mxu0 0.0
    %2635 = vmatpush1.msra.mxu0 %v98
    %2636 = vmatprep.subr.mxu0 0.0
    %2637 = vmatpush1.msra.mxu0 %v99
    %2638 = vmatprep.subr.mxu0 0.0
    %2639 = vmatpush1.msra.mxu0 %v100
    %2640 = vmatprep.subr.mxu0 0.0
    %2641 = vmatpush1.msra.mxu0 %v101
    %2642 = vmatprep.subr.mxu0 0.0
    %2643 = vmatpush1.msra.mxu0 0.0
    %2644 = vmatprep.subr.mxu0 0.0
    %2645 = vmatpush1.msra.mxu0 0.0
    %2646 = vmatprep.subr.mxu0 0.0
    %2647 = vmatpush1.msra.mxu0 0.0
    %2648 = vmatprep.subr.mxu0 0.0
    %2649 = vmatpush1.msra.mxu0 0.0
    %2650 = vmatprep.subr.mxu0 0.0
    %2651 = vmatpush1.msra.mxu0 0.0
    %2652 = vmatprep.subr.mxu0 0.0
    %2653 = vmatpush1.msra.mxu0 0.0
    %2654 = vmatprep.subr.mxu0 0.0
    %2655 = vmatpush1.msra.mxu0 0.0
    %2656 = vmatprep.subr.mxu0 0.0
    %2657 = vmatpush1.msra.mxu0 0.0
    %2658 = vmatprep.subr.mxu0 0.0
    %2659 = vmatpush1.msra.mxu0 0.0
    %2660 = vmatprep.subr.mxu0 0.0
    %2661 = vmatpush1.msra.mxu0 0.0
    %2662 = vmatprep.subr.mxu0 0.0
    %2663 = vmatpush1.msra.mxu0 0.0
    %2664 = vmatprep.subr.mxu0 0.0
    %2665 = vmatpush1.msra.mxu0 0.0
    %2666 = vmatprep.subr.mxu0 0.0
    %2667 = vmatpush1.msra.mxu0 0.0
    %2668 = vmatprep.subr.mxu0 0.0
    %2669 = vmatpush1.msra.mxu0 0.0
    %2670 = vmatprep.subr.mxu0 0.0
    %2671 = vmatpush1.msra.mxu0 0.0
    %2672 = vmatprep.subr.mxu0 0.0
    %2673 = vmatpush1.msra.mxu0 0.0
    %2674 = vmatprep.subr.mxu0 0.0
    %2675 = vmatpush1.msra.mxu0 0.0
    %2676 = vmatprep.subr.mxu0 0.0
    %2677 = vmatpush1.msra.mxu0 0.0
    %2678 = vmatprep.subr.mxu0 0.0
    %2679 = vmatpush1.msra.mxu0 0.0
    %2680 = vmatprep.subr.mxu0 0.0
    %2681 = vmatpush1.msra.mxu0 0.0
    %2682 = vmatprep.subr.mxu0 0.0
    %2683 = vmatpush1.msra.mxu0 0.0
    %2684 = vmatprep.subr.mxu0 0.0
    %2685 = vmatpush1.msra.mxu0 0.0
    %2686 = vmatprep.subr.mxu0 0.0
    %2687 = vmatpush1.msra.mxu0 0.0
    %2688 = vmatprep.subr.mxu0 0.0
    %2689 = vmatpush1.msra.mxu0 0.0
    %2690 = vmatprep.subr.mxu0 0.0
    %2691 = vmatpush1.msra.mxu0 0.0
    %2692 = vmatprep.subr.mxu0 0.0
    %2693 = vmatpush1.msra.mxu0 0.0
    %2694 = vmatprep.subr.mxu0 0.0
    %2695 = vmatpush1.msra.mxu0 0.0
    %2696 = vmatprep.subr.mxu0 0.0
    %2697 = vmatpush1.msra.mxu0 0.0
    %2698 = vmatprep.mubr.f32.mxu0 0.0
    %2699 = vmatmul.mubr.f32.gmra.mrb[0].mxu0 %v1998
    %v2700 = vpop.f32.mrb[0].mxu0
    %v2701 = vadd.f32 %v754, %v2700
    %v2702 = vpop.f32.mrb[0].mxu0
    %2703 = vdwg.mxu0
    %2704 = vmatprep.subr.mxu0 0.0
    %2705 = vmatpush1.msra.mxu0 %v102
    %2706 = vmatprep.subr.mxu0 0.0
    %2707 = vmatpush1.msra.mxu0 %v103
    %2708 = vmatprep.subr.mxu0 0.0
    %2709 = vmatpush1.msra.mxu0 %v104
    %2710 = vmatprep.subr.mxu0 0.0
    %2711 = vmatpush1.msra.mxu0 %v105
    %2712 = vmatprep.subr.mxu0 0.0
    %2713 = vmatpush1.msra.mxu0 0.0
    %2714 = vmatprep.subr.mxu0 0.0
    %2715 = vmatpush1.msra.mxu0 0.0
    %2716 = vmatprep.subr.mxu0 0.0
    %2717 = vmatpush1.msra.mxu0 0.0
    %2718 = vmatprep.subr.mxu0 0.0
    %2719 = vmatpush1.msra.mxu0 0.0
    %2720 = vmatprep.subr.mxu0 0.0
    %2721 = vmatpush1.msra.mxu0 0.0
    %2722 = vmatprep.subr.mxu0 0.0
    %2723 = vmatpush1.msra.mxu0 0.0
    %2724 = vmatprep.subr.mxu0 0.0
    %2725 = vmatpush1.msra.mxu0 0.0
    %2726 = vmatprep.subr.mxu0 0.0
    %2727 = vmatpush1.msra.mxu0 0.0
    %2728 = vmatprep.subr.mxu0 0.0
    %2729 = vmatpush1.msra.mxu0 0.0
    %2730 = vmatprep.subr.mxu0 0.0
    %2731 = vmatpush1.msra.mxu0 0.0
    %2732 = vmatprep.subr.mxu0 0.0
    %2733 = vmatpush1.msra.mxu0 0.0
    %2734 = vmatprep.subr.mxu0 0.0
    %2735 = vmatpush1.msra.mxu0 0.0
    %2736 = vmatprep.subr.mxu0 0.0
    %2737 = vmatpush1.msra.mxu0 0.0
    %2738 = vmatprep.subr.mxu0 0.0
    %2739 = vmatpush1.msra.mxu0 0.0
    %2740 = vmatprep.subr.mxu0 0.0
    %2741 = vmatpush1.msra.mxu0 0.0
    %2742 = vmatprep.subr.mxu0 0.0
    %2743 = vmatpush1.msra.mxu0 0.0
    %2744 = vmatprep.subr.mxu0 0.0
    %2745 = vmatpush1.msra.mxu0 0.0
    %2746 = vmatprep.subr.mxu0 0.0
    %2747 = vmatpush1.msra.mxu0 0.0
    %2748 = vmatprep.subr.mxu0 0.0
    %2749 = vmatpush1.msra.mxu0 0.0
    %2750 = vmatprep.subr.mxu0 0.0
    %2751 = vmatpush1.msra.mxu0 0.0
    %2752 = vmatprep.subr.mxu0 0.0
    %2753 = vmatpush1.msra.mxu0 0.0
    %2754 = vmatprep.subr.mxu0 0.0
    %2755 = vmatpush1.msra.mxu0 0.0
    %2756 = vmatprep.subr.mxu0 0.0
    %2757 = vmatpush1.msra.mxu0 0.0
    %2758 = vmatprep.subr.mxu0 0.0
    %2759 = vmatpush1.msra.mxu0 0.0
    %2760 = vmatprep.subr.mxu0 0.0
    %2761 = vmatpush1.msra.mxu0 0.0
    %2762 = vmatprep.subr.mxu0 0.0
    %2763 = vmatpush1.msra.mxu0 0.0
    %2764 = vmatprep.subr.mxu0 0.0
    %2765 = vmatpush1.msra.mxu0 0.0
    %2766 = vmatprep.subr.mxu0 0.0
    %2767 = vmatpush1.msra.mxu0 0.0
    %2768 = vmatprep.mubr.f32.mxu0 0.0
    %2769 = vmatmul.mubr.f32.gmra.mrb[0].mxu0 %v1998
    %v2770 = vpop.f32.mrb[0].mxu0
    %v2771 = vadd.f32 %v758, %v2770
    %v2772 = vpop.f32.mrb[0].mxu0
    %2773 = vdwg.mxu0
    %2774 = vmatprep.subr.mxu0 0.0
    %2775 = vmatpush1.msra.mxu0 %v106
    %2776 = vmatprep.subr.mxu0 0.0
    %2777 = vmatpush1.msra.mxu0 %v107
    %2778 = vmatprep.subr.mxu0 0.0
    %2779 = vmatpush1.msra.mxu0 %v108
    %2780 = vmatprep.subr.mxu0 0.0
    %2781 = vmatpush1.msra.mxu0 %v109
    %2782 = vmatprep.subr.mxu0 0.0
    %2783 = vmatpush1.msra.mxu0 0.0
    %2784 = vmatprep.subr.mxu0 0.0
    %2785 = vmatpush1.msra.mxu0 0.0
    %2786 = vmatprep.subr.mxu0 0.0
    %2787 = vmatpush1.msra.mxu0 0.0
    %2788 = vmatprep.subr.mxu0 0.0
    %2789 = vmatpush1.msra.mxu0 0.0
    %2790 = vmatprep.subr.mxu0 0.0
    %2791 = vmatpush1.msra.mxu0 0.0
    %2792 = vmatprep.subr.mxu0 0.0
    %2793 = vmatpush1.msra.mxu0 0.0
    %2794 = vmatprep.subr.mxu0 0.0
    %2795 = vmatpush1.msra.mxu0 0.0
    %2796 = vmatprep.subr.mxu0 0.0
    %2797 = vmatpush1.msra.mxu0 0.0
    %2798 = vmatprep.subr.mxu0 0.0
    %2799 = vmatpush1.msra.mxu0 0.0
    %2800 = vmatprep.subr.mxu0 0.0
    %2801 = vmatpush1.msra.mxu0 0.0
    %2802 = vmatprep.subr.mxu0 0.0
    %2803 = vmatpush1.msra.mxu0 0.0
    %2804 = vmatprep.subr.mxu0 0.0
    %2805 = vmatpush1.msra.mxu0 0.0
    %2806 = vmatprep.subr.mxu0 0.0
    %2807 = vmatpush1.msra.mxu0 0.0
    %2808 = vmatprep.subr.mxu0 0.0
    %2809 = vmatpush1.msra.mxu0 0.0
    %2810 = vmatprep.subr.mxu0 0.0
    %2811 = vmatpush1.msra.mxu0 0.0
    %2812 = vmatprep.subr.mxu0 0.0
    %2813 = vmatpush1.msra.mxu0 0.0
    %2814 = vmatprep.subr.mxu0 0.0
    %2815 = vmatpush1.msra.mxu0 0.0
    %2816 = vmatprep.subr.mxu0 0.0
    %2817 = vmatpush1.msra.mxu0 0.0
    %2818 = vmatprep.subr.mxu0 0.0
    %2819 = vmatpush1.msra.mxu0 0.0
    %2820 = vmatprep.subr.mxu0 0.0
    %2821 = vmatpush1.msra.mxu0 0.0
    %2822 = vmatprep.subr.mxu0 0.0
    %2823 = vmatpush1.msra.mxu0 0.0
    %2824 = vmatprep.subr.mxu0 0.0
    %2825 = vmatpush1.msra.mxu0 0.0
    %2826 = vmatprep.subr.mxu0 0.0
    %2827 = vmatpush1.msra.mxu0 0.0
    %2828 = vmatprep.subr.mxu0 0.0
    %2829 = vmatpush1.msra.mxu0 0.0
    %2830 = vmatprep.subr.mxu0 0.0
    %2831 = vmatpush1.msra.mxu0 0.0
    %2832 = vmatprep.subr.mxu0 0.0
    %2833 = vmatpush1.msra.mxu0 0.0
    %2834 = vmatprep.subr.mxu0 0.0
    %2835 = vmatpush1.msra.mxu0 0.0
    %2836 = vmatprep.subr.mxu0 0.0
    %2837 = vmatpush1.msra.mxu0 0.0
    %2838 = vmatprep.mubr.f32.mxu0 0.0
    %2839 = vmatmul.mubr.f32.gmra.mrb[0].mxu0 %v1998
    %v2840 = vpop.f32.mrb[0].mxu0
    %v2841 = vadd.f32 %v762, %v2840
    %v2842 = vpop.f32.mrb[0].mxu0
    %2843 = vdwg.mxu0
    %s2844 = scalar_lea.vmem %s1, 8
    %v2845 = vld [vmem:[%s2844] sm:$0xff]
    %vm2846 = vcmp.eq.f32.partialorder %v2845, 0.0
    %v2847 = vsel %vm2846, -1e+09, 0.0
    %v2849 = vsel %vm1050, %v2280, 0
    %v2852 = vsel %vm1050, %v2351, 0
    %2854 = vmatprep.subr.mxu0 0.0
    %2855 = vmatpush1.xpose.msra.mxu0 %v2852
    %2856 = vmatprep.subr.mxu0 0.0
    %2857 = vmatpush1.xpose.msra.mxu0 0.0
    %2858 = vmatprep.subr.mxu0 0.0
    %2859 = vmatpush1.xpose.msra.mxu0 0.0
    %2860 = vmatprep.subr.mxu0 0.0
    %2861 = vmatpush1.xpose.msra.mxu0 0.0
    %2862 = vmatprep.subr.mxu0 0.0
    %2863 = vmatpush1.xpose.msra.mxu0 0.0
    %2864 = vmatprep.subr.mxu0 0.0
    %2865 = vmatpush1.xpose.msra.mxu0 0.0
    %2866 = vmatprep.subr.mxu0 0.0
    %2867 = vmatpush1.xpose.msra.mxu0 0.0
    %2868 = vmatprep.subr.mxu0 0.0
    %2869 = vmatpush1.xpose.msra.mxu0 0.0
    %2870 = vmatprep.subr.mxu0 0.0
    %2871 = vmatpush1.xpose.msra.mxu0 0.0
    %2872 = vmatprep.subr.mxu0 0.0
    %2873 = vmatpush1.xpose.msra.mxu0 0.0
    %2874 = vmatprep.subr.mxu0 0.0
    %2875 = vmatpush1.xpose.msra.mxu0 0.0
    %2876 = vmatprep.subr.mxu0 0.0
    %2877 = vmatpush1.xpose.msra.mxu0 0.0
    %2878 = vmatprep.subr.mxu0 0.0
    %2879 = vmatpush1.xpose.msra.mxu0 0.0
    %2880 = vmatprep.subr.mxu0 0.0
    %2881 = vmatpush1.xpose.msra.mxu0 0.0
    %2882 = vmatprep.subr.mxu0 0.0
    %2883 = vmatpush1.xpose.msra.mxu0 0.0
    %2884 = vmatprep.subr.mxu0 0.0
    %2885 = vmatpush1.xpose.msra.mxu0 0.0
    %2886 = vmatprep.subr.mxu0 0.0
    %2887 = vmatpush1.xpose.msra.mxu0 0.0
    %2888 = vmatprep.subr.mxu0 0.0
    %2889 = vmatpush1.xpose.msra.mxu0 0.0
    %2890 = vmatprep.subr.mxu0 0.0
    %2891 = vmatpush1.xpose.msra.mxu0 0.0
    %2892 = vmatprep.subr.mxu0 0.0
    %2893 = vmatpush1.xpose.msra.mxu0 0.0
    %2894 = vmatprep.subr.mxu0 0.0
    %2895 = vmatpush1.xpose.msra.mxu0 0.0
    %2896 = vmatprep.subr.mxu0 0.0
    %2897 = vmatpush1.xpose.msra.mxu0 0.0
    %2898 = vmatprep.subr.mxu0 0.0
    %2899 = vmatpush1.xpose.msra.mxu0 0.0
    %2900 = vmatprep.subr.mxu0 0.0
    %2901 = vmatpush1.xpose.msra.mxu0 0.0
    %2902 = vmatprep.subr.mxu0 0.0
    %2903 = vmatpush1.xpose.msra.mxu0 0.0
    %2904 = vmatprep.subr.mxu0 0.0
    %2905 = vmatpush1.xpose.msra.mxu0 0.0
    %2906 = vmatprep.subr.mxu0 0.0
    %2907 = vmatpush1.xpose.msra.mxu0 0.0
    %2908 = vmatprep.subr.mxu0 0.0
    %2909 = vmatpush1.xpose.msra.mxu0 0.0
    %2910 = vmatprep.subr.mxu0 0.0
    %2911 = vmatpush1.xpose.msra.mxu0 0.0
    %2912 = vmatprep.subr.mxu0 0.0
    %2913 = vmatpush1.xpose.msra.mxu0 0.0
    %2914 = vmatprep.subr.mxu0 0.0
    %2915 = vmatpush1.xpose.msra.mxu0 0.0
    %2916 = vmatprep.subr.mxu0 0.0
    %2917 = vmatpush1.xpose.msra.mxu0 0.0
    %2918 = vmatprep.mubr.f32.mxu0 0.0
    %2919 = vmatmul.mubr.f32.gmra.mrb[0].mxu0 %v2849
    %v2920 = vpop.f32.mrb[0].mxu0
    %v2921 = vadd.f32 %v2847, %v2920
    %v2922 = vpop.f32.mrb[0].mxu0
    %2923 = vdwg.mxu0
    %v2925 = vsel %vm1050, %v2281, 0
    %v2928 = vsel %vm1050, %v2421, 0
    %2930 = vmatprep.subr.mxu0 0.0
    %2931 = vmatpush1.xpose.msra.mxu0 %v2928
    %2932 = vmatprep.subr.mxu0 0.0
    %2933 = vmatpush1.xpose.msra.mxu0 0.0
    %2934 = vmatprep.subr.mxu0 0.0
    %2935 = vmatpush1.xpose.msra.mxu0 0.0
    %2936 = vmatprep.subr.mxu0 0.0
    %2937 = vmatpush1.xpose.msra.mxu0 0.0
    %2938 = vmatprep.subr.mxu0 0.0
    %2939 = vmatpush1.xpose.msra.mxu0 0.0
    %2940 = vmatprep.subr.mxu0 0.0
    %2941 = vmatpush1.xpose.msra.mxu0 0.0
    %2942 = vmatprep.subr.mxu0 0.0
    %2943 = vmatpush1.xpose.msra.mxu0 0.0
    %2944 = vmatprep.subr.mxu0 0.0
    %2945 = vmatpush1.xpose.msra.mxu0 0.0
    %2946 = vmatprep.subr.mxu0 0.0
    %2947 = vmatpush1.xpose.msra.mxu0 0.0
    %2948 = vmatprep.subr.mxu0 0.0
    %2949 = vmatpush1.xpose.msra.mxu0 0.0
    %2950 = vmatprep.subr.mxu0 0.0
    %2951 = vmatpush1.xpose.msra.mxu0 0.0
    %2952 = vmatprep.subr.mxu0 0.0
    %2953 = vmatpush1.xpose.msra.mxu0 0.0
    %2954 = vmatprep.subr.mxu0 0.0
    %2955 = vmatpush1.xpose.msra.mxu0 0.0
    %2956 = vmatprep.subr.mxu0 0.0
    %2957 = vmatpush1.xpose.msra.mxu0 0.0
    %2958 = vmatprep.subr.mxu0 0.0
    %2959 = vmatpush1.xpose.msra.mxu0 0.0
    %2960 = vmatprep.subr.mxu0 0.0
    %2961 = vmatpush1.xpose.msra.mxu0 0.0
    %2962 = vmatprep.subr.mxu0 0.0
    %2963 = vmatpush1.xpose.msra.mxu0 0.0
    %2964 = vmatprep.subr.mxu0 0.0
    %2965 = vmatpush1.xpose.msra.mxu0 0.0
    %2966 = vmatprep.subr.mxu0 0.0
    %2967 = vmatpush1.xpose.msra.mxu0 0.0
    %2968 = vmatprep.subr.mxu0 0.0
    %2969 = vmatpush1.xpose.msra.mxu0 0.0
    %2970 = vmatprep.subr.mxu0 0.0
    %2971 = vmatpush1.xpose.msra.mxu0 0.0
    %2972 = vmatprep.subr.mxu0 0.0
    %2973 = vmatpush1.xpose.msra.mxu0 0.0
    %2974 = vmatprep.subr.mxu0 0.0
    %2975 = vmatpush1.xpose.msra.mxu0 0.0
    %2976 = vmatprep.subr.mxu0 0.0
    %2977 = vmatpush1.xpose.msra.mxu0 0.0
    %2978 = vmatprep.subr.mxu0 0.0
    %2979 = vmatpush1.xpose.msra.mxu0 0.0
    %2980 = vmatprep.subr.mxu0 0.0
    %2981 = vmatpush1.xpose.msra.mxu0 0.0
    %2982 = vmatprep.subr.mxu0 0.0
    %2983 = vmatpush1.xpose.msra.mxu0 0.0
    %2984 = vmatprep.subr.mxu0 0.0
    %2985 = vmatpush1.xpose.msra.mxu0 0.0
    %2986 = vmatprep.subr.mxu0 0.0
    %2987 = vmatpush1.xpose.msra.mxu0 0.0
    %2988 = vmatprep.subr.mxu0 0.0
    %2989 = vmatpush1.xpose.msra.mxu0 0.0
    %2990 = vmatprep.subr.mxu0 0.0
    %2991 = vmatpush1.xpose.msra.mxu0 0.0
    %2992 = vmatprep.subr.mxu0 0.0
    %2993 = vmatpush1.xpose.msra.mxu0 0.0
    %2994 = vmatprep.mubr.f32.mxu0 0.0
    %2995 = vmatmul.mubr.f32.gmra.mrb[0].mxu0 %v2925
    %v2996 = vpop.f32.mrb[0].mxu0
    %v2997 = vadd.f32 %v2847, %v2996
    %v2998 = vpop.f32.mrb[0].mxu0
    %2999 = vdwg.mxu0
    %v3001 = vsel %vm1050, %v2282, 0
    %v3004 = vsel %vm1050, %v2491, 0
    %3006 = vmatprep.subr.mxu0 0.0
    %3007 = vmatpush1.xpose.msra.mxu0 %v3004
    %3008 = vmatprep.subr.mxu0 0.0
    %3009 = vmatpush1.xpose.msra.mxu0 0.0
    %3010 = vmatprep.subr.mxu0 0.0
    %3011 = vmatpush1.xpose.msra.mxu0 0.0
    %3012 = vmatprep.subr.mxu0 0.0
    %3013 = vmatpush1.xpose.msra.mxu0 0.0
    %3014 = vmatprep.subr.mxu0 0.0
    %3015 = vmatpush1.xpose.msra.mxu0 0.0
    %3016 = vmatprep.subr.mxu0 0.0
    %3017 = vmatpush1.xpose.msra.mxu0 0.0
    %3018 = vmatprep.subr.mxu0 0.0
    %3019 = vmatpush1.xpose.msra.mxu0 0.0
    %3020 = vmatprep.subr.mxu0 0.0
    %3021 = vmatpush1.xpose.msra.mxu0 0.0
    %3022 = vmatprep.subr.mxu0 0.0
    %3023 = vmatpush1.xpose.msra.mxu0 0.0
    %3024 = vmatprep.subr.mxu0 0.0
    %3025 = vmatpush1.xpose.msra.mxu0 0.0
    %3026 = vmatprep.subr.mxu0 0.0
    %3027 = vmatpush1.xpose.msra.mxu0 0.0
    %3028 = vmatprep.subr.mxu0 0.0
    %3029 = vmatpush1.xpose.msra.mxu0 0.0
    %3030 = vmatprep.subr.mxu0 0.0
    %3031 = vmatpush1.xpose.msra.mxu0 0.0
    %3032 = vmatprep.subr.mxu0 0.0
    %3033 = vmatpush1.xpose.msra.mxu0 0.0
    %3034 = vmatprep.subr.mxu0 0.0
    %3035 = vmatpush1.xpose.msra.mxu0 0.0
    %3036 = vmatprep.subr.mxu0 0.0
    %3037 = vmatpush1.xpose.msra.mxu0 0.0
    %3038 = vmatprep.subr.mxu0 0.0
    %3039 = vmatpush1.xpose.msra.mxu0 0.0
    %3040 = vmatprep.subr.mxu0 0.0
    %3041 = vmatpush1.xpose.msra.mxu0 0.0
    %3042 = vmatprep.subr.mxu0 0.0
    %3043 = vmatpush1.xpose.msra.mxu0 0.0
    %3044 = vmatprep.subr.mxu0 0.0
    %3045 = vmatpush1.xpose.msra.mxu0 0.0
    %3046 = vmatprep.subr.mxu0 0.0
    %3047 = vmatpush1.xpose.msra.mxu0 0.0
    %3048 = vmatprep.subr.mxu0 0.0
    %3049 = vmatpush1.xpose.msra.mxu0 0.0
    %3050 = vmatprep.subr.mxu0 0.0
    %3051 = vmatpush1.xpose.msra.mxu0 0.0
    %3052 = vmatprep.subr.mxu0 0.0
    %3053 = vmatpush1.xpose.msra.mxu0 0.0
    %3054 = vmatprep.subr.mxu0 0.0
    %3055 = vmatpush1.xpose.msra.mxu0 0.0
    %3056 = vmatprep.subr.mxu0 0.0
    %3057 = vmatpush1.xpose.msra.mxu0 0.0
    %3058 = vmatprep.subr.mxu0 0.0
    %3059 = vmatpush1.xpose.msra.mxu0 0.0
    %3060 = vmatprep.subr.mxu0 0.0
    %3061 = vmatpush1.xpose.msra.mxu0 0.0
    %3062 = vmatprep.subr.mxu0 0.0
    %3063 = vmatpush1.xpose.msra.mxu0 0.0
    %3064 = vmatprep.subr.mxu0 0.0
    %3065 = vmatpush1.xpose.msra.mxu0 0.0
    %3066 = vmatprep.subr.mxu0 0.0
    %3067 = vmatpush1.xpose.msra.mxu0 0.0
    %3068 = vmatprep.subr.mxu0 0.0
    %3069 = vmatpush1.xpose.msra.mxu0 0.0
    %3070 = vmatprep.mubr.f32.mxu0 0.0
    %3071 = vmatmul.mubr.f32.gmra.mrb[0].mxu0 %v3001
    %v3072 = vpop.f32.mrb[0].mxu0
    %v3073 = vadd.f32 %v2847, %v3072
    %v3074 = vpop.f32.mrb[0].mxu0
    %3075 = vdwg.mxu0
    %v3077 = vsel %vm1050, %v2283, 0
    %v3080 = vsel %vm1050, %v2561, 0
    %3082 = vmatprep.subr.mxu0 0.0
    %3083 = vmatpush1.xpose.msra.mxu0 %v3080
    %3084 = vmatprep.subr.mxu0 0.0
    %3085 = vmatpush1.xpose.msra.mxu0 0.0
    %3086 = vmatprep.subr.mxu0 0.0
    %3087 = vmatpush1.xpose.msra.mxu0 0.0
    %3088 = vmatprep.subr.mxu0 0.0
    %3089 = vmatpush1.xpose.msra.mxu0 0.0
    %3090 = vmatprep.subr.mxu0 0.0
    %3091 = vmatpush1.xpose.msra.mxu0 0.0
    %3092 = vmatprep.subr.mxu0 0.0
    %3093 = vmatpush1.xpose.msra.mxu0 0.0
    %3094 = vmatprep.subr.mxu0 0.0
    %3095 = vmatpush1.xpose.msra.mxu0 0.0
    %3096 = vmatprep.subr.mxu0 0.0
    %3097 = vmatpush1.xpose.msra.mxu0 0.0
    %3098 = vmatprep.subr.mxu0 0.0
    %3099 = vmatpush1.xpose.msra.mxu0 0.0
    %3100 = vmatprep.subr.mxu0 0.0
    %3101 = vmatpush1.xpose.msra.mxu0 0.0
    %3102 = vmatprep.subr.mxu0 0.0
    %3103 = vmatpush1.xpose.msra.mxu0 0.0
    %3104 = vmatprep.subr.mxu0 0.0
    %3105 = vmatpush1.xpose.msra.mxu0 0.0
    %3106 = vmatprep.subr.mxu0 0.0
    %3107 = vmatpush1.xpose.msra.mxu0 0.0
    %3108 = vmatprep.subr.mxu0 0.0
    %3109 = vmatpush1.xpose.msra.mxu0 0.0
    %3110 = vmatprep.subr.mxu0 0.0
    %3111 = vmatpush1.xpose.msra.mxu0 0.0
    %3112 = vmatprep.subr.mxu0 0.0
    %3113 = vmatpush1.xpose.msra.mxu0 0.0
    %3114 = vmatprep.subr.mxu0 0.0
    %3115 = vmatpush1.xpose.msra.mxu0 0.0
    %3116 = vmatprep.subr.mxu0 0.0
    %3117 = vmatpush1.xpose.msra.mxu0 0.0
    %3118 = vmatprep.subr.mxu0 0.0
    %3119 = vmatpush1.xpose.msra.mxu0 0.0
    %3120 = vmatprep.subr.mxu0 0.0
    %3121 = vmatpush1.xpose.msra.mxu0 0.0
    %3122 = vmatprep.subr.mxu0 0.0
    %3123 = vmatpush1.xpose.msra.mxu0 0.0
    %3124 = vmatprep.subr.mxu0 0.0
    %3125 = vmatpush1.xpose.msra.mxu0 0.0
    %3126 = vmatprep.subr.mxu0 0.0
    %3127 = vmatpush1.xpose.msra.mxu0 0.0
    %3128 = vmatprep.subr.mxu0 0.0
    %3129 = vmatpush1.xpose.msra.mxu0 0.0
    %3130 = vmatprep.subr.mxu0 0.0
    %3131 = vmatpush1.xpose.msra.mxu0 0.0
    %3132 = vmatprep.subr.mxu0 0.0
    %3133 = vmatpush1.xpose.msra.mxu0 0.0
    %3134 = vmatprep.subr.mxu0 0.0
    %3135 = vmatpush1.xpose.msra.mxu0 0.0
    %3136 = vmatprep.subr.mxu0 0.0
    %3137 = vmatpush1.xpose.msra.mxu0 0.0
    %3138 = vmatprep.subr.mxu0 0.0
    %3139 = vmatpush1.xpose.msra.mxu0 0.0
    %3140 = vmatprep.subr.mxu0 0.0
    %3141 = vmatpush1.xpose.msra.mxu0 0.0
    %3142 = vmatprep.subr.mxu0 0.0
    %3143 = vmatpush1.xpose.msra.mxu0 0.0
    %3144 = vmatprep.subr.mxu0 0.0
    %3145 = vmatpush1.xpose.msra.mxu0 0.0
    %3146 = vmatprep.mubr.f32.mxu0 0.0
    %3147 = vmatmul.mubr.f32.gmra.mrb[0].mxu0 %v3077
    %v3148 = vpop.f32.mrb[0].mxu0
    %v3149 = vadd.f32 %v2847, %v3148
    %v3150 = vpop.f32.mrb[0].mxu0
    %3151 = vdwg.mxu0
    %v3152 = vsel %vm1050, %v2921, -inf
    %3153 = vmax.xlane.f32.xlu0 %v3152
    %v3154 = vpop.xlane.xlu0 %3153
    %v3155 = vsel %vm1050, %v2997, -inf
    %3156 = vmax.xlane.f32.xlu0 %v3155
    %v3157 = vpop.xlane.xlu0 %3156
    %v3158 = vsel %vm1050, %v3073, -inf
    %3159 = vmax.xlane.f32.xlu0 %v3158
    %v3160 = vpop.xlane.xlu0 %3159
    %v3161 = vsel %vm1050, %v3149, -inf
    %3162 = vmax.xlane.f32.xlu0 %v3161
    %v3163 = vpop.xlane.xlu0 %3162
    %v3164 = vsub.f32 %v2921, %v3154
    %v3165 = vsub.f32 %v2997, %v3157
    %v3166 = vsub.f32 %v3073, %v3160
    %v3167 = vsub.f32 %v3149, %v3163
    %v3168 = vmul.f32 %v3164, 1.442695
    %v3169 = vpow.pop %v3168
    %v3170 = vmul.f32 %v3165, 1.442695
    %v3171 = vpow.pop %v3170
    %v3172 = vmul.f32 %v3166, 1.442695
    %v3173 = vpow.pop %v3172
    %v3174 = vmul.f32 %v3167, 1.442695
    %v3175 = vpow.pop %v3174
    %v3176 = vsel %vm1050, %v3169, 0.0
    %3177 = vadd.xlane.f32.xlu0 %v3176
    %v3178 = vpop.xlane.xlu0 %3177
    %v3179 = vsel %vm1050, %v3171, 0.0
    %3180 = vadd.xlane.f32.xlu0 %v3179
    %v3181 = vpop.xlane.xlu0 %3180
    %v3182 = vsel %vm1050, %v3173, 0.0
    %3183 = vadd.xlane.f32.xlu0 %v3182
    %v3184 = vpop.xlane.xlu0 %3183
    %v3185 = vsel %vm1050, %v3175, 0.0
    %3186 = vadd.xlane.f32.xlu0 %v3185
    %v3187 = vpop.xlane.xlu0 %3186
    %v3188 = vrcp.pop %v3178
    %v3189 = vrcp.pop %v3181
    %v3190 = vrcp.pop %v3184
    %v3191 = vrcp.pop %v3187
    %v3192 = vmul.f32 %v3169, %v3188
    %v3193 = vmul.f32 %v3171, %v3189
    %v3194 = vmul.f32 %v3173, %v3190
    %v3195 = vmul.f32 %v3175, %v3191
    %v3197 = vsel %vm1050, %v3192, 0
    %3199 = vmatprep.subr.mxu0 0.0
    %3200 = vmatpush1.msra.mxu0 %v2631
    %3201 = vmatprep.subr.mxu0 0.0
    %3202 = vmatpush1.msra.mxu0 0.0
    %3203 = vmatprep.subr.mxu0 0.0
    %3204 = vmatpush1.msra.mxu0 0.0
    %3205 = vmatprep.subr.mxu0 0.0
    %3206 = vmatpush1.msra.mxu0 0.0
    %3207 = vmatprep.subr.mxu0 0.0
    %3208 = vmatpush1.msra.mxu0 0.0
    %3209 = vmatprep.subr.mxu0 0.0
    %3210 = vmatpush1.msra.mxu0 0.0
    %3211 = vmatprep.subr.mxu0 0.0
    %3212 = vmatpush1.msra.mxu0 0.0
    %3213 = vmatprep.subr.mxu0 0.0
    %3214 = vmatpush1.msra.mxu0 0.0
    %3215 = vmatprep.subr.mxu0 0.0
    %3216 = vmatpush1.msra.mxu0 0.0
    %3217 = vmatprep.subr.mxu0 0.0
    %3218 = vmatpush1.msra.mxu0 0.0
    %3219 = vmatprep.subr.mxu0 0.0
    %3220 = vmatpush1.msra.mxu0 0.0
    %3221 = vmatprep.subr.mxu0 0.0
    %3222 = vmatpush1.msra.mxu0 0.0
    %3223 = vmatprep.subr.mxu0 0.0
    %3224 = vmatpush1.msra.mxu0 0.0
    %3225 = vmatprep.subr.mxu0 0.0
    %3226 = vmatpush1.msra.mxu0 0.0
    %3227 = vmatprep.subr.mxu0 0.0
    %3228 = vmatpush1.msra.mxu0 0.0
    %3229 = vmatprep.subr.mxu0 0.0
    %3230 = vmatpush1.msra.mxu0 0.0
    %3231 = vmatprep.subr.mxu0 0.0
    %3232 = vmatpush1.msra.mxu0 0.0
    %3233 = vmatprep.subr.mxu0 0.0
    %3234 = vmatpush1.msra.mxu0 0.0
    %3235 = vmatprep.subr.mxu0 0.0
    %3236 = vmatpush1.msra.mxu0 0.0
    %3237 = vmatprep.subr.mxu0 0.0
    %3238 = vmatpush1.msra.mxu0 0.0
    %3239 = vmatprep.subr.mxu0 0.0
    %3240 = vmatpush1.msra.mxu0 0.0
    %3241 = vmatprep.subr.mxu0 0.0
    %3242 = vmatpush1.msra.mxu0 0.0
    %3243 = vmatprep.subr.mxu0 0.0
    %3244 = vmatpush1.msra.mxu0 0.0
    %3245 = vmatprep.subr.mxu0 0.0
    %3246 = vmatpush1.msra.mxu0 0.0
    %3247 = vmatprep.subr.mxu0 0.0
    %3248 = vmatpush1.msra.mxu0 0.0
    %3249 = vmatprep.subr.mxu0 0.0
    %3250 = vmatpush1.msra.mxu0 0.0
    %3251 = vmatprep.subr.mxu0 0.0
    %3252 = vmatpush1.msra.mxu0 0.0
    %3253 = vmatprep.subr.mxu0 0.0
    %3254 = vmatpush1.msra.mxu0 0.0
    %3255 = vmatprep.subr.mxu0 0.0
    %3256 = vmatpush1.msra.mxu0 0.0
    %3257 = vmatprep.subr.mxu0 0.0
    %3258 = vmatpush1.msra.mxu0 0.0
    %3259 = vmatprep.subr.mxu0 0.0
    %3260 = vmatpush1.msra.mxu0 0.0
    %3261 = vmatprep.subr.mxu0 0.0
    %3262 = vmatpush1.msra.mxu0 0.0
    %3263 = vmatprep.mubr.f32.mxu0 0.0
    %3264 = vmatmul.mubr.f32.gmra.mrb[0].mxu0 %v3197
    %v3265 = vpop.f32.mrb[0].mxu0
    %v3266 = vadd.f32 0.0, %v3265
    %v3267 = vpop.f32.mrb[0].mxu0
    %3268 = vdwg.mxu0
    %v3270 = vsel %vm1050, %v3193, 0
    %3272 = vmatprep.subr.mxu0 0.0
    %3273 = vmatpush1.msra.mxu0 %v2701
    %3274 = vmatprep.subr.mxu0 0.0
    %3275 = vmatpush1.msra.mxu0 0.0
    %3276 = vmatprep.subr.mxu0 0.0
    %3277 = vmatpush1.msra.mxu0 0.0
    %3278 = vmatprep.subr.mxu0 0.0
    %3279 = vmatpush1.msra.mxu0 0.0
    %3280 = vmatprep.subr.mxu0 0.0
    %3281 = vmatpush1.msra.mxu0 0.0
    %3282 = vmatprep.subr.mxu0 0.0
    %3283 = vmatpush1.msra.mxu0 0.0
    %3284 = vmatprep.subr.mxu0 0.0
    %3285 = vmatpush1.msra.mxu0 0.0
    %3286 = vmatprep.subr.mxu0 0.0
    %3287 = vmatpush1.msra.mxu0 0.0
    %3288 = vmatprep.subr.mxu0 0.0
    %3289 = vmatpush1.msra.mxu0 0.0
    %3290 = vmatprep.subr.mxu0 0.0
    %3291 = vmatpush1.msra.mxu0 0.0
    %3292 = vmatprep.subr.mxu0 0.0
    %3293 = vmatpush1.msra.mxu0 0.0
    %3294 = vmatprep.subr.mxu0 0.0
    %3295 = vmatpush1.msra.mxu0 0.0
    %3296 = vmatprep.subr.mxu0 0.0
    %3297 = vmatpush1.msra.mxu0 0.0
    %3298 = vmatprep.subr.mxu0 0.0
    %3299 = vmatpush1.msra.mxu0 0.0
    %3300 = vmatprep.subr.mxu0 0.0
    %3301 = vmatpush1.msra.mxu0 0.0
    %3302 = vmatprep.subr.mxu0 0.0
    %3303 = vmatpush1.msra.mxu0 0.0
    %3304 = vmatprep.subr.mxu0 0.0
    %3305 = vmatpush1.msra.mxu0 0.0
    %3306 = vmatprep.subr.mxu0 0.0
    %3307 = vmatpush1.msra.mxu0 0.0
    %3308 = vmatprep.subr.mxu0 0.0
    %3309 = vmatpush1.msra.mxu0 0.0
    %3310 = vmatprep.subr.mxu0 0.0
    %3311 = vmatpush1.msra.mxu0 0.0
    %3312 = vmatprep.subr.mxu0 0.0
    %3313 = vmatpush1.msra.mxu0 0.0
    %3314 = vmatprep.subr.mxu0 0.0
    %3315 = vmatpush1.msra.mxu0 0.0
    %3316 = vmatprep.subr.mxu0 0.0
    %3317 = vmatpush1.msra.mxu0 0.0
    %3318 = vmatprep.subr.mxu0 0.0
    %3319 = vmatpush1.msra.mxu0 0.0
    %3320 = vmatprep.subr.mxu0 0.0
    %3321 = vmatpush1.msra.mxu0 0.0
    %3322 = vmatprep.subr.mxu0 0.0
    %3323 = vmatpush1.msra.mxu0 0.0
    %3324 = vmatprep.subr.mxu0 0.0
    %3325 = vmatpush1.msra.mxu0 0.0
    %3326 = vmatprep.subr.mxu0 0.0
    %3327 = vmatpush1.msra.mxu0 0.0
    %3328 = vmatprep.subr.mxu0 0.0
    %3329 = vmatpush1.msra.mxu0 0.0
    %3330 = vmatprep.subr.mxu0 0.0
    %3331 = vmatpush1.msra.mxu0 0.0
    %3332 = vmatprep.subr.mxu0 0.0
    %3333 = vmatpush1.msra.mxu0 0.0
    %3334 = vmatprep.subr.mxu0 0.0
    %3335 = vmatpush1.msra.mxu0 0.0
    %3336 = vmatprep.mubr.f32.mxu0 0.0
    %3337 = vmatmul.mubr.f32.gmra.mrb[0].mxu0 %v3270
    %v3338 = vpop.f32.mrb[0].mxu0
    %v3339 = vadd.f32 0.0, %v3338
    %v3340 = vpop.f32.mrb[0].mxu0
    %3341 = vdwg.mxu0
    %v3343 = vsel %vm1050, %v3194, 0
    %3345 = vmatprep.subr.mxu0 0.0
    %3346 = vmatpush1.msra.mxu0 %v2771
    %3347 = vmatprep.subr.mxu0 0.0
    %3348 = vmatpush1.msra.mxu0 0.0
    %3349 = vmatprep.subr.mxu0 0.0
    %3350 = vmatpush1.msra.mxu0 0.0
    %3351 = vmatprep.subr.mxu0 0.0
    %3352 = vmatpush1.msra.mxu0 0.0
    %3353 = vmatprep.subr.mxu0 0.0
    %3354 = vmatpush1.msra.mxu0 0.0
    %3355 = vmatprep.subr.mxu0 0.0
    %3356 = vmatpush1.msra.mxu0 0.0
    %3357 = vmatprep.subr.mxu0 0.0
    %3358 = vmatpush1.msra.mxu0 0.0
    %3359 = vmatprep.subr.mxu0 0.0
    %3360 = vmatpush1.msra.mxu0 0.0
    %3361 = vmatprep.subr.mxu0 0.0
    %3362 = vmatpush1.msra.mxu0 0.0
    %3363 = vmatprep.subr.mxu0 0.0
    %3364 = vmatpush1.msra.mxu0 0.0
    %3365 = vmatprep.subr.mxu0 0.0
    %3366 = vmatpush1.msra.mxu0 0.0
    %3367 = vmatprep.subr.mxu0 0.0
    %3368 = vmatpush1.msra.mxu0 0.0
    %3369 = vmatprep.subr.mxu0 0.0
    %3370 = vmatpush1.msra.mxu0 0.0
    %3371 = vmatprep.subr.mxu0 0.0
    %3372 = vmatpush1.msra.mxu0 0.0
    %3373 = vmatprep.subr.mxu0 0.0
    %3374 = vmatpush1.msra.mxu0 0.0
    %3375 = vmatprep.subr.mxu0 0.0
    %3376 = vmatpush1.msra.mxu0 0.0
    %3377 = vmatprep.subr.mxu0 0.0
    %3378 = vmatpush1.msra.mxu0 0.0
    %3379 = vmatprep.subr.mxu0 0.0
    %3380 = vmatpush1.msra.mxu0 0.0
    %3381 = vmatprep.subr.mxu0 0.0
    %3382 = vmatpush1.msra.mxu0 0.0
    %3383 = vmatprep.subr.mxu0 0.0
    %3384 = vmatpush1.msra.mxu0 0.0
    %3385 = vmatprep.subr.mxu0 0.0
    %3386 = vmatpush1.msra.mxu0 0.0
    %3387 = vmatprep.subr.mxu0 0.0
    %3388 = vmatpush1.msra.mxu0 0.0
    %3389 = vmatprep.subr.mxu0 0.0
    %3390 = vmatpush1.msra.mxu0 0.0
    %3391 = vmatprep.subr.mxu0 0.0
    %3392 = vmatpush1.msra.mxu0 0.0
    %3393 = vmatprep.subr.mxu0 0.0
    %3394 = vmatpush1.msra.mxu0 0.0
    %3395 = vmatprep.subr.mxu0 0.0
    %3396 = vmatpush1.msra.mxu0 0.0
    %3397 = vmatprep.subr.mxu0 0.0
    %3398 = vmatpush1.msra.mxu0 0.0
    %3399 = vmatprep.subr.mxu0 0.0
    %3400 = vmatpush1.msra.mxu0 0.0
    %3401 = vmatprep.subr.mxu0 0.0
    %3402 = vmatpush1.msra.mxu0 0.0
    %3403 = vmatprep.subr.mxu0 0.0
    %3404 = vmatpush1.msra.mxu0 0.0
    %3405 = vmatprep.subr.mxu0 0.0
    %3406 = vmatpush1.msra.mxu0 0.0
    %3407 = vmatprep.subr.mxu0 0.0
    %3408 = vmatpush1.msra.mxu0 0.0
    %3409 = vmatprep.mubr.f32.mxu0 0.0
    %3410 = vmatmul.mubr.f32.gmra.mrb[0].mxu0 %v3343
    %v3411 = vpop.f32.mrb[0].mxu0
    %v3412 = vadd.f32 0.0, %v3411
    %v3413 = vpop.f32.mrb[0].mxu0
    %3414 = vdwg.mxu0
    %v3416 = vsel %vm1050, %v3195, 0
    %3418 = vmatprep.subr.mxu0 0.0
    %3419 = vmatpush1.msra.mxu0 %v2841
    %3420 = vmatprep.subr.mxu0 0.0
    %3421 = vmatpush1.msra.mxu0 0.0
    %3422 = vmatprep.subr.mxu0 0.0
    %3423 = vmatpush1.msra.mxu0 0.0
    %3424 = vmatprep.subr.mxu0 0.0
    %3425 = vmatpush1.msra.mxu0 0.0
    %3426 = vmatprep.subr.mxu0 0.0
    %3427 = vmatpush1.msra.mxu0 0.0
    %3428 = vmatprep.subr.mxu0 0.0
    %3429 = vmatpush1.msra.mxu0 0.0
    %3430 = vmatprep.subr.mxu0 0.0
    %3431 = vmatpush1.msra.mxu0 0.0
    %3432 = vmatprep.subr.mxu0 0.0
    %3433 = vmatpush1.msra.mxu0 0.0
    %3434 = vmatprep.subr.mxu0 0.0
    %3435 = vmatpush1.msra.mxu0 0.0
    %3436 = vmatprep.subr.mxu0 0.0
    %3437 = vmatpush1.msra.mxu0 0.0
    %3438 = vmatprep.subr.mxu0 0.0
    %3439 = vmatpush1.msra.mxu0 0.0
    %3440 = vmatprep.subr.mxu0 0.0
    %3441 = vmatpush1.msra.mxu0 0.0
    %3442 = vmatprep.subr.mxu0 0.0
    %3443 = vmatpush1.msra.mxu0 0.0
    %3444 = vmatprep.subr.mxu0 0.0
    %3445 = vmatpush1.msra.mxu0 0.0
    %3446 = vmatprep.subr.mxu0 0.0
    %3447 = vmatpush1.msra.mxu0 0.0
    %3448 = vmatprep.subr.mxu0 0.0
    %3449 = vmatpush1.msra.mxu0 0.0
    %3450 = vmatprep.subr.mxu0 0.0
    %3451 = vmatpush1.msra.mxu0 0.0
    %3452 = vmatprep.subr.mxu0 0.0
    %3453 = vmatpush1.msra.mxu0 0.0
    %3454 = vmatprep.subr.mxu0 0.0
    %3455 = vmatpush1.msra.mxu0 0.0
    %3456 = vmatprep.subr.mxu0 0.0
    %3457 = vmatpush1.msra.mxu0 0.0
    %3458 = vmatprep.subr.mxu0 0.0
    %3459 = vmatpush1.msra.mxu0 0.0
    %3460 = vmatprep.subr.mxu0 0.0
    %3461 = vmatpush1.msra.mxu0 0.0
    %3462 = vmatprep.subr.mxu0 0.0
    %3463 = vmatpush1.msra.mxu0 0.0
    %3464 = vmatprep.subr.mxu0 0.0
    %3465 = vmatpush1.msra.mxu0 0.0
    %3466 = vmatprep.subr.mxu0 0.0
    %3467 = vmatpush1.msra.mxu0 0.0
    %3468 = vmatprep.subr.mxu0 0.0
    %3469 = vmatpush1.msra.mxu0 0.0
    %3470 = vmatprep.subr.mxu0 0.0
    %3471 = vmatpush1.msra.mxu0 0.0
    %3472 = vmatprep.subr.mxu0 0.0
    %3473 = vmatpush1.msra.mxu0 0.0
    %3474 = vmatprep.subr.mxu0 0.0
    %3475 = vmatpush1.msra.mxu0 0.0
    %3476 = vmatprep.subr.mxu0 0.0
    %3477 = vmatpush1.msra.mxu0 0.0
    %3478 = vmatprep.subr.mxu0 0.0
    %3479 = vmatpush1.msra.mxu0 0.0
    %3480 = vmatprep.subr.mxu0 0.0
    %3481 = vmatpush1.msra.mxu0 0.0
    %3482 = vmatprep.mubr.f32.mxu0 0.0
    %3483 = vmatmul.mubr.f32.gmra.mrb[0].mxu0 %v3416
    %v3484 = vpop.f32.mrb[0].mxu0
    %v3485 = vadd.f32 0.0, %v3484
    %v3486 = vpop.f32.mrb[0].mxu0
    %3487 = vdwg.mxu0
    %v3489 = vsel %vm1050, %v3266, 0
    %3491 = vmatprep.subr.mxu0 0.0
    %3492 = vmatpush1.msra.mxu0 %v110
    %3493 = vmatprep.subr.mxu0 0.0
    %3494 = vmatpush1.msra.mxu0 0.0
    %3495 = vmatprep.subr.mxu0 0.0
    %3496 = vmatpush1.msra.mxu0 0.0
    %3497 = vmatprep.subr.mxu0 0.0
    %3498 = vmatpush1.msra.mxu0 0.0
    %3499 = vmatprep.subr.mxu0 0.0
    %3500 = vmatpush1.msra.mxu0 0.0
    %3501 = vmatprep.subr.mxu0 0.0
    %3502 = vmatpush1.msra.mxu0 0.0
    %3503 = vmatprep.subr.mxu0 0.0
    %3504 = vmatpush1.msra.mxu0 0.0
    %3505 = vmatprep.subr.mxu0 0.0
    %3506 = vmatpush1.msra.mxu0 0.0
    %3507 = vmatprep.subr.mxu0 0.0
    %3508 = vmatpush1.msra.mxu0 0.0
    %3509 = vmatprep.subr.mxu0 0.0
    %3510 = vmatpush1.msra.mxu0 0.0
    %3511 = vmatprep.subr.mxu0 0.0
    %3512 = vmatpush1.msra.mxu0 0.0
    %3513 = vmatprep.subr.mxu0 0.0
    %3514 = vmatpush1.msra.mxu0 0.0
    %3515 = vmatprep.subr.mxu0 0.0
    %3516 = vmatpush1.msra.mxu0 0.0
    %3517 = vmatprep.subr.mxu0 0.0
    %3518 = vmatpush1.msra.mxu0 0.0
    %3519 = vmatprep.subr.mxu0 0.0
    %3520 = vmatpush1.msra.mxu0 0.0
    %3521 = vmatprep.subr.mxu0 0.0
    %3522 = vmatpush1.msra.mxu0 0.0
    %3523 = vmatprep.subr.mxu0 0.0
    %3524 = vmatpush1.msra.mxu0 0.0
    %3525 = vmatprep.subr.mxu0 0.0
    %3526 = vmatpush1.msra.mxu0 0.0
    %3527 = vmatprep.subr.mxu0 0.0
    %3528 = vmatpush1.msra.mxu0 0.0
    %3529 = vmatprep.subr.mxu0 0.0
    %3530 = vmatpush1.msra.mxu0 0.0
    %3531 = vmatprep.subr.mxu0 0.0
    %3532 = vmatpush1.msra.mxu0 0.0
    %3533 = vmatprep.subr.mxu0 0.0
    %3534 = vmatpush1.msra.mxu0 0.0
    %3535 = vmatprep.subr.mxu0 0.0
    %3536 = vmatpush1.msra.mxu0 0.0
    %3537 = vmatprep.subr.mxu0 0.0
    %3538 = vmatpush1.msra.mxu0 0.0
    %3539 = vmatprep.subr.mxu0 0.0
    %3540 = vmatpush1.msra.mxu0 0.0
    %3541 = vmatprep.subr.mxu0 0.0
    %3542 = vmatpush1.msra.mxu0 0.0
    %3543 = vmatprep.subr.mxu0 0.0
    %3544 = vmatpush1.msra.mxu0 0.0
    %3545 = vmatprep.subr.mxu0 0.0
    %3546 = vmatpush1.msra.mxu0 0.0
    %3547 = vmatprep.subr.mxu0 0.0
    %3548 = vmatpush1.msra.mxu0 0.0
    %3549 = vmatprep.subr.mxu0 0.0
    %3550 = vmatpush1.msra.mxu0 0.0
    %3551 = vmatprep.subr.mxu0 0.0
    %3552 = vmatpush1.msra.mxu0 0.0
    %3553 = vmatprep.subr.mxu0 0.0
    %3554 = vmatpush1.msra.mxu0 0.0
    %3555 = vmatprep.mubr.f32.mxu0 0.0
    %3556 = vmatmul.mubr.f32.gmra.mrb[0].mxu0 %v3489
    %v3557 = vpop.f32.mrb[0].mxu0
    %v3558 = vadd.f32 0.0, %v3557
    %v3559 = vpop.f32.mrb[0].mxu0
    %3560 = vdwg.mxu0
    %v3562 = vsel %vm1050, %v3339, 0
    %3564 = vmatprep.subr.mxu0 0.0
    %3565 = vmatpush1.msra.mxu0 %v111
    %3566 = vmatprep.subr.mxu0 0.0
    %3567 = vmatpush1.msra.mxu0 0.0
    %3568 = vmatprep.subr.mxu0 0.0
    %3569 = vmatpush1.msra.mxu0 0.0
    %3570 = vmatprep.subr.mxu0 0.0
    %3571 = vmatpush1.msra.mxu0 0.0
    %3572 = vmatprep.subr.mxu0 0.0
    %3573 = vmatpush1.msra.mxu0 0.0
    %3574 = vmatprep.subr.mxu0 0.0
    %3575 = vmatpush1.msra.mxu0 0.0
    %3576 = vmatprep.subr.mxu0 0.0
    %3577 = vmatpush1.msra.mxu0 0.0
    %3578 = vmatprep.subr.mxu0 0.0
    %3579 = vmatpush1.msra.mxu0 0.0
    %3580 = vmatprep.subr.mxu0 0.0
    %3581 = vmatpush1.msra.mxu0 0.0
    %3582 = vmatprep.subr.mxu0 0.0
    %3583 = vmatpush1.msra.mxu0 0.0
    %3584 = vmatprep.subr.mxu0 0.0
    %3585 = vmatpush1.msra.mxu0 0.0
    %3586 = vmatprep.subr.mxu0 0.0
    %3587 = vmatpush1.msra.mxu0 0.0
    %3588 = vmatprep.subr.mxu0 0.0
    %3589 = vmatpush1.msra.mxu0 0.0
    %3590 = vmatprep.subr.mxu0 0.0
    %3591 = vmatpush1.msra.mxu0 0.0
    %3592 = vmatprep.subr.mxu0 0.0
    %3593 = vmatpush1.msra.mxu0 0.0
    %3594 = vmatprep.subr.mxu0 0.0
    %3595 = vmatpush1.msra.mxu0 0.0
    %3596 = vmatprep.subr.mxu0 0.0
    %3597 = vmatpush1.msra.mxu0 0.0
    %3598 = vmatprep.subr.mxu0 0.0
    %3599 = vmatpush1.msra.mxu0 0.0
    %3600 = vmatprep.subr.mxu0 0.0
    %3601 = vmatpush1.msra.mxu0 0.0
    %3602 = vmatprep.subr.mxu0 0.0
    %3603 = vmatpush1.msra.mxu0 0.0
    %3604 = vmatprep.subr.mxu0 0.0
    %3605 = vmatpush1.msra.mxu0 0.0
    %3606 = vmatprep.subr.mxu0 0.0
    %3607 = vmatpush1.msra.mxu0 0.0
    %3608 = vmatprep.subr.mxu0 0.0
    %3609 = vmatpush1.msra.mxu0 0.0
    %3610 = vmatprep.subr.mxu0 0.0
    %3611 = vmatpush1.msra.mxu0 0.0
    %3612 = vmatprep.subr.mxu0 0.0
    %3613 = vmatpush1.msra.mxu0 0.0
    %3614 = vmatprep.subr.mxu0 0.0
    %3615 = vmatpush1.msra.mxu0 0.0
    %3616 = vmatprep.subr.mxu0 0.0
    %3617 = vmatpush1.msra.mxu0 0.0
    %3618 = vmatprep.subr.mxu0 0.0
    %3619 = vmatpush1.msra.mxu0 0.0
    %3620 = vmatprep.subr.mxu0 0.0
    %3621 = vmatpush1.msra.mxu0 0.0
    %3622 = vmatprep.subr.mxu0 0.0
    %3623 = vmatpush1.msra.mxu0 0.0
    %3624 = vmatprep.subr.mxu0 0.0
    %3625 = vmatpush1.msra.mxu0 0.0
    %3626 = vmatprep.subr.mxu0 0.0
    %3627 = vmatpush1.msra.mxu0 0.0
    %3628 = vmatprep.mubr.f32.mxu0 0.0
    %3629 = vmatmul.mubr.f32.gmra.mrb[0].mxu0 %v3562
    %v3630 = vpop.f32.mrb[0].mxu0
    %v3631 = vadd.f32 0.0, %v3630
    %v3632 = vpop.f32.mrb[0].mxu0
    %3633 = vdwg.mxu0
    %v3635 = vsel %vm1050, %v3412, 0
    %3637 = vmatprep.subr.mxu0 0.0
    %3638 = vmatpush1.msra.mxu0 %v112
    %3639 = vmatprep.subr.mxu0 0.0
    %3640 = vmatpush1.msra.mxu0 0.0
    %3641 = vmatprep.subr.mxu0 0.0
    %3642 = vmatpush1.msra.mxu0 0.0
    %3643 = vmatprep.subr.mxu0 0.0
    %3644 = vmatpush1.msra.mxu0 0.0
    %3645 = vmatprep.subr.mxu0 0.0
    %3646 = vmatpush1.msra.mxu0 0.0
    %3647 = vmatprep.subr.mxu0 0.0
    %3648 = vmatpush1.msra.mxu0 0.0
    %3649 = vmatprep.subr.mxu0 0.0
    %3650 = vmatpush1.msra.mxu0 0.0
    %3651 = vmatprep.subr.mxu0 0.0
    %3652 = vmatpush1.msra.mxu0 0.0
    %3653 = vmatprep.subr.mxu0 0.0
    %3654 = vmatpush1.msra.mxu0 0.0
    %3655 = vmatprep.subr.mxu0 0.0
    %3656 = vmatpush1.msra.mxu0 0.0
    %3657 = vmatprep.subr.mxu0 0.0
    %3658 = vmatpush1.msra.mxu0 0.0
    %3659 = vmatprep.subr.mxu0 0.0
    %3660 = vmatpush1.msra.mxu0 0.0
    %3661 = vmatprep.subr.mxu0 0.0
    %3662 = vmatpush1.msra.mxu0 0.0
    %3663 = vmatprep.subr.mxu0 0.0
    %3664 = vmatpush1.msra.mxu0 0.0
    %3665 = vmatprep.subr.mxu0 0.0
    %3666 = vmatpush1.msra.mxu0 0.0
    %3667 = vmatprep.subr.mxu0 0.0
    %3668 = vmatpush1.msra.mxu0 0.0
    %3669 = vmatprep.subr.mxu0 0.0
    %3670 = vmatpush1.msra.mxu0 0.0
    %3671 = vmatprep.subr.mxu0 0.0
    %3672 = vmatpush1.msra.mxu0 0.0
    %3673 = vmatprep.subr.mxu0 0.0
    %3674 = vmatpush1.msra.mxu0 0.0
    %3675 = vmatprep.subr.mxu0 0.0
    %3676 = vmatpush1.msra.mxu0 0.0
    %3677 = vmatprep.subr.mxu0 0.0
    %3678 = vmatpush1.msra.mxu0 0.0
    %3679 = vmatprep.subr.mxu0 0.0
    %3680 = vmatpush1.msra.mxu0 0.0
    %3681 = vmatprep.subr.mxu0 0.0
    %3682 = vmatpush1.msra.mxu0 0.0
    %3683 = vmatprep.subr.mxu0 0.0
    %3684 = vmatpush1.msra.mxu0 0.0
    %3685 = vmatprep.subr.mxu0 0.0
    %3686 = vmatpush1.msra.mxu0 0.0
    %3687 = vmatprep.subr.mxu0 0.0
    %3688 = vmatpush1.msra.mxu0 0.0
    %3689 = vmatprep.subr.mxu0 0.0
    %3690 = vmatpush1.msra.mxu0 0.0
    %3691 = vmatprep.subr.mxu0 0.0
    %3692 = vmatpush1.msra.mxu0 0.0
    %3693 = vmatprep.subr.mxu0 0.0
    %3694 = vmatpush1.msra.mxu0 0.0
    %3695 = vmatprep.subr.mxu0 0.0
    %3696 = vmatpush1.msra.mxu0 0.0
    %3697 = vmatprep.subr.mxu0 0.0
    %3698 = vmatpush1.msra.mxu0 0.0
    %3699 = vmatprep.subr.mxu0 0.0
    %3700 = vmatpush1.msra.mxu0 0.0
    %3701 = vmatprep.mubr.f32.mxu0 0.0
    %3702 = vmatmul.mubr.f32.gmra.mrb[0].mxu0 %v3635
    %v3703 = vpop.f32.mrb[0].mxu0
    %v3704 = vadd.f32 0.0, %v3703
    %v3705 = vpop.f32.mrb[0].mxu0
    %3706 = vdwg.mxu0
    %v3708 = vsel %vm1050, %v3485, 0
    %3710 = vmatprep.subr.mxu0 0.0
    %3711 = vmatpush1.msra.mxu0 %v113
    %3712 = vmatprep.subr.mxu0 0.0
    %3713 = vmatpush1.msra.mxu0 0.0
    %3714 = vmatprep.subr.mxu0 0.0
    %3715 = vmatpush1.msra.mxu0 0.0
    %3716 = vmatprep.subr.mxu0 0.0
    %3717 = vmatpush1.msra.mxu0 0.0
    %3718 = vmatprep.subr.mxu0 0.0
    %3719 = vmatpush1.msra.mxu0 0.0
    %3720 = vmatprep.subr.mxu0 0.0
    %3721 = vmatpush1.msra.mxu0 0.0
    %3722 = vmatprep.subr.mxu0 0.0
    %3723 = vmatpush1.msra.mxu0 0.0
    %3724 = vmatprep.subr.mxu0 0.0
    %3725 = vmatpush1.msra.mxu0 0.0
    %3726 = vmatprep.subr.mxu0 0.0
    %3727 = vmatpush1.msra.mxu0 0.0
    %3728 = vmatprep.subr.mxu0 0.0
    %3729 = vmatpush1.msra.mxu0 0.0
    %3730 = vmatprep.subr.mxu0 0.0
    %3731 = vmatpush1.msra.mxu0 0.0
    %3732 = vmatprep.subr.mxu0 0.0
    %3733 = vmatpush1.msra.mxu0 0.0
    %3734 = vmatprep.subr.mxu0 0.0
    %3735 = vmatpush1.msra.mxu0 0.0
    %3736 = vmatprep.subr.mxu0 0.0
    %3737 = vmatpush1.msra.mxu0 0.0
    %3738 = vmatprep.subr.mxu0 0.0
    %3739 = vmatpush1.msra.mxu0 0.0
    %3740 = vmatprep.subr.mxu0 0.0
    %3741 = vmatpush1.msra.mxu0 0.0
    %3742 = vmatprep.subr.mxu0 0.0
    %3743 = vmatpush1.msra.mxu0 0.0
    %3744 = vmatprep.subr.mxu0 0.0
    %3745 = vmatpush1.msra.mxu0 0.0
    %3746 = vmatprep.subr.mxu0 0.0
    %3747 = vmatpush1.msra.mxu0 0.0
    %3748 = vmatprep.subr.mxu0 0.0
    %3749 = vmatpush1.msra.mxu0 0.0
    %3750 = vmatprep.subr.mxu0 0.0
    %3751 = vmatpush1.msra.mxu0 0.0
    %3752 = vmatprep.subr.mxu0 0.0
    %3753 = vmatpush1.msra.mxu0 0.0
    %3754 = vmatprep.subr.mxu0 0.0
    %3755 = vmatpush1.msra.mxu0 0.0
    %3756 = vmatprep.subr.mxu0 0.0
    %3757 = vmatpush1.msra.mxu0 0.0
    %3758 = vmatprep.subr.mxu0 0.0
    %3759 = vmatpush1.msra.mxu0 0.0
    %3760 = vmatprep.subr.mxu0 0.0
    %3761 = vmatpush1.msra.mxu0 0.0
    %3762 = vmatprep.subr.mxu0 0.0
    %3763 = vmatpush1.msra.mxu0 0.0
    %3764 = vmatprep.subr.mxu0 0.0
    %3765 = vmatpush1.msra.mxu0 0.0
    %3766 = vmatprep.subr.mxu0 0.0
    %3767 = vmatpush1.msra.mxu0 0.0
    %3768 = vmatprep.subr.mxu0 0.0
    %3769 = vmatpush1.msra.mxu0 0.0
    %3770 = vmatprep.subr.mxu0 0.0
    %3771 = vmatpush1.msra.mxu0 0.0
    %3772 = vmatprep.subr.mxu0 0.0
    %3773 = vmatpush1.msra.mxu0 0.0
    %3774 = vmatprep.mubr.f32.mxu0 0.0
    %3775 = vmatmul.mubr.f32.gmra.mrb[0].mxu0 %v3708
    %v3776 = vpop.f32.mrb[0].mxu0
    %v3777 = vadd.f32 0.0, %v3776
    %v3778 = vpop.f32.mrb[0].mxu0
    %3779 = vdwg.mxu0
    %v3780 = vsel %vm151, %v3558, 0.0
    %v3781 = vsel %vm151, %v3631, 0.0
    %v3782 = vadd.f32 %v3780, %v3781
    %v3783 = vsel %vm151, %v3704, 0.0
    %v3784 = vadd.f32 %v3782, %v3783
    %v3785 = vsel %vm151, %v3777, 0.0
    %v3786 = vadd.f32 %v3784, %v3785
    %v3787 = vadd.f32 %v3786, %v1994
    %v3788 = vld [vmem:[%s14] sm:$0x1]
    %v3789 = vld [vmem:[%s15] sm:$0x1]
    %v3790 = vsel %vm151, %v1996, 0.0
    %3791 = vadd.xlane.f32.xlu0 %v3790
    %v3792 = vpop.xlane.xlu0 %3791
    %v3793 = vsel %vm151, %v3787, 0.0
    %3794 = vadd.xlane.f32.xlu0 %v3793
    %v3795 = vpop.xlane.xlu0 %3794
    %v3796 = vrcp.pop 32.0
    %v3797 = vmul.f32 %v3792, %v3796
    %v3798 = vmul.f32 %v3795, %v3796
    %v3799 = vsub.f32 %v1996, %v3797
    %v3800 = vsub.f32 %v3787, %v3798
    %v3801 = vmul.f32 %v3799, %v3799
    %v3802 = vmul.f32 %v3800, %v3800
    %v3803 = vsel %vm151, %v3801, 0.0
    %3804 = vadd.xlane.f32.xlu0 %v3803
    %v3805 = vpop.xlane.xlu0 %3804
    %v3806 = vsel %vm151, %v3802, 0.0
    %3807 = vadd.xlane.f32.xlu0 %v3806
    %v3808 = vpop.xlane.xlu0 %3807
    %v3809 = vmul.f32 %v3805, 0.032258064
    %v3810 = vmul.f32 %v3808, 0.032258064
    %v3811 = vrsqrt.pop %v3809
    %v3812 = vmul.f32 %v3809, %v3811
    %vm3813 = vcmp.eq.f32.partialorder %v3809, inf
    %v3814 = vsel %vm3813, %v3809, %v3812
    %vm3815 = vcmp.eq.f32.partialorder %v3809, 0.0
    %v3816 = vand.u32 %v3809, 2147483648
    %v3817 = vsel %vm3815, %v3816, %v3814
    %v3818 = vrsqrt.pop %v3810
    %v3819 = vmul.f32 %v3810, %v3818
    %vm3820 = vcmp.eq.f32.partialorder %v3810, inf
    %v3821 = vsel %vm3820, %v3810, %v3819
    %vm3822 = vcmp.eq.f32.partialorder %v3810, 0.0
    %v3823 = vand.u32 %v3810, 2147483648
    %v3824 = vsel %vm3822, %v3823, %v3821
    %v3825 = vadd.f32 %v3817, 1e-06
    %v3826 = vadd.f32 %v3824, 1e-06
    %v3827 = vrcp.pop %v3825
    %v3828 = vmul.f32 %v3799, %v3827
    %v3829 = vrcp.pop %v3826
    %v3830 = vmul.f32 %v3800, %v3829
    %v3832 = vlaneseq
    %v3833 = vshrl.u32 %v3832, 7
    %v3834 = vsub.s32 0, %v3833
    %v3835 = vrot.slane %v3788, %v3834
    %v3837 = vmul.f32 %v3828, %v3835
    %v3838 = vmul.f32 %v3830, %v3835
    %v3840 = vlaneseq
    %v3841 = vshrl.u32 %v3840, 7
    %v3842 = vsub.s32 0, %v3841
    %v3843 = vrot.slane %v3789, %v3842
    %v3845 = vadd.f32 %v3837, %v3843
    %v3846 = vadd.f32 %v3838, %v3843
    %v3847 = vadd.f32 %v60, %v3845
    %v3848 = vadd.f32 %v61, %v3846
    %v3849 = vld [vmem:[%s10] sm:$0xff]
    %v3850 = vld [vmem:[%s10 + $0x8] sm:$0xff]
    %v3851 = vld [vmem:[%s10 + $0x10] sm:$0xff]
    %v3852 = vld [vmem:[%s10 + $0x18] sm:$0xff]
    %v3853 = vld [vmem:[%s11] sm:$0x1]
    %v3855 = vlaneseq
    %v3856 = vshrl.u32 %v3855, 7
    %v3857 = vsub.s32 0, %v3856
    %v3858 = vrot.slane %v3853, %v3857
    %v3861 = vsel %vm151, %v3847, 0
    %v3864 = vsel %vm151, %v3848, 0
    %3866 = vmatprep.subr.mxu0 0.0
    %3867 = vmatpush1.msra.mxu0 %v3849
    %3868 = vmatprep.subr.mxu0 0.0
    %3869 = vmatpush1.msra.mxu0 %v3850
    %3870 = vmatprep.subr.mxu0 0.0
    %3871 = vmatpush1.msra.mxu0 %v3851
    %3872 = vmatprep.subr.mxu0 0.0
    %3873 = vmatpush1.msra.mxu0 %v3852
    %3874 = vmatprep.subr.mxu0 0.0
    %3875 = vmatpush1.msra.mxu0 0.0
    %3876 = vmatprep.subr.mxu0 0.0
    %3877 = vmatpush1.msra.mxu0 0.0
    %3878 = vmatprep.subr.mxu0 0.0
    %3879 = vmatpush1.msra.mxu0 0.0
    %3880 = vmatprep.subr.mxu0 0.0
    %3881 = vmatpush1.msra.mxu0 0.0
    %3882 = vmatprep.subr.mxu0 0.0
    %3883 = vmatpush1.msra.mxu0 0.0
    %3884 = vmatprep.subr.mxu0 0.0
    %3885 = vmatpush1.msra.mxu0 0.0
    %3886 = vmatprep.subr.mxu0 0.0
    %3887 = vmatpush1.msra.mxu0 0.0
    %3888 = vmatprep.subr.mxu0 0.0
    %3889 = vmatpush1.msra.mxu0 0.0
    %3890 = vmatprep.subr.mxu0 0.0
    %3891 = vmatpush1.msra.mxu0 0.0
    %3892 = vmatprep.subr.mxu0 0.0
    %3893 = vmatpush1.msra.mxu0 0.0
    %3894 = vmatprep.subr.mxu0 0.0
    %3895 = vmatpush1.msra.mxu0 0.0
    %3896 = vmatprep.subr.mxu0 0.0
    %3897 = vmatpush1.msra.mxu0 0.0
    %3898 = vmatprep.subr.mxu0 0.0
    %3899 = vmatpush1.msra.mxu0 0.0
    %3900 = vmatprep.subr.mxu0 0.0
    %3901 = vmatpush1.msra.mxu0 0.0
    %3902 = vmatprep.subr.mxu0 0.0
    %3903 = vmatpush1.msra.mxu0 0.0
    %3904 = vmatprep.subr.mxu0 0.0
    %3905 = vmatpush1.msra.mxu0 0.0
    %3906 = vmatprep.subr.mxu0 0.0
    %3907 = vmatpush1.msra.mxu0 0.0
    %3908 = vmatprep.subr.mxu0 0.0
    %3909 = vmatpush1.msra.mxu0 0.0
    %3910 = vmatprep.subr.mxu0 0.0
    %3911 = vmatpush1.msra.mxu0 0.0
    %3912 = vmatprep.subr.mxu0 0.0
    %3913 = vmatpush1.msra.mxu0 0.0
    %3914 = vmatprep.subr.mxu0 0.0
    %3915 = vmatpush1.msra.mxu0 0.0
    %3916 = vmatprep.subr.mxu0 0.0
    %3917 = vmatpush1.msra.mxu0 0.0
    %3918 = vmatprep.subr.mxu0 0.0
    %3919 = vmatpush1.msra.mxu0 0.0
    %3920 = vmatprep.subr.mxu0 0.0
    %3921 = vmatpush1.msra.mxu0 0.0
    %3922 = vmatprep.subr.mxu0 0.0
    %3923 = vmatpush1.msra.mxu0 0.0
    %3924 = vmatprep.subr.mxu0 0.0
    %3925 = vmatpush1.msra.mxu0 0.0
    %3926 = vmatprep.subr.mxu0 0.0
    %3927 = vmatpush1.msra.mxu0 0.0
    %3928 = vmatprep.subr.mxu0 0.0
    %3929 = vmatpush1.msra.mxu0 0.0
    %3930 = vmatprep.mubr.f32.mxu0 0.0
    %3931 = vmatmul.mubr.f32.gmra.mrb[0].mxu0 %v3861
    %v3932 = vpop.f32.mrb[0].mxu0
    %v3933 = vadd.f32 %v3858, %v3932
    %v3934 = vpop.f32.mrb[0].mxu0
    %3935 = vmatprep.mubr.f32.mxu0 0.0
    %3936 = vmatmul.mubr.f32.gmra.mrb[0].mxu0 %v3864
    %v3937 = vpop.f32.mrb[0].mxu0
    %v3938 = vadd.f32 %v3858, %v3937
    %v3939 = vpop.f32.mrb[0].mxu0
    %3940 = vdwg.mxu0
    %v3941 = vmax.f32 %v3933, 0.0
    %v3942 = vmax.f32 %v3938, 0.0
    %v3943 = vld [vmem:[%s12] sm:$0xff]
    %v3944 = vld [vmem:[%s12 + $0x8] sm:$0xff]
    %v3945 = vld [vmem:[%s12 + $0x10] sm:$0xff]
    %v3946 = vld [vmem:[%s12 + $0x18] sm:$0xff]
    %v3947 = vld [vmem:[%s12 + $0x20] sm:$0xff]
    %v3948 = vld [vmem:[%s12 + $0x28] sm:$0xff]
    %v3949 = vld [vmem:[%s12 + $0x30] sm:$0xff]
    %v3950 = vld [vmem:[%s12 + $0x38] sm:$0xff]
    %v3951 = vld [vmem:[%s13] sm:$0x1]
    %v3953 = vlaneseq
    %v3954 = vshrl.u32 %v3953, 7
    %v3955 = vsub.s32 0, %v3954
    %v3956 = vrot.slane %v3951, %v3955
    %vm3958 = vcmask 523264
    %v3960 = vsel %vm3958, %v3941, 0
    %v3963 = vsel %vm3958, %v3942, 0
    %3965 = vmatprep.subr.mxu0 0.0
    %3966 = vmatpush1.msra.mxu0 %v3943
    %3967 = vmatprep.subr.mxu0 0.0
    %3968 = vmatpush1.msra.mxu0 %v3944
    %3969 = vmatprep.subr.mxu0 0.0
    %3970 = vmatpush1.msra.mxu0 %v3945
    %3971 = vmatprep.subr.mxu0 0.0
    %3972 = vmatpush1.msra.mxu0 %v3946
    %3973 = vmatprep.subr.mxu0 0.0
    %3974 = vmatpush1.msra.mxu0 %v3947
    %3975 = vmatprep.subr.mxu0 0.0
    %3976 = vmatpush1.msra.mxu0 %v3948
    %3977 = vmatprep.subr.mxu0 0.0
    %3978 = vmatpush1.msra.mxu0 %v3949
    %3979 = vmatprep.subr.mxu0 0.0
    %3980 = vmatpush1.msra.mxu0 %v3950
    %3981 = vmatprep.subr.mxu0 0.0
    %3982 = vmatpush1.msra.mxu0 0.0
    %3983 = vmatprep.subr.mxu0 0.0
    %3984 = vmatpush1.msra.mxu0 0.0
    %3985 = vmatprep.subr.mxu0 0.0
    %3986 = vmatpush1.msra.mxu0 0.0
    %3987 = vmatprep.subr.mxu0 0.0
    %3988 = vmatpush1.msra.mxu0 0.0
    %3989 = vmatprep.subr.mxu0 0.0
    %3990 = vmatpush1.msra.mxu0 0.0
    %3991 = vmatprep.subr.mxu0 0.0
    %3992 = vmatpush1.msra.mxu0 0.0
    %3993 = vmatprep.subr.mxu0 0.0
    %3994 = vmatpush1.msra.mxu0 0.0
    %3995 = vmatprep.subr.mxu0 0.0
    %3996 = vmatpush1.msra.mxu0 0.0
    %3997 = vmatprep.subr.mxu0 0.0
    %3998 = vmatpush1.msra.mxu0 0.0
    %3999 = vmatprep.subr.mxu0 0.0
    %4000 = vmatpush1.msra.mxu0 0.0
    %4001 = vmatprep.subr.mxu0 0.0
    %4002 = vmatpush1.msra.mxu0 0.0
    %4003 = vmatprep.subr.mxu0 0.0
    %4004 = vmatpush1.msra.mxu0 0.0
    %4005 = vmatprep.subr.mxu0 0.0
    %4006 = vmatpush1.msra.mxu0 0.0
    %4007 = vmatprep.subr.mxu0 0.0
    %4008 = vmatpush1.msra.mxu0 0.0
    %4009 = vmatprep.subr.mxu0 0.0
    %4010 = vmatpush1.msra.mxu0 0.0
    %4011 = vmatprep.subr.mxu0 0.0
    %4012 = vmatpush1.msra.mxu0 0.0
    %4013 = vmatprep.subr.mxu0 0.0
    %4014 = vmatpush1.msra.mxu0 0.0
    %4015 = vmatprep.subr.mxu0 0.0
    %4016 = vmatpush1.msra.mxu0 0.0
    %4017 = vmatprep.subr.mxu0 0.0
    %4018 = vmatpush1.msra.mxu0 0.0
    %4019 = vmatprep.subr.mxu0 0.0
    %4020 = vmatpush1.msra.mxu0 0.0
    %4021 = vmatprep.subr.mxu0 0.0
    %4022 = vmatpush1.msra.mxu0 0.0
    %4023 = vmatprep.subr.mxu0 0.0
    %4024 = vmatpush1.msra.mxu0 0.0
    %4025 = vmatprep.subr.mxu0 0.0
    %4026 = vmatpush1.msra.mxu0 0.0
    %4027 = vmatprep.subr.mxu0 0.0
    %4028 = vmatpush1.msra.mxu0 0.0
    %4029 = vmatprep.mubr.f32.mxu0 0.0
    %4030 = vmatmul.mubr.f32.gmra.mrb[0].mxu0 %v3960
    %v4031 = vpop.f32.mrb[0].mxu0
    %v4032 = vadd.f32 %v3956, %v4031
    %v4033 = vpop.f32.mrb[0].mxu0
    %4034 = vmatprep.mubr.f32.mxu0 0.0
    %4035 = vmatmul.mubr.f32.gmra.mrb[0].mxu0 %v3963
    %v4036 = vpop.f32.mrb[0].mxu0
    %v4037 = vadd.f32 %v3956, %v4036
    %v4038 = vpop.f32.mrb[0].mxu0
    %4039 = vdwg.mxu0
    %v4040 = vld [vmem:[%s16] sm:$0x1]
    %v4041 = vld [vmem:[%s17] sm:$0x1]
    %v4042 = vsel %vm151, %v4032, 0.0
    %4043 = vadd.xlane.f32.xlu0 %v4042
    %v4044 = vpop.xlane.xlu0 %4043
    %v4045 = vsel %vm151, %v4037, 0.0
    %4046 = vadd.xlane.f32.xlu0 %v4045
    %v4047 = vpop.xlane.xlu0 %4046
    %v4048 = vmul.f32 %v4044, %v3796
    %v4049 = vmul.f32 %v4047, %v3796
    %v4050 = vsub.f32 %v4032, %v4048
    %v4051 = vsub.f32 %v4037, %v4049
    %v4052 = vmul.f32 %v4050, %v4050
    %v4053 = vmul.f32 %v4051, %v4051
    %v4054 = vsel %vm151, %v4052, 0.0
    %4055 = vadd.xlane.f32.xlu0 %v4054
    %v4056 = vpop.xlane.xlu0 %4055
    %v4057 = vsel %vm151, %v4053, 0.0
    %4058 = vadd.xlane.f32.xlu0 %v4057
    %v4059 = vpop.xlane.xlu0 %4058
    %v4060 = vmul.f32 %v4056, 0.032258064
    %v4061 = vmul.f32 %v4059, 0.032258064
    %v4062 = vrsqrt.pop %v4060
    %v4063 = vmul.f32 %v4060, %v4062
    %vm4064 = vcmp.eq.f32.partialorder %v4060, inf
    %v4065 = vsel %vm4064, %v4060, %v4063
    %vm4066 = vcmp.eq.f32.partialorder %v4060, 0.0
    %v4067 = vand.u32 %v4060, 2147483648
    %v4068 = vsel %vm4066, %v4067, %v4065
    %v4069 = vrsqrt.pop %v4061
    %v4070 = vmul.f32 %v4061, %v4069
    %vm4071 = vcmp.eq.f32.partialorder %v4061, inf
    %v4072 = vsel %vm4071, %v4061, %v4070
    %vm4073 = vcmp.eq.f32.partialorder %v4061, 0.0
    %v4074 = vand.u32 %v4061, 2147483648
    %v4075 = vsel %vm4073, %v4074, %v4072
    %v4076 = vadd.f32 %v4068, 1e-06
    %v4077 = vadd.f32 %v4075, 1e-06
    %v4078 = vrcp.pop %v4076
    %v4079 = vmul.f32 %v4050, %v4078
    %v4080 = vrcp.pop %v4077
    %v4081 = vmul.f32 %v4051, %v4080
    %v4083 = vlaneseq
    %v4084 = vshrl.u32 %v4083, 7
    %v4085 = vsub.s32 0, %v4084
    %v4086 = vrot.slane %v4040, %v4085
    %v4088 = vmul.f32 %v4079, %v4086
    %v4089 = vmul.f32 %v4081, %v4086
    %v4091 = vlaneseq
    %v4092 = vshrl.u32 %v4091, 7
    %v4093 = vsub.s32 0, %v4092
    %v4094 = vrot.slane %v4041, %v4093
    %v4096 = vadd.f32 %v4088, %v4094
    %v4097 = vadd.f32 %v4089, %v4094
    %v4098 = vadd.f32 %v3847, %v4096
    %v4099 = vadd.f32 %v3848, %v4097
    %4100 = vst.msk [vmem:[#allocation2] sm:$0xff] %vm151, %v4098
    %4101 = vst.msk [vmem:[#allocation2 + $0x8] sm:$0xff] %vm151, %v4099
    // Predicated region
    $region74: #{tpu_custom_call.1} parent=1 // pred_check
      _
    $region75: #{tpu_custom_call.1} parent=1 // pred_check_branch
      %4103 = sbr.rel (0) target = $region77
    $region76: #{tpu_custom_call.1} parent=1 // pred_region
      %s4105 = ssub.s32 256, 256
      %4106 = vsyncadd [#allocation3], %s4105
      %s4107 = sshll.u32 [#allocation2], 4
      %s4108 = int_to_ptr.vmem [resolvable:$true] %s4107
      %4113 = dma.vmem_to_hbm [thread:$0]  %s4108, 256, %s18, [#allocation3], 128, 128, 8
    $region77: #{tpu_custom_call.1} parent=1 // pred_fallthru
      _
    // Predicated region
    $region78: #{tpu_custom_call.1} parent=1 // pred_check
      _
    $region79: #{tpu_custom_call.1} parent=1 // pred_check_branch
      %4115 = sbr.rel (0) target = $region81
    $region80: #{tpu_custom_call.1} parent=1 // pred_region
      %4116 = dma.done [#allocation3], 256
    $region81: #{tpu_custom_call.1} parent=1 // pred_fallthru
      _
    %4117 = vsyncpa [#allocation3], 1

</llo_original>
